<compile_context>
chip_gen: v6e
topology: v6e:2x2x1
jax: 0.10.0
libtpu: 0.0.40
codegen_flags: <defaults>
</compile_context>

<pallas_src>
import math

import jax
import jax.numpy as jnp
from jax.experimental import pallas as pl
from jax.experimental.pallas import tpu as pltpu

# ----------------------------- model config ---------------------------------
IMAGE_SIZE = 32
PATCH = 16
IN_CH = 6                      # conv_proj hard-codes 6 input channels
HIDDEN = 32
NUM_HEADS = 4
HEAD_DIM = HIDDEN // NUM_HEADS
NUM_LAYERS = 2
MLP_DIM = 64
NUM_CLASSES = 15
CELL_DIM = 12
LN_EPS = 1e-6
BATCH = 2
GRID_HW = IMAGE_SIZE // PATCH
NUM_PATCHES = GRID_HW * GRID_HW
SEQ = NUM_PATCHES + 1
CPP = IN_CH * PATCH * PATCH    # 1536 = 12 * 128 (lane aligned)

_SQRT1_2 = 0.7071067811865476


# ----------------------------- math helpers ----------------------------------
def _erf(z):
    # Abramowitz & Stegun 7.1.26 rational approximation, |err| < 1.5e-7
    # (indistinguishable from exact erf at fp32) -> exact-GELU semantics of nn.GELU().
    a1, a2, a3, a4, a5 = 0.254829592, -0.284496736, 1.421413741, -1.453152027, 1.061405429
    p = 0.3275911
    az = jnp.abs(z)
    t = 1.0 / (1.0 + p * az)
    poly = ((((a5 * t + a4) * t + a3) * t + a2) * t + a1) * t
    y = 1.0 - poly * jnp.exp(-az * az)
    return jnp.where(z >= 0.0, y, -y)


def _gelu(x):
    # torch nn.GELU() default (erf-based)
    return 0.5 * x * (1.0 + _erf(x * _SQRT1_2))


# ----------------------------- fused Pallas kernel ---------------------------
def _fused_vit_kernel(
    patches_ref, add_ref, cell_ref, conv_wt_ref,
    ln1w_ref, ln1b_ref, wqkv_ref, bqkv_ref, wo_ref, bo_ref,
    ln2w_ref, ln2b_ref, w1_ref, b1_ref, w2_ref, b2_ref,
    lnfw_ref, lnfb_ref, arc_wc_ref, arc_we_ref, head_wc_ref, head_we_ref,
    head_b_ref, arc_out_ref, head_out_ref,
):
    d = HIDDEN
    scale = 1.0 / math.sqrt(HEAD_DIM)

    def layer_norm(v, w, b):
        mu = jnp.mean(v, axis=-1, keepdims=True)
        var = jnp.mean(jnp.square(v - mu), axis=-1, keepdims=True)
        return (v - mu) * jax.lax.rsqrt(var + LN_EPS) * w + b

    # ---- patch projection fused with class-token / pos-embedding add ----
    # row 0 of `patches` is all-zero; add_ref row 0 = class_token + pos[0],
    # rows 1.. = conv bias + pos[1:]  =>  h == concat([cls, conv_proj]) + pos.
    h = (
        jnp.dot(patches_ref[0], conv_wt_ref[...], preferred_element_type=jnp.float32)
        + add_ref[...]
    )                                                            # (SEQ, HIDDEN)

    # ---- transformer encoder layers (unrolled: NUM_LAYERS = 2) ----
    for l in range(NUM_LAYERS):
        # multi-head self-attention (pre-LN)
        xn = layer_norm(h, ln1w_ref[l], ln1b_ref[l])
        qkv = jnp.dot(xn, wqkv_ref[l], preferred_element_type=jnp.float32) + bqkv_ref[l]
        attn = None
        for n_h in range(NUM_HEADS):                             # unrolled (4 heads)
            lo = n_h * HEAD_DIM
            q = qkv[:, lo:lo + HEAD_DIM] * scale
            k = qkv[:, d + lo:d + lo + HEAD_DIM]
            v = qkv[:, 2 * d + lo:2 * d + lo + HEAD_DIM]
            s = jnp.einsum('qc,kc->qk', q, k, preferred_element_type=jnp.float32)
            s = s - jnp.max(s, axis=-1, keepdims=True)
            p = jnp.exp(s)
            p = p * pl.reciprocal(jnp.sum(p, axis=-1, keepdims=True), approx=True)
            hv = jnp.dot(p, v, preferred_element_type=jnp.float32)          # (SEQ, hd)
            contrib = jnp.dot(hv, wo_ref[l, n_h],
                              preferred_element_type=jnp.float32)           # (SEQ, D)
            attn = contrib if attn is None else attn + contrib
        h = h + attn + bo_ref[l]

        # MLP block: Linear -> GELU -> Linear (dropout = identity, eval mode)
        yn = layer_norm(h, ln2w_ref[l], ln2b_ref[l])
        h1 = _gelu(jnp.dot(yn, w1_ref[l], preferred_element_type=jnp.float32) + b1_ref[l])
        h = h + jnp.dot(h1, w2_ref[l], preferred_element_type=jnp.float32) + b2_ref[l]

    # ---- final encoder LayerNorm on the class token (LN is per-token) ----
    cls = layer_norm(h[0:1, :], lnfw_ref[...], lnfb_ref[...])    # (1, HIDDEN)
    cell = cell_ref[0]                                           # (1, CELL_DIM)

    # ---- classification head: Linear(HIDDEN+CELL -> C), input dim pre-split ----
    head_out_ref[0] = (
        jnp.dot(cls, head_wc_ref[...], preferred_element_type=jnp.float32)
        + jnp.dot(cell, head_we_ref[...], preferred_element_type=jnp.float32)
        + head_b_ref[...]
    )

    # ---- arc margin: cosine = normalize(feat) @ normalize(W).T (split form) ----
    raw = (
        jnp.dot(cls, arc_wc_ref[...], preferred_element_type=jnp.float32)
        + jnp.dot(cell, arc_we_ref[...], preferred_element_type=jnp.float32)
    )                                                            # (1, C)
    w_sq = (jnp.sum(jnp.square(arc_wc_ref[...]), axis=0, keepdims=True)
            + jnp.sum(jnp.square(arc_we_ref[...]), axis=0, keepdims=True))   # (1, C)
    f_sq = (jnp.sum(jnp.square(cls), axis=1, keepdims=True)
            + jnp.sum(jnp.square(cell), axis=1, keepdims=True))              # (1, 1)
    inv_w = 1.0 / jnp.maximum(jnp.sqrt(w_sq), 1e-12)
    inv_f = 1.0 / jnp.maximum(jnp.sqrt(f_sq), 1e-12)
    arc_out_ref[0] = raw * inv_w * inv_f


# ----------------------------- BlockSpec helpers -----------------------------
def _const_spec(shape):
    nd = len(shape)
    return pl.BlockSpec(tuple(shape), lambda b, _nd=nd: (0,) * _nd)


def _batched_spec(shape):
    nd = len(shape)
    return pl.BlockSpec((1,) + tuple(shape[1:]),
                        lambda b, _nd=nd: (b,) + (0,) * (_nd - 1))


# ----------------------------- JAX glue (jit-fused) --------------------------
def extract_patches(x, patch):
    # NCHW -> (N, num_patches, C * patch * patch), patch order row-major over the
    # spatial grid: identical element order to Conv2d(k=stride=patch) + flatten + permute.
    n, c, hgt, wdt = x.shape
    gh, gw = hgt // patch, wdt // patch
    x = x.reshape(n, c, gh, patch, gw, patch)
    x = x.transpose(0, 2, 4, 1, 3, 5)               # (n, gh, gw, c, p, p)
    return x.reshape(n, gh * gw, c * patch * patch)


@jax.jit
def custom_vit_forward(params, x, s):
    n = x.shape[0]

    # conv_proj (kernel=stride=patch) == patch unfold + matmul inside the kernel.
    patches = extract_patches(x, PATCH)                                   # (n, P, CPP)
    patches_full = jnp.concatenate(
        [jnp.zeros((n, 1, CPP), jnp.float32), patches], axis=1)           # (n, SEQ, CPP)

    conv_w_t = params['conv_w'].reshape(HIDDEN, -1).T                     # (CPP, HIDDEN)
    pos = params['pos_emb'][0]                                            # (SEQ, HIDDEN)
    add_full = jnp.concatenate(
        [params['class_token'][0] + pos[0:1],
         pos[1:] + params['conv_b'][None, :]], axis=0)                    # (SEQ, HIDDEN)

    # cell embedding lookup (4-entry gather, jitted XLA glue)
    cell = params['cell_emb'][s[:, 0]][:, None, :]                        # (n, 1, CELL)

    # stack per-layer weights along a leading layer axis (indexed statically in-kernel)
    layers = params['layers']

    def stack(key, shape):
        return jnp.stack([lp[key] for lp in layers], axis=0).reshape(shape)

    ln1_w = stack('ln1_w', (NUM_LAYERS, 1, HIDDEN))
    ln1_b = stack('ln1_b', (NUM_LAYERS, 1, HIDDEN))
    wqkv = stack('wqkv_t', (NUM_LAYERS, HIDDEN, 3 * HIDDEN))
    bqkv = stack('bqkv', (NUM_LAYERS, 1, 3 * HIDDEN))
    wo = stack('wo_t', (NUM_LAYERS, HIDDEN, HIDDEN)).reshape(
        NUM_LAYERS, NUM_HEADS, HEAD_DIM, HIDDEN)                          # head-stacked Wo
    bo = stack('bo', (NUM_LAYERS, 1, HIDDEN))
    ln2_w = stack('ln2_w', (NUM_LAYERS, 1, HIDDEN))
    ln2_b = stack('ln2_b', (NUM_LAYERS, 1, HIDDEN))
    w1 = stack('w1_t', (NUM_LAYERS, HIDDEN, MLP_DIM))
    b1 = stack('b1', (NUM_LAYERS, 1, MLP_DIM))
    w2 = stack('w2_t', (NUM_LAYERS, MLP_DIM, HIDDEN))
    b2 = stack('b2', (NUM_LAYERS, 1, HIDDEN))

    lnf_w = params['ln_f_w'].reshape(1, HIDDEN)
    lnf_b = params['ln_f_b'].reshape(1, HIDDEN)
    arc_w_t = params['arc_w'].T                                           # (HIDDEN+CELL, C)
    arc_wc, arc_we = arc_w_t[:HIDDEN], arc_w_t[HIDDEN:]
    heads_w_t = params['heads_w'].T
    head_wc, head_we = heads_w_t[:HIDDEN], heads_w_t[HIDDEN:]
    head_b = params['heads_b'].reshape(1, NUM_CLASSES)

    inputs = [
        patches_full, add_full, cell, conv_w_t,
        ln1_w, ln1_b, wqkv, bqkv, wo, bo, ln2_w, ln2_b, w1, b1, w2, b2,
        lnf_w, lnf_b, arc_wc, arc_we, head_wc, head_we, head_b,
    ]
    in_specs = [
        _batched_spec(patches_full.shape),   # per-image patch block
        _const_spec(add_full.shape),
        _batched_spec(cell.shape),           # per-image cell embedding
        _const_spec(conv_w_t.shape),
    ] + [_const_spec(a.shape) for a in inputs[4:]]

    out_shape = (
        jax.ShapeDtypeStruct((n, 1, NUM_CLASSES), jnp.float32),
        jax.ShapeDtypeStruct((n, 1, NUM_CLASSES), jnp.float32),
    )
    out_specs = (
        pl.BlockSpec((1, 1, NUM_CLASSES), lambda b: (b, 0, 0)),
        pl.BlockSpec((1, 1, NUM_CLASSES), lambda b: (b, 0, 0)),
    )

    arc3, head3 = pl.pallas_call(
        _fused_vit_kernel,
        grid=(n,),
        in_specs=in_specs,
        out_specs=out_specs,
        out_shape=out_shape,
        compiler_params=pltpu.CompilerParams(
            dimension_semantics=("parallel",)),
    )(*inputs)

    return arc3[:, 0, :], head3[:, 0, :]


# ----------------------------- parameter init --------------------------------
def init_params(key):
    keys = jax.random.split(key, 8 + NUM_LAYERS)

    def normal(k, shape, std=0.02):
        return (std * jax.random.normal(k, shape)).astype(jnp.float32)

    params = {
        'conv_w': normal(keys[0], (HIDDEN, IN_CH, PATCH, PATCH)),
        'conv_b': jnp.zeros((HIDDEN,), jnp.float32),
        'class_token': jnp.zeros((1, 1, HIDDEN), jnp.float32),      # nn.Parameter(zeros)
        'pos_emb': normal(keys[1], (1, SEQ, HIDDEN)),
        'ln_f_w': jnp.ones((HIDDEN,), jnp.float32),
        'ln_f_b': jnp.zeros((HIDDEN,), jnp.float32),
        'heads_w': normal(keys[2], (NUM_CLASSES, HIDDEN + CELL_DIM)),
        'heads_b': jnp.zeros((NUM_CLASSES,), jnp.float32),
        'arc_w': normal(keys[3], (NUM_CLASSES, HIDDEN + CELL_DIM)),
        'cell_emb': normal(keys[4], (4, CELL_DIM), std=1.0),
        'layers': [],
    }
    for layer in range(NUM_LAYERS):
        lk = jax.random.split(keys[8 + layer], 4)
        params['layers'].append({
            'ln1_w': jnp.ones((HIDDEN,), jnp.float32),
            'ln1_b': jnp.zeros((HIDDEN,), jnp.float32),
            'wqkv_t': normal(lk[0], (HIDDEN, 3 * HIDDEN)),   # pre-transposed (in, out)
            'bqkv': jnp.zeros((3 * HIDDEN,), jnp.float32),
            'wo_t': normal(lk[1], (HIDDEN, HIDDEN)),
            'bo': jnp.zeros((HIDDEN,), jnp.float32),
            'ln2_w': jnp.ones((HIDDEN,), jnp.float32),
            'ln2_b': jnp.zeros((HIDDEN,), jnp.float32),
            'w1_t': normal(lk[2], (HIDDEN, MLP_DIM)),
            'b1': jnp.zeros((MLP_DIM,), jnp.float32),
            'w2_t': normal(lk[3], (MLP_DIM, HIDDEN)),
            'b2': jnp.zeros((HIDDEN,), jnp.float32),
        })
    return params


if __name__ == "__main__":
    key = jax.random.PRNGKey(0)
    kp, kx, ks = jax.random.split(key, 3)
    params = init_params(kp)
    x = jax.random.normal(kx, (BATCH, IN_CH, IMAGE_SIZE, IMAGE_SIZE), jnp.float32)
    s = jax.random.randint(ks, (BATCH, 1), 0, 4, jnp.int32)

    arc_out, head_out = custom_vit_forward(params, x, s)
    jax.block_until_ready((arc_out, head_out))
    assert arc_out.shape == (BATCH, NUM_CLASSES)
    assert head_out.shape == (BATCH, NUM_CLASSES)
    print("KERNEL_OK")
</pallas_src>

<mosaic_0001>
module attributes {stable_mosaic.version = 11 : i64} {
  func.func @_fused_vit_kernel(%arg0: i32, %arg1: memref<1x5x1536xf32, #tpu.memory_space<vmem>>, %arg2: memref<5x32xf32, #tpu.memory_space<vmem>>, %arg3: memref<1x1x12xf32, #tpu.memory_space<vmem>>, %arg4: memref<1536x32xf32, #tpu.memory_space<vmem>>, %arg5: memref<2x1x32xf32, #tpu.memory_space<vmem>>, %arg6: memref<2x1x32xf32, #tpu.memory_space<vmem>>, %arg7: memref<2x32x96xf32, #tpu.memory_space<vmem>>, %arg8: memref<2x1x96xf32, #tpu.memory_space<vmem>>, %arg9: memref<2x4x8x32xf32, #tpu.memory_space<vmem>>, %arg10: memref<2x1x32xf32, #tpu.memory_space<vmem>>, %arg11: memref<2x1x32xf32, #tpu.memory_space<vmem>>, %arg12: memref<2x1x32xf32, #tpu.memory_space<vmem>>, %arg13: memref<2x32x64xf32, #tpu.memory_space<vmem>>, %arg14: memref<2x1x64xf32, #tpu.memory_space<vmem>>, %arg15: memref<2x64x32xf32, #tpu.memory_space<vmem>>, %arg16: memref<2x1x32xf32, #tpu.memory_space<vmem>>, %arg17: memref<1x32xf32, #tpu.memory_space<vmem>>, %arg18: memref<1x32xf32, #tpu.memory_space<vmem>>, %arg19: memref<32x15xf32, #tpu.memory_space<vmem>>, %arg20: memref<12x15xf32, #tpu.memory_space<vmem>>, %arg21: memref<32x15xf32, #tpu.memory_space<vmem>>, %arg22: memref<12x15xf32, #tpu.memory_space<vmem>>, %arg23: memref<1x15xf32, #tpu.memory_space<vmem>>, %arg24: memref<1x1x15xf32, #tpu.memory_space<vmem>>, %arg25: memref<1x1x15xf32, #tpu.memory_space<vmem>>) attributes {dimension_semantics = [#tpu.dimension_semantics<parallel>], iteration_bounds = array<i64: 2>, scalar_prefetch = 0 : i64, scratch_operands = 0 : i64, tpu.core_type = #tpu.core_type<tc>, window_params = [{transform_indices = @transform_0, window_bounds = array<i64: 1, 5, 1536>}, {pipeline_mode = #tpu.pipeline_mode<synchronous>, transform_indices = @transform_1, window_bounds = array<i64: 5, 32>}, {transform_indices = @transform_2, window_bounds = array<i64: 1, 1, 12>}, {pipeline_mode = #tpu.pipeline_mode<synchronous>, transform_indices = @transform_3, window_bounds = array<i64: 1536, 32>}, {pipeline_mode = #tpu.pipeline_mode<synchronous>, transform_indices = @transform_4, window_bounds = array<i64: 2, 1, 32>}, {pipeline_mode = #tpu.pipeline_mode<synchronous>, transform_indices = @transform_5, window_bounds = array<i64: 2, 1, 32>}, {pipeline_mode = #tpu.pipeline_mode<synchronous>, transform_indices = @transform_6, window_bounds = array<i64: 2, 32, 96>}, {pipeline_mode = #tpu.pipeline_mode<synchronous>, transform_indices = @transform_7, window_bounds = array<i64: 2, 1, 96>}, {pipeline_mode = #tpu.pipeline_mode<synchronous>, transform_indices = @transform_8, window_bounds = array<i64: 2, 4, 8, 32>}, {pipeline_mode = #tpu.pipeline_mode<synchronous>, transform_indices = @transform_9, window_bounds = array<i64: 2, 1, 32>}, {pipeline_mode = #tpu.pipeline_mode<synchronous>, transform_indices = @transform_10, window_bounds = array<i64: 2, 1, 32>}, {pipeline_mode = #tpu.pipeline_mode<synchronous>, transform_indices = @transform_11, window_bounds = array<i64: 2, 1, 32>}, {pipeline_mode = #tpu.pipeline_mode<synchronous>, transform_indices = @transform_12, window_bounds = array<i64: 2, 32, 64>}, {pipeline_mode = #tpu.pipeline_mode<synchronous>, transform_indices = @transform_13, window_bounds = array<i64: 2, 1, 64>}, {pipeline_mode = #tpu.pipeline_mode<synchronous>, transform_indices = @transform_14, window_bounds = array<i64: 2, 64, 32>}, {pipeline_mode = #tpu.pipeline_mode<synchronous>, transform_indices = @transform_15, window_bounds = array<i64: 2, 1, 32>}, {pipeline_mode = #tpu.pipeline_mode<synchronous>, transform_indices = @transform_16, window_bounds = array<i64: 1, 32>}, {pipeline_mode = #tpu.pipeline_mode<synchronous>, transform_indices = @transform_17, window_bounds = array<i64: 1, 32>}, {pipeline_mode = #tpu.pipeline_mode<synchronous>, transform_indices = @transform_18, window_bounds = array<i64: 32, 15>}, {pipeline_mode = #tpu.pipeline_mode<synchronous>, transform_indices = @transform_19, window_bounds = array<i64: 12, 15>}, {pipeline_mode = #tpu.pipeline_mode<synchronous>, transform_indices = @transform_20, window_bounds = array<i64: 32, 15>}, {pipeline_mode = #tpu.pipeline_mode<synchronous>, transform_indices = @transform_21, window_bounds = array<i64: 12, 15>}, {pipeline_mode = #tpu.pipeline_mode<synchronous>, transform_indices = @transform_22, window_bounds = array<i64: 1, 15>}, {transform_indices = @transform_23, window_bounds = array<i64: 1, 1, 15>}, {transform_indices = @transform_24, window_bounds = array<i64: 1, 1, 15>}]} {
    %c0 = arith.constant 0 : index
    %c0_0 = arith.constant 0 : index
    %c0_1 = arith.constant 0 : index
    %0 = vector.load %arg1[%c0, %c0_0, %c0_1] : memref<1x5x1536xf32, #tpu.memory_space<vmem>>, vector<1x5x1536xf32>
    %1 = vector.shape_cast %0 : vector<1x5x1536xf32> to vector<5x1536xf32>
    %c0_2 = arith.constant 0 : index
    %c0_3 = arith.constant 0 : index
    %2 = vector.load %arg4[%c0_2, %c0_3] : memref<1536x32xf32, #tpu.memory_space<vmem>>, vector<1536x32xf32>
    %cst = arith.constant dense<0.000000e+00> : vector<5x32xf32>
    %3 = tpu.matmul %1, %2, %cst {dimension_numbers = #tpu.dot_dimension_numbers<[1], [0], [0], [1], [0, 0, 1, 1], [], []>} : vector<5x1536xf32>, vector<1536x32xf32>, vector<5x32xf32> -> vector<5x32xf32>
    %c0_4 = arith.constant 0 : index
    %c0_5 = arith.constant 0 : index
    %4 = vector.load %arg2[%c0_4, %c0_5] : memref<5x32xf32, #tpu.memory_space<vmem>>, vector<5x32xf32>
    %5 = arith.addf %3, %4 : vector<5x32xf32>
    %c0_6 = arith.constant 0 : index
    %c0_7 = arith.constant 0 : index
    %c0_8 = arith.constant 0 : index
    %6 = vector.load %arg5[%c0_6, %c0_7, %c0_8] : memref<2x1x32xf32, #tpu.memory_space<vmem>>, vector<1x1x32xf32>
    %7 = vector.shape_cast %6 : vector<1x1x32xf32> to vector<1x32xf32>
    %c0_9 = arith.constant 0 : index
    %c0_10 = arith.constant 0 : index
    %c0_11 = arith.constant 0 : index
    %8 = vector.load %arg6[%c0_9, %c0_10, %c0_11] : memref<2x1x32xf32, #tpu.memory_space<vmem>>, vector<1x1x32xf32>
    %9 = vector.shape_cast %8 : vector<1x1x32xf32> to vector<1x32xf32>
    %cst_12 = arith.constant dense<0.000000e+00> : vector<5xf32>
    %10 = vector.multi_reduction <add>, %5, %cst_12 [1] : vector<5x32xf32> to vector<5xf32>
    %11 = vector.shape_cast %10 : vector<5xf32> to vector<5x1xf32>
    %cst_13 = arith.constant 3.200000e+01 : f32
    %12 = vector.broadcast %cst_13 : f32 to vector<5x1xf32>
    %13 = arith.divf %11, %12 : vector<5x1xf32>
    %14 = vector.broadcast %13 : vector<5x1xf32> to vector<5x32xf32>
    %15 = arith.subf %5, %14 : vector<5x32xf32>
    %16 = arith.mulf %15, %15 : vector<5x32xf32>
    %cst_14 = arith.constant dense<0.000000e+00> : vector<5xf32>
    %17 = vector.multi_reduction <add>, %16, %cst_14 [1] : vector<5x32xf32> to vector<5xf32>
    %18 = vector.shape_cast %17 : vector<5xf32> to vector<5x1xf32>
    %cst_15 = arith.constant 3.200000e+01 : f32
    %19 = vector.broadcast %cst_15 : f32 to vector<5x1xf32>
    %20 = arith.divf %18, %19 : vector<5x1xf32>
    %21 = vector.broadcast %13 : vector<5x1xf32> to vector<5x32xf32>
    %22 = arith.subf %5, %21 : vector<5x32xf32>
    %cst_16 = arith.constant 9.99999997E-7 : f32
    %23 = vector.broadcast %cst_16 : f32 to vector<5x1xf32>
    %24 = arith.addf %20, %23 : vector<5x1xf32>
    %25 = math.rsqrt %24 : vector<5x1xf32>
    %26 = vector.broadcast %25 : vector<5x1xf32> to vector<5x32xf32>
    %27 = arith.mulf %22, %26 : vector<5x32xf32>
    %28 = vector.broadcast %7 : vector<1x32xf32> to vector<5x32xf32>
    %29 = arith.mulf %27, %28 : vector<5x32xf32>
    %30 = vector.broadcast %9 : vector<1x32xf32> to vector<5x32xf32>
    %31 = arith.addf %29, %30 : vector<5x32xf32>
    %c0_17 = arith.constant 0 : index
    %c0_18 = arith.constant 0 : index
    %c0_19 = arith.constant 0 : index
    %32 = vector.load %arg7[%c0_17, %c0_18, %c0_19] : memref<2x32x96xf32, #tpu.memory_space<vmem>>, vector<1x32x96xf32>
    %33 = vector.shape_cast %32 : vector<1x32x96xf32> to vector<32x96xf32>
    %cst_20 = arith.constant dense<0.000000e+00> : vector<5x96xf32>
    %34 = tpu.matmul %31, %33, %cst_20 {dimension_numbers = #tpu.dot_dimension_numbers<[1], [0], [0], [1], [0, 0, 1, 1], [], []>} : vector<5x32xf32>, vector<32x96xf32>, vector<5x96xf32> -> vector<5x96xf32>
    %c0_21 = arith.constant 0 : index
    %c0_22 = arith.constant 0 : index
    %c0_23 = arith.constant 0 : index
    %35 = vector.load %arg8[%c0_21, %c0_22, %c0_23] : memref<2x1x96xf32, #tpu.memory_space<vmem>>, vector<1x1x96xf32>
    %36 = vector.shape_cast %35 : vector<1x1x96xf32> to vector<1x96xf32>
    %37 = vector.broadcast %36 : vector<1x96xf32> to vector<5x96xf32>
    %38 = arith.addf %34, %37 : vector<5x96xf32>
    %39 = vector.extract_strided_slice %38 {offsets = [0, 0], sizes = [5, 8], strides = [1, 1]} : vector<5x96xf32> to vector<5x8xf32>
    %cst_24 = arith.constant 0.353553385 : f32
    %40 = vector.broadcast %cst_24 : f32 to vector<5x8xf32>
    %41 = arith.mulf %39, %40 : vector<5x8xf32>
    %42 = vector.extract_strided_slice %38 {offsets = [0, 32], sizes = [5, 8], strides = [1, 1]} : vector<5x96xf32> to vector<5x8xf32>
    %43 = vector.extract_strided_slice %38 {offsets = [0, 64], sizes = [5, 8], strides = [1, 1]} : vector<5x96xf32> to vector<5x8xf32>
    "tpu.trace_start"() <{level = 10 : i32, message = "qc,kc->qk"}> : () -> ()
    %cst_25 = arith.constant dense<0.000000e+00> : vector<5x5xf32>
    %44 = tpu.matmul %41, %42, %cst_25 {dimension_numbers = #tpu.dot_dimension_numbers<[1], [1], [0], [0], [0, 0, 1, 0], [], []>} : vector<5x8xf32>, vector<5x8xf32>, vector<5x5xf32> -> vector<5x5xf32>
    "tpu.trace_stop"() : () -> ()
    %cst_26 = arith.constant dense<0xFF800000> : vector<5xf32>
    %45 = vector.multi_reduction <maximumf>, %44, %cst_26 [1] : vector<5x5xf32> to vector<5xf32>
    %46 = vector.shape_cast %45 : vector<5xf32> to vector<5x1xf32>
    %47 = vector.broadcast %46 : vector<5x1xf32> to vector<5x5xf32>
    %48 = arith.subf %44, %47 : vector<5x5xf32>
    %49 = math.exp %48 : vector<5x5xf32>
    %cst_27 = arith.constant dense<0.000000e+00> : vector<5xf32>
    %50 = vector.multi_reduction <add>, %49, %cst_27 [1] : vector<5x5xf32> to vector<5xf32>
    %51 = vector.shape_cast %50 : vector<5xf32> to vector<5x1xf32>
    %52 = tpu.reciprocal %51 {approx = true} : vector<5x1xf32> -> vector<5x1xf32>
    %53 = vector.broadcast %52 : vector<5x1xf32> to vector<5x5xf32>
    %54 = arith.mulf %49, %53 : vector<5x5xf32>
    %cst_28 = arith.constant dense<0.000000e+00> : vector<5x8xf32>
    %55 = tpu.matmul %54, %43, %cst_28 {dimension_numbers = #tpu.dot_dimension_numbers<[1], [0], [0], [1], [0, 0, 1, 1], [], []>} : vector<5x5xf32>, vector<5x8xf32>, vector<5x8xf32> -> vector<5x8xf32>
    %c0_29 = arith.constant 0 : index
    %c0_30 = arith.constant 0 : index
    %c0_31 = arith.constant 0 : index
    %c0_32 = arith.constant 0 : index
    %56 = vector.load %arg9[%c0_29, %c0_30, %c0_31, %c0_32] : memref<2x4x8x32xf32, #tpu.memory_space<vmem>>, vector<1x1x8x32xf32>
    %57 = vector.shape_cast %56 : vector<1x1x8x32xf32> to vector<8x32xf32>
    %cst_33 = arith.constant dense<0.000000e+00> : vector<5x32xf32>
    %58 = tpu.matmul %55, %57, %cst_33 {dimension_numbers = #tpu.dot_dimension_numbers<[1], [0], [0], [1], [0, 0, 1, 1], [], []>} : vector<5x8xf32>, vector<8x32xf32>, vector<5x32xf32> -> vector<5x32xf32>
    %59 = vector.extract_strided_slice %38 {offsets = [0, 8], sizes = [5, 8], strides = [1, 1]} : vector<5x96xf32> to vector<5x8xf32>
    %cst_34 = arith.constant 0.353553385 : f32
    %60 = vector.broadcast %cst_34 : f32 to vector<5x8xf32>
    %61 = arith.mulf %59, %60 : vector<5x8xf32>
    %62 = vector.extract_strided_slice %38 {offsets = [0, 40], sizes = [5, 8], strides = [1, 1]} : vector<5x96xf32> to vector<5x8xf32>
    %63 = vector.extract_strided_slice %38 {offsets = [0, 72], sizes = [5, 8], strides = [1, 1]} : vector<5x96xf32> to vector<5x8xf32>
    "tpu.trace_start"() <{level = 10 : i32, message = "qc,kc->qk"}> : () -> ()
    %cst_35 = arith.constant dense<0.000000e+00> : vector<5x5xf32>
    %64 = tpu.matmul %61, %62, %cst_35 {dimension_numbers = #tpu.dot_dimension_numbers<[1], [1], [0], [0], [0, 0, 1, 0], [], []>} : vector<5x8xf32>, vector<5x8xf32>, vector<5x5xf32> -> vector<5x5xf32>
    "tpu.trace_stop"() : () -> ()
    %cst_36 = arith.constant dense<0xFF800000> : vector<5xf32>
    %65 = vector.multi_reduction <maximumf>, %64, %cst_36 [1] : vector<5x5xf32> to vector<5xf32>
    %66 = vector.shape_cast %65 : vector<5xf32> to vector<5x1xf32>
    %67 = vector.broadcast %66 : vector<5x1xf32> to vector<5x5xf32>
    %68 = arith.subf %64, %67 : vector<5x5xf32>
    %69 = math.exp %68 : vector<5x5xf32>
    %cst_37 = arith.constant dense<0.000000e+00> : vector<5xf32>
    %70 = vector.multi_reduction <add>, %69, %cst_37 [1] : vector<5x5xf32> to vector<5xf32>
    %71 = vector.shape_cast %70 : vector<5xf32> to vector<5x1xf32>
    %72 = tpu.reciprocal %71 {approx = true} : vector<5x1xf32> -> vector<5x1xf32>
    %73 = vector.broadcast %72 : vector<5x1xf32> to vector<5x5xf32>
    %74 = arith.mulf %69, %73 : vector<5x5xf32>
    %cst_38 = arith.constant dense<0.000000e+00> : vector<5x8xf32>
    %75 = tpu.matmul %74, %63, %cst_38 {dimension_numbers = #tpu.dot_dimension_numbers<[1], [0], [0], [1], [0, 0, 1, 1], [], []>} : vector<5x5xf32>, vector<5x8xf32>, vector<5x8xf32> -> vector<5x8xf32>
    %c0_39 = arith.constant 0 : index
    %c1 = arith.constant 1 : index
    %c0_40 = arith.constant 0 : index
    %c0_41 = arith.constant 0 : index
    %76 = vector.load %arg9[%c0_39, %c1, %c0_40, %c0_41] : memref<2x4x8x32xf32, #tpu.memory_space<vmem>>, vector<1x1x8x32xf32>
    %77 = vector.shape_cast %76 : vector<1x1x8x32xf32> to vector<8x32xf32>
    %cst_42 = arith.constant dense<0.000000e+00> : vector<5x32xf32>
    %78 = tpu.matmul %75, %77, %cst_42 {dimension_numbers = #tpu.dot_dimension_numbers<[1], [0], [0], [1], [0, 0, 1, 1], [], []>} : vector<5x8xf32>, vector<8x32xf32>, vector<5x32xf32> -> vector<5x32xf32>
    %79 = arith.addf %58, %78 : vector<5x32xf32>
    %80 = vector.extract_strided_slice %38 {offsets = [0, 16], sizes = [5, 8], strides = [1, 1]} : vector<5x96xf32> to vector<5x8xf32>
    %cst_43 = arith.constant 0.353553385 : f32
    %81 = vector.broadcast %cst_43 : f32 to vector<5x8xf32>
    %82 = arith.mulf %80, %81 : vector<5x8xf32>
    %83 = vector.extract_strided_slice %38 {offsets = [0, 48], sizes = [5, 8], strides = [1, 1]} : vector<5x96xf32> to vector<5x8xf32>
    %84 = vector.extract_strided_slice %38 {offsets = [0, 80], sizes = [5, 8], strides = [1, 1]} : vector<5x96xf32> to vector<5x8xf32>
    "tpu.trace_start"() <{level = 10 : i32, message = "qc,kc->qk"}> : () -> ()
    %cst_44 = arith.constant dense<0.000000e+00> : vector<5x5xf32>
    %85 = tpu.matmul %82, %83, %cst_44 {dimension_numbers = #tpu.dot_dimension_numbers<[1], [1], [0], [0], [0, 0, 1, 0], [], []>} : vector<5x8xf32>, vector<5x8xf32>, vector<5x5xf32> -> vector<5x5xf32>
    "tpu.trace_stop"() : () -> ()
    %cst_45 = arith.constant dense<0xFF800000> : vector<5xf32>
    %86 = vector.multi_reduction <maximumf>, %85, %cst_45 [1] : vector<5x5xf32> to vector<5xf32>
    %87 = vector.shape_cast %86 : vector<5xf32> to vector<5x1xf32>
    %88 = vector.broadcast %87 : vector<5x1xf32> to vector<5x5xf32>
    %89 = arith.subf %85, %88 : vector<5x5xf32>
    %90 = math.exp %89 : vector<5x5xf32>
    %cst_46 = arith.constant dense<0.000000e+00> : vector<5xf32>
    %91 = vector.multi_reduction <add>, %90, %cst_46 [1] : vector<5x5xf32> to vector<5xf32>
    %92 = vector.shape_cast %91 : vector<5xf32> to vector<5x1xf32>
    %93 = tpu.reciprocal %92 {approx = true} : vector<5x1xf32> -> vector<5x1xf32>
    %94 = vector.broadcast %93 : vector<5x1xf32> to vector<5x5xf32>
    %95 = arith.mulf %90, %94 : vector<5x5xf32>
    %cst_47 = arith.constant dense<0.000000e+00> : vector<5x8xf32>
    %96 = tpu.matmul %95, %84, %cst_47 {dimension_numbers = #tpu.dot_dimension_numbers<[1], [0], [0], [1], [0, 0, 1, 1], [], []>} : vector<5x5xf32>, vector<5x8xf32>, vector<5x8xf32> -> vector<5x8xf32>
    %c0_48 = arith.constant 0 : index
    %c2 = arith.constant 2 : index
    %c0_49 = arith.constant 0 : index
    %c0_50 = arith.constant 0 : index
    %97 = vector.load %arg9[%c0_48, %c2, %c0_49, %c0_50] : memref<2x4x8x32xf32, #tpu.memory_space<vmem>>, vector<1x1x8x32xf32>
    %98 = vector.shape_cast %97 : vector<1x1x8x32xf32> to vector<8x32xf32>
    %cst_51 = arith.constant dense<0.000000e+00> : vector<5x32xf32>
    %99 = tpu.matmul %96, %98, %cst_51 {dimension_numbers = #tpu.dot_dimension_numbers<[1], [0], [0], [1], [0, 0, 1, 1], [], []>} : vector<5x8xf32>, vector<8x32xf32>, vector<5x32xf32> -> vector<5x32xf32>
    %100 = arith.addf %79, %99 : vector<5x32xf32>
    %101 = vector.extract_strided_slice %38 {offsets = [0, 24], sizes = [5, 8], strides = [1, 1]} : vector<5x96xf32> to vector<5x8xf32>
    %cst_52 = arith.constant 0.353553385 : f32
    %102 = vector.broadcast %cst_52 : f32 to vector<5x8xf32>
    %103 = arith.mulf %101, %102 : vector<5x8xf32>
    %104 = vector.extract_strided_slice %38 {offsets = [0, 56], sizes = [5, 8], strides = [1, 1]} : vector<5x96xf32> to vector<5x8xf32>
    %105 = vector.extract_strided_slice %38 {offsets = [0, 88], sizes = [5, 8], strides = [1, 1]} : vector<5x96xf32> to vector<5x8xf32>
    "tpu.trace_start"() <{level = 10 : i32, message = "qc,kc->qk"}> : () -> ()
    %cst_53 = arith.constant dense<0.000000e+00> : vector<5x5xf32>
    %106 = tpu.matmul %103, %104, %cst_53 {dimension_numbers = #tpu.dot_dimension_numbers<[1], [1], [0], [0], [0, 0, 1, 0], [], []>} : vector<5x8xf32>, vector<5x8xf32>, vector<5x5xf32> -> vector<5x5xf32>
    "tpu.trace_stop"() : () -> ()
    %cst_54 = arith.constant dense<0xFF800000> : vector<5xf32>
    %107 = vector.multi_reduction <maximumf>, %106, %cst_54 [1] : vector<5x5xf32> to vector<5xf32>
    %108 = vector.shape_cast %107 : vector<5xf32> to vector<5x1xf32>
    %109 = vector.broadcast %108 : vector<5x1xf32> to vector<5x5xf32>
    %110 = arith.subf %106, %109 : vector<5x5xf32>
    %111 = math.exp %110 : vector<5x5xf32>
    %cst_55 = arith.constant dense<0.000000e+00> : vector<5xf32>
    %112 = vector.multi_reduction <add>, %111, %cst_55 [1] : vector<5x5xf32> to vector<5xf32>
    %113 = vector.shape_cast %112 : vector<5xf32> to vector<5x1xf32>
    %114 = tpu.reciprocal %113 {approx = true} : vector<5x1xf32> -> vector<5x1xf32>
    %115 = vector.broadcast %114 : vector<5x1xf32> to vector<5x5xf32>
    %116 = arith.mulf %111, %115 : vector<5x5xf32>
    %cst_56 = arith.constant dense<0.000000e+00> : vector<5x8xf32>
    %117 = tpu.matmul %116, %105, %cst_56 {dimension_numbers = #tpu.dot_dimension_numbers<[1], [0], [0], [1], [0, 0, 1, 1], [], []>} : vector<5x5xf32>, vector<5x8xf32>, vector<5x8xf32> -> vector<5x8xf32>
    %c0_57 = arith.constant 0 : index
    %c3 = arith.constant 3 : index
    %c0_58 = arith.constant 0 : index
    %c0_59 = arith.constant 0 : index
    %118 = vector.load %arg9[%c0_57, %c3, %c0_58, %c0_59] : memref<2x4x8x32xf32, #tpu.memory_space<vmem>>, vector<1x1x8x32xf32>
    %119 = vector.shape_cast %118 : vector<1x1x8x32xf32> to vector<8x32xf32>
    %cst_60 = arith.constant dense<0.000000e+00> : vector<5x32xf32>
    %120 = tpu.matmul %117, %119, %cst_60 {dimension_numbers = #tpu.dot_dimension_numbers<[1], [0], [0], [1], [0, 0, 1, 1], [], []>} : vector<5x8xf32>, vector<8x32xf32>, vector<5x32xf32> -> vector<5x32xf32>
    %121 = arith.addf %100, %120 : vector<5x32xf32>
    %122 = arith.addf %5, %121 : vector<5x32xf32>
    %c0_61 = arith.constant 0 : index
    %c0_62 = arith.constant 0 : index
    %c0_63 = arith.constant 0 : index
    %123 = vector.load %arg10[%c0_61, %c0_62, %c0_63] : memref<2x1x32xf32, #tpu.memory_space<vmem>>, vector<1x1x32xf32>
    %124 = vector.shape_cast %123 : vector<1x1x32xf32> to vector<1x32xf32>
    %125 = vector.broadcast %124 : vector<1x32xf32> to vector<5x32xf32>
    %126 = arith.addf %122, %125 : vector<5x32xf32>
    %c0_64 = arith.constant 0 : index
    %c0_65 = arith.constant 0 : index
    %c0_66 = arith.constant 0 : index
    %127 = vector.load %arg11[%c0_64, %c0_65, %c0_66] : memref<2x1x32xf32, #tpu.memory_space<vmem>>, vector<1x1x32xf32>
    %128 = vector.shape_cast %127 : vector<1x1x32xf32> to vector<1x32xf32>
    %c0_67 = arith.constant 0 : index
    %c0_68 = arith.constant 0 : index
    %c0_69 = arith.constant 0 : index
    %129 = vector.load %arg12[%c0_67, %c0_68, %c0_69] : memref<2x1x32xf32, #tpu.memory_space<vmem>>, vector<1x1x32xf32>
    %130 = vector.shape_cast %129 : vector<1x1x32xf32> to vector<1x32xf32>
    %cst_70 = arith.constant dense<0.000000e+00> : vector<5xf32>
    %131 = vector.multi_reduction <add>, %126, %cst_70 [1] : vector<5x32xf32> to vector<5xf32>
    %132 = vector.shape_cast %131 : vector<5xf32> to vector<5x1xf32>
    %cst_71 = arith.constant 3.200000e+01 : f32
    %133 = vector.broadcast %cst_71 : f32 to vector<5x1xf32>
    %134 = arith.divf %132, %133 : vector<5x1xf32>
    %135 = vector.broadcast %134 : vector<5x1xf32> to vector<5x32xf32>
    %136 = arith.subf %126, %135 : vector<5x32xf32>
    %137 = arith.mulf %136, %136 : vector<5x32xf32>
    %cst_72 = arith.constant dense<0.000000e+00> : vector<5xf32>
    %138 = vector.multi_reduction <add>, %137, %cst_72 [1] : vector<5x32xf32> to vector<5xf32>
    %139 = vector.shape_cast %138 : vector<5xf32> to vector<5x1xf32>
    %cst_73 = arith.constant 3.200000e+01 : f32
    %140 = vector.broadcast %cst_73 : f32 to vector<5x1xf32>
    %141 = arith.divf %139, %140 : vector<5x1xf32>
    %142 = vector.broadcast %134 : vector<5x1xf32> to vector<5x32xf32>
    %143 = arith.subf %126, %142 : vector<5x32xf32>
    %cst_74 = arith.constant 9.99999997E-7 : f32
    %144 = vector.broadcast %cst_74 : f32 to vector<5x1xf32>
    %145 = arith.addf %141, %144 : vector<5x1xf32>
    %146 = math.rsqrt %145 : vector<5x1xf32>
    %147 = vector.broadcast %146 : vector<5x1xf32> to vector<5x32xf32>
    %148 = arith.mulf %143, %147 : vector<5x32xf32>
    %149 = vector.broadcast %128 : vector<1x32xf32> to vector<5x32xf32>
    %150 = arith.mulf %148, %149 : vector<5x32xf32>
    %151 = vector.broadcast %130 : vector<1x32xf32> to vector<5x32xf32>
    %152 = arith.addf %150, %151 : vector<5x32xf32>
    %c0_75 = arith.constant 0 : index
    %c0_76 = arith.constant 0 : index
    %c0_77 = arith.constant 0 : index
    %153 = vector.load %arg13[%c0_75, %c0_76, %c0_77] : memref<2x32x64xf32, #tpu.memory_space<vmem>>, vector<1x32x64xf32>
    %154 = vector.shape_cast %153 : vector<1x32x64xf32> to vector<32x64xf32>
    %cst_78 = arith.constant dense<0.000000e+00> : vector<5x64xf32>
    %155 = tpu.matmul %152, %154, %cst_78 {dimension_numbers = #tpu.dot_dimension_numbers<[1], [0], [0], [1], [0, 0, 1, 1], [], []>} : vector<5x32xf32>, vector<32x64xf32>, vector<5x64xf32> -> vector<5x64xf32>
    %c0_79 = arith.constant 0 : index
    %c0_80 = arith.constant 0 : index
    %c0_81 = arith.constant 0 : index
    %156 = vector.load %arg14[%c0_79, %c0_80, %c0_81] : memref<2x1x64xf32, #tpu.memory_space<vmem>>, vector<1x1x64xf32>
    %157 = vector.shape_cast %156 : vector<1x1x64xf32> to vector<1x64xf32>
    %158 = vector.broadcast %157 : vector<1x64xf32> to vector<5x64xf32>
    %159 = arith.addf %155, %158 : vector<5x64xf32>
    %cst_82 = arith.constant 5.000000e-01 : f32
    %160 = vector.broadcast %cst_82 : f32 to vector<5x64xf32>
    %161 = arith.mulf %160, %159 : vector<5x64xf32>
    %cst_83 = arith.constant 0.707106769 : f32
    %162 = vector.broadcast %cst_83 : f32 to vector<5x64xf32>
    %163 = arith.mulf %159, %162 : vector<5x64xf32>
    %164 = math.absf %163 : vector<5x64xf32>
    %cst_84 = arith.constant 0.327591091 : f32
    %165 = vector.broadcast %cst_84 : f32 to vector<5x64xf32>
    %166 = arith.mulf %165, %164 : vector<5x64xf32>
    %cst_85 = arith.constant 1.000000e+00 : f32
    %167 = vector.broadcast %cst_85 : f32 to vector<5x64xf32>
    %168 = arith.addf %167, %166 : vector<5x64xf32>
    %cst_86 = arith.constant 1.000000e+00 : f32
    %169 = vector.broadcast %cst_86 : f32 to vector<5x64xf32>
    %170 = arith.divf %169, %168 : vector<5x64xf32>
    %cst_87 = arith.constant 1.06140542 : f32
    %171 = vector.broadcast %cst_87 : f32 to vector<5x64xf32>
    %172 = arith.mulf %171, %170 : vector<5x64xf32>
    %cst_88 = arith.constant -1.45315206 : f32
    %173 = vector.broadcast %cst_88 : f32 to vector<5x64xf32>
    %174 = arith.addf %172, %173 : vector<5x64xf32>
    %175 = arith.mulf %174, %170 : vector<5x64xf32>
    %cst_89 = arith.constant 1.42141378 : f32
    %176 = vector.broadcast %cst_89 : f32 to vector<5x64xf32>
    %177 = arith.addf %175, %176 : vector<5x64xf32>
    %178 = arith.mulf %177, %170 : vector<5x64xf32>
    %cst_90 = arith.constant -0.284496725 : f32
    %179 = vector.broadcast %cst_90 : f32 to vector<5x64xf32>
    %180 = arith.addf %178, %179 : vector<5x64xf32>
    %181 = arith.mulf %180, %170 : vector<5x64xf32>
    %cst_91 = arith.constant 0.254829586 : f32
    %182 = vector.broadcast %cst_91 : f32 to vector<5x64xf32>
    %183 = arith.addf %181, %182 : vector<5x64xf32>
    %184 = arith.mulf %183, %170 : vector<5x64xf32>
    %cst_92 = arith.constant 0.000000e+00 : f32
    %185 = vector.broadcast %cst_92 : f32 to vector<5x64xf32>
    %186 = arith.subf %185, %164 : vector<5x64xf32>
    %187 = arith.mulf %186, %164 : vector<5x64xf32>
    %188 = math.exp %187 : vector<5x64xf32>
    %189 = arith.mulf %184, %188 : vector<5x64xf32>
    %cst_93 = arith.constant 1.000000e+00 : f32
    %190 = vector.broadcast %cst_93 : f32 to vector<5x64xf32>
    %191 = arith.subf %190, %189 : vector<5x64xf32>
    %cst_94 = arith.constant 0.000000e+00 : f32
    %192 = vector.broadcast %cst_94 : f32 to vector<5x64xf32>
    %193 = arith.cmpf oge, %163, %192 : vector<5x64xf32>
    %cst_95 = arith.constant 0.000000e+00 : f32
    %194 = vector.broadcast %cst_95 : f32 to vector<5x64xf32>
    %195 = arith.subf %194, %191 : vector<5x64xf32>
    %196 = arith.select %193, %191, %195 : vector<5x64xi1>, vector<5x64xf32>
    %cst_96 = arith.constant 1.000000e+00 : f32
    %197 = vector.broadcast %cst_96 : f32 to vector<5x64xf32>
    %198 = arith.addf %197, %196 : vector<5x64xf32>
    %199 = arith.mulf %161, %198 : vector<5x64xf32>
    %c0_97 = arith.constant 0 : index
    %c0_98 = arith.constant 0 : index
    %c0_99 = arith.constant 0 : index
    %200 = vector.load %arg15[%c0_97, %c0_98, %c0_99] : memref<2x64x32xf32, #tpu.memory_space<vmem>>, vector<1x64x32xf32>
    %201 = vector.shape_cast %200 : vector<1x64x32xf32> to vector<64x32xf32>
    %cst_100 = arith.constant dense<0.000000e+00> : vector<5x32xf32>
    %202 = tpu.matmul %199, %201, %cst_100 {dimension_numbers = #tpu.dot_dimension_numbers<[1], [0], [0], [1], [0, 0, 1, 1], [], []>} : vector<5x64xf32>, vector<64x32xf32>, vector<5x32xf32> -> vector<5x32xf32>
    %203 = arith.addf %126, %202 : vector<5x32xf32>
    %c0_101 = arith.constant 0 : index
    %c0_102 = arith.constant 0 : index
    %c0_103 = arith.constant 0 : index
    %204 = vector.load %arg16[%c0_101, %c0_102, %c0_103] : memref<2x1x32xf32, #tpu.memory_space<vmem>>, vector<1x1x32xf32>
    %205 = vector.shape_cast %204 : vector<1x1x32xf32> to vector<1x32xf32>
    %206 = vector.broadcast %205 : vector<1x32xf32> to vector<5x32xf32>
    %207 = arith.addf %203, %206 : vector<5x32xf32>
    %c1_104 = arith.constant 1 : index
    %c0_105 = arith.constant 0 : index
    %c0_106 = arith.constant 0 : index
    %208 = vector.load %arg5[%c1_104, %c0_105, %c0_106] : memref<2x1x32xf32, #tpu.memory_space<vmem>>, vector<1x1x32xf32>
    %209 = vector.shape_cast %208 : vector<1x1x32xf32> to vector<1x32xf32>
    %c1_107 = arith.constant 1 : index
    %c0_108 = arith.constant 0 : index
    %c0_109 = arith.constant 0 : index
    %210 = vector.load %arg6[%c1_107, %c0_108, %c0_109] : memref<2x1x32xf32, #tpu.memory_space<vmem>>, vector<1x1x32xf32>
    %211 = vector.shape_cast %210 : vector<1x1x32xf32> to vector<1x32xf32>
    %cst_110 = arith.constant dense<0.000000e+00> : vector<5xf32>
    %212 = vector.multi_reduction <add>, %207, %cst_110 [1] : vector<5x32xf32> to vector<5xf32>
    %213 = vector.shape_cast %212 : vector<5xf32> to vector<5x1xf32>
    %cst_111 = arith.constant 3.200000e+01 : f32
    %214 = vector.broadcast %cst_111 : f32 to vector<5x1xf32>
    %215 = arith.divf %213, %214 : vector<5x1xf32>
    %216 = vector.broadcast %215 : vector<5x1xf32> to vector<5x32xf32>
    %217 = arith.subf %207, %216 : vector<5x32xf32>
    %218 = arith.mulf %217, %217 : vector<5x32xf32>
    %cst_112 = arith.constant dense<0.000000e+00> : vector<5xf32>
    %219 = vector.multi_reduction <add>, %218, %cst_112 [1] : vector<5x32xf32> to vector<5xf32>
    %220 = vector.shape_cast %219 : vector<5xf32> to vector<5x1xf32>
    %cst_113 = arith.constant 3.200000e+01 : f32
    %221 = vector.broadcast %cst_113 : f32 to vector<5x1xf32>
    %222 = arith.divf %220, %221 : vector<5x1xf32>
    %223 = vector.broadcast %215 : vector<5x1xf32> to vector<5x32xf32>
    %224 = arith.subf %207, %223 : vector<5x32xf32>
    %cst_114 = arith.constant 9.99999997E-7 : f32
    %225 = vector.broadcast %cst_114 : f32 to vector<5x1xf32>
    %226 = arith.addf %222, %225 : vector<5x1xf32>
    %227 = math.rsqrt %226 : vector<5x1xf32>
    %228 = vector.broadcast %227 : vector<5x1xf32> to vector<5x32xf32>
    %229 = arith.mulf %224, %228 : vector<5x32xf32>
    %230 = vector.broadcast %209 : vector<1x32xf32> to vector<5x32xf32>
    %231 = arith.mulf %229, %230 : vector<5x32xf32>
    %232 = vector.broadcast %211 : vector<1x32xf32> to vector<5x32xf32>
    %233 = arith.addf %231, %232 : vector<5x32xf32>
    %c1_115 = arith.constant 1 : index
    %c0_116 = arith.constant 0 : index
    %c0_117 = arith.constant 0 : index
    %234 = vector.load %arg7[%c1_115, %c0_116, %c0_117] : memref<2x32x96xf32, #tpu.memory_space<vmem>>, vector<1x32x96xf32>
    %235 = vector.shape_cast %234 : vector<1x32x96xf32> to vector<32x96xf32>
    %cst_118 = arith.constant dense<0.000000e+00> : vector<5x96xf32>
    %236 = tpu.matmul %233, %235, %cst_118 {dimension_numbers = #tpu.dot_dimension_numbers<[1], [0], [0], [1], [0, 0, 1, 1], [], []>} : vector<5x32xf32>, vector<32x96xf32>, vector<5x96xf32> -> vector<5x96xf32>
    %c1_119 = arith.constant 1 : index
    %c0_120 = arith.constant 0 : index
    %c0_121 = arith.constant 0 : index
    %237 = vector.load %arg8[%c1_119, %c0_120, %c0_121] : memref<2x1x96xf32, #tpu.memory_space<vmem>>, vector<1x1x96xf32>
    %238 = vector.shape_cast %237 : vector<1x1x96xf32> to vector<1x96xf32>
    %239 = vector.broadcast %238 : vector<1x96xf32> to vector<5x96xf32>
    %240 = arith.addf %236, %239 : vector<5x96xf32>
    %241 = vector.extract_strided_slice %240 {offsets = [0, 0], sizes = [5, 8], strides = [1, 1]} : vector<5x96xf32> to vector<5x8xf32>
    %cst_122 = arith.constant 0.353553385 : f32
    %242 = vector.broadcast %cst_122 : f32 to vector<5x8xf32>
    %243 = arith.mulf %241, %242 : vector<5x8xf32>
    %244 = vector.extract_strided_slice %240 {offsets = [0, 32], sizes = [5, 8], strides = [1, 1]} : vector<5x96xf32> to vector<5x8xf32>
    %245 = vector.extract_strided_slice %240 {offsets = [0, 64], sizes = [5, 8], strides = [1, 1]} : vector<5x96xf32> to vector<5x8xf32>
    "tpu.trace_start"() <{level = 10 : i32, message = "qc,kc->qk"}> : () -> ()
    %cst_123 = arith.constant dense<0.000000e+00> : vector<5x5xf32>
    %246 = tpu.matmul %243, %244, %cst_123 {dimension_numbers = #tpu.dot_dimension_numbers<[1], [1], [0], [0], [0, 0, 1, 0], [], []>} : vector<5x8xf32>, vector<5x8xf32>, vector<5x5xf32> -> vector<5x5xf32>
    "tpu.trace_stop"() : () -> ()
    %cst_124 = arith.constant dense<0xFF800000> : vector<5xf32>
    %247 = vector.multi_reduction <maximumf>, %246, %cst_124 [1] : vector<5x5xf32> to vector<5xf32>
    %248 = vector.shape_cast %247 : vector<5xf32> to vector<5x1xf32>
    %249 = vector.broadcast %248 : vector<5x1xf32> to vector<5x5xf32>
    %250 = arith.subf %246, %249 : vector<5x5xf32>
    %251 = math.exp %250 : vector<5x5xf32>
    %cst_125 = arith.constant dense<0.000000e+00> : vector<5xf32>
    %252 = vector.multi_reduction <add>, %251, %cst_125 [1] : vector<5x5xf32> to vector<5xf32>
    %253 = vector.shape_cast %252 : vector<5xf32> to vector<5x1xf32>
    %254 = tpu.reciprocal %253 {approx = true} : vector<5x1xf32> -> vector<5x1xf32>
    %255 = vector.broadcast %254 : vector<5x1xf32> to vector<5x5xf32>
    %256 = arith.mulf %251, %255 : vector<5x5xf32>
    %cst_126 = arith.constant dense<0.000000e+00> : vector<5x8xf32>
    %257 = tpu.matmul %256, %245, %cst_126 {dimension_numbers = #tpu.dot_dimension_numbers<[1], [0], [0], [1], [0, 0, 1, 1], [], []>} : vector<5x5xf32>, vector<5x8xf32>, vector<5x8xf32> -> vector<5x8xf32>
    %c1_127 = arith.constant 1 : index
    %c0_128 = arith.constant 0 : index
    %c0_129 = arith.constant 0 : index
    %c0_130 = arith.constant 0 : index
    %258 = vector.load %arg9[%c1_127, %c0_128, %c0_129, %c0_130] : memref<2x4x8x32xf32, #tpu.memory_space<vmem>>, vector<1x1x8x32xf32>
    %259 = vector.shape_cast %258 : vector<1x1x8x32xf32> to vector<8x32xf32>
    %cst_131 = arith.constant dense<0.000000e+00> : vector<5x32xf32>
    %260 = tpu.matmul %257, %259, %cst_131 {dimension_numbers = #tpu.dot_dimension_numbers<[1], [0], [0], [1], [0, 0, 1, 1], [], []>} : vector<5x8xf32>, vector<8x32xf32>, vector<5x32xf32> -> vector<5x32xf32>
    %261 = vector.extract_strided_slice %240 {offsets = [0, 8], sizes = [5, 8], strides = [1, 1]} : vector<5x96xf32> to vector<5x8xf32>
    %cst_132 = arith.constant 0.353553385 : f32
    %262 = vector.broadcast %cst_132 : f32 to vector<5x8xf32>
    %263 = arith.mulf %261, %262 : vector<5x8xf32>
    %264 = vector.extract_strided_slice %240 {offsets = [0, 40], sizes = [5, 8], strides = [1, 1]} : vector<5x96xf32> to vector<5x8xf32>
    %265 = vector.extract_strided_slice %240 {offsets = [0, 72], sizes = [5, 8], strides = [1, 1]} : vector<5x96xf32> to vector<5x8xf32>
    "tpu.trace_start"() <{level = 10 : i32, message = "qc,kc->qk"}> : () -> ()
    %cst_133 = arith.constant dense<0.000000e+00> : vector<5x5xf32>
    %266 = tpu.matmul %263, %264, %cst_133 {dimension_numbers = #tpu.dot_dimension_numbers<[1], [1], [0], [0], [0, 0, 1, 0], [], []>} : vector<5x8xf32>, vector<5x8xf32>, vector<5x5xf32> -> vector<5x5xf32>
    "tpu.trace_stop"() : () -> ()
    %cst_134 = arith.constant dense<0xFF800000> : vector<5xf32>
    %267 = vector.multi_reduction <maximumf>, %266, %cst_134 [1] : vector<5x5xf32> to vector<5xf32>
    %268 = vector.shape_cast %267 : vector<5xf32> to vector<5x1xf32>
    %269 = vector.broadcast %268 : vector<5x1xf32> to vector<5x5xf32>
    %270 = arith.subf %266, %269 : vector<5x5xf32>
    %271 = math.exp %270 : vector<5x5xf32>
    %cst_135 = arith.constant dense<0.000000e+00> : vector<5xf32>
    %272 = vector.multi_reduction <add>, %271, %cst_135 [1] : vector<5x5xf32> to vector<5xf32>
    %273 = vector.shape_cast %272 : vector<5xf32> to vector<5x1xf32>
    %274 = tpu.reciprocal %273 {approx = true} : vector<5x1xf32> -> vector<5x1xf32>
    %275 = vector.broadcast %274 : vector<5x1xf32> to vector<5x5xf32>
    %276 = arith.mulf %271, %275 : vector<5x5xf32>
    %cst_136 = arith.constant dense<0.000000e+00> : vector<5x8xf32>
    %277 = tpu.matmul %276, %265, %cst_136 {dimension_numbers = #tpu.dot_dimension_numbers<[1], [0], [0], [1], [0, 0, 1, 1], [], []>} : vector<5x5xf32>, vector<5x8xf32>, vector<5x8xf32> -> vector<5x8xf32>
    %c1_137 = arith.constant 1 : index
    %c1_138 = arith.constant 1 : index
    %c0_139 = arith.constant 0 : index
    %c0_140 = arith.constant 0 : index
    %278 = vector.load %arg9[%c1_137, %c1_138, %c0_139, %c0_140] : memref<2x4x8x32xf32, #tpu.memory_space<vmem>>, vector<1x1x8x32xf32>
    %279 = vector.shape_cast %278 : vector<1x1x8x32xf32> to vector<8x32xf32>
    %cst_141 = arith.constant dense<0.000000e+00> : vector<5x32xf32>
    %280 = tpu.matmul %277, %279, %cst_141 {dimension_numbers = #tpu.dot_dimension_numbers<[1], [0], [0], [1], [0, 0, 1, 1], [], []>} : vector<5x8xf32>, vector<8x32xf32>, vector<5x32xf32> -> vector<5x32xf32>
    %281 = arith.addf %260, %280 : vector<5x32xf32>
    %282 = vector.extract_strided_slice %240 {offsets = [0, 16], sizes = [5, 8], strides = [1, 1]} : vector<5x96xf32> to vector<5x8xf32>
    %cst_142 = arith.constant 0.353553385 : f32
    %283 = vector.broadcast %cst_142 : f32 to vector<5x8xf32>
    %284 = arith.mulf %282, %283 : vector<5x8xf32>
    %285 = vector.extract_strided_slice %240 {offsets = [0, 48], sizes = [5, 8], strides = [1, 1]} : vector<5x96xf32> to vector<5x8xf32>
    %286 = vector.extract_strided_slice %240 {offsets = [0, 80], sizes = [5, 8], strides = [1, 1]} : vector<5x96xf32> to vector<5x8xf32>
    "tpu.trace_start"() <{level = 10 : i32, message = "qc,kc->qk"}> : () -> ()
    %cst_143 = arith.constant dense<0.000000e+00> : vector<5x5xf32>
    %287 = tpu.matmul %284, %285, %cst_143 {dimension_numbers = #tpu.dot_dimension_numbers<[1], [1], [0], [0], [0, 0, 1, 0], [], []>} : vector<5x8xf32>, vector<5x8xf32>, vector<5x5xf32> -> vector<5x5xf32>
    "tpu.trace_stop"() : () -> ()
    %cst_144 = arith.constant dense<0xFF800000> : vector<5xf32>
    %288 = vector.multi_reduction <maximumf>, %287, %cst_144 [1] : vector<5x5xf32> to vector<5xf32>
    %289 = vector.shape_cast %288 : vector<5xf32> to vector<5x1xf32>
    %290 = vector.broadcast %289 : vector<5x1xf32> to vector<5x5xf32>
    %291 = arith.subf %287, %290 : vector<5x5xf32>
    %292 = math.exp %291 : vector<5x5xf32>
    %cst_145 = arith.constant dense<0.000000e+00> : vector<5xf32>
    %293 = vector.multi_reduction <add>, %292, %cst_145 [1] : vector<5x5xf32> to vector<5xf32>
    %294 = vector.shape_cast %293 : vector<5xf32> to vector<5x1xf32>
    %295 = tpu.reciprocal %294 {approx = true} : vector<5x1xf32> -> vector<5x1xf32>
    %296 = vector.broadcast %295 : vector<5x1xf32> to vector<5x5xf32>
    %297 = arith.mulf %292, %296 : vector<5x5xf32>
    %cst_146 = arith.constant dense<0.000000e+00> : vector<5x8xf32>
    %298 = tpu.matmul %297, %286, %cst_146 {dimension_numbers = #tpu.dot_dimension_numbers<[1], [0], [0], [1], [0, 0, 1, 1], [], []>} : vector<5x5xf32>, vector<5x8xf32>, vector<5x8xf32> -> vector<5x8xf32>
    %c1_147 = arith.constant 1 : index
    %c2_148 = arith.constant 2 : index
    %c0_149 = arith.constant 0 : index
    %c0_150 = arith.constant 0 : index
    %299 = vector.load %arg9[%c1_147, %c2_148, %c0_149, %c0_150] : memref<2x4x8x32xf32, #tpu.memory_space<vmem>>, vector<1x1x8x32xf32>
    %300 = vector.shape_cast %299 : vector<1x1x8x32xf32> to vector<8x32xf32>
    %cst_151 = arith.constant dense<0.000000e+00> : vector<5x32xf32>
    %301 = tpu.matmul %298, %300, %cst_151 {dimension_numbers = #tpu.dot_dimension_numbers<[1], [0], [0], [1], [0, 0, 1, 1], [], []>} : vector<5x8xf32>, vector<8x32xf32>, vector<5x32xf32> -> vector<5x32xf32>
    %302 = arith.addf %281, %301 : vector<5x32xf32>
    %303 = vector.extract_strided_slice %240 {offsets = [0, 24], sizes = [5, 8], strides = [1, 1]} : vector<5x96xf32> to vector<5x8xf32>
    %cst_152 = arith.constant 0.353553385 : f32
    %304 = vector.broadcast %cst_152 : f32 to vector<5x8xf32>
    %305 = arith.mulf %303, %304 : vector<5x8xf32>
    %306 = vector.extract_strided_slice %240 {offsets = [0, 56], sizes = [5, 8], strides = [1, 1]} : vector<5x96xf32> to vector<5x8xf32>
    %307 = vector.extract_strided_slice %240 {offsets = [0, 88], sizes = [5, 8], strides = [1, 1]} : vector<5x96xf32> to vector<5x8xf32>
    "tpu.trace_start"() <{level = 10 : i32, message = "qc,kc->qk"}> : () -> ()
    %cst_153 = arith.constant dense<0.000000e+00> : vector<5x5xf32>
    %308 = tpu.matmul %305, %306, %cst_153 {dimension_numbers = #tpu.dot_dimension_numbers<[1], [1], [0], [0], [0, 0, 1, 0], [], []>} : vector<5x8xf32>, vector<5x8xf32>, vector<5x5xf32> -> vector<5x5xf32>
    "tpu.trace_stop"() : () -> ()
    %cst_154 = arith.constant dense<0xFF800000> : vector<5xf32>
    %309 = vector.multi_reduction <maximumf>, %308, %cst_154 [1] : vector<5x5xf32> to vector<5xf32>
    %310 = vector.shape_cast %309 : vector<5xf32> to vector<5x1xf32>
    %311 = vector.broadcast %310 : vector<5x1xf32> to vector<5x5xf32>
    %312 = arith.subf %308, %311 : vector<5x5xf32>
    %313 = math.exp %312 : vector<5x5xf32>
    %cst_155 = arith.constant dense<0.000000e+00> : vector<5xf32>
    %314 = vector.multi_reduction <add>, %313, %cst_155 [1] : vector<5x5xf32> to vector<5xf32>
    %315 = vector.shape_cast %314 : vector<5xf32> to vector<5x1xf32>
    %316 = tpu.reciprocal %315 {approx = true} : vector<5x1xf32> -> vector<5x1xf32>
    %317 = vector.broadcast %316 : vector<5x1xf32> to vector<5x5xf32>
    %318 = arith.mulf %313, %317 : vector<5x5xf32>
    %cst_156 = arith.constant dense<0.000000e+00> : vector<5x8xf32>
    %319 = tpu.matmul %318, %307, %cst_156 {dimension_numbers = #tpu.dot_dimension_numbers<[1], [0], [0], [1], [0, 0, 1, 1], [], []>} : vector<5x5xf32>, vector<5x8xf32>, vector<5x8xf32> -> vector<5x8xf32>
    %c1_157 = arith.constant 1 : index
    %c3_158 = arith.constant 3 : index
    %c0_159 = arith.constant 0 : index
    %c0_160 = arith.constant 0 : index
    %320 = vector.load %arg9[%c1_157, %c3_158, %c0_159, %c0_160] : memref<2x4x8x32xf32, #tpu.memory_space<vmem>>, vector<1x1x8x32xf32>
    %321 = vector.shape_cast %320 : vector<1x1x8x32xf32> to vector<8x32xf32>
    %cst_161 = arith.constant dense<0.000000e+00> : vector<5x32xf32>
    %322 = tpu.matmul %319, %321, %cst_161 {dimension_numbers = #tpu.dot_dimension_numbers<[1], [0], [0], [1], [0, 0, 1, 1], [], []>} : vector<5x8xf32>, vector<8x32xf32>, vector<5x32xf32> -> vector<5x32xf32>
    %323 = arith.addf %302, %322 : vector<5x32xf32>
    %324 = arith.addf %207, %323 : vector<5x32xf32>
    %c1_162 = arith.constant 1 : index
    %c0_163 = arith.constant 0 : index
    %c0_164 = arith.constant 0 : index
    %325 = vector.load %arg10[%c1_162, %c0_163, %c0_164] : memref<2x1x32xf32, #tpu.memory_space<vmem>>, vector<1x1x32xf32>
    %326 = vector.shape_cast %325 : vector<1x1x32xf32> to vector<1x32xf32>
    %327 = vector.broadcast %326 : vector<1x32xf32> to vector<5x32xf32>
    %328 = arith.addf %324, %327 : vector<5x32xf32>
    %c1_165 = arith.constant 1 : index
    %c0_166 = arith.constant 0 : index
    %c0_167 = arith.constant 0 : index
    %329 = vector.load %arg11[%c1_165, %c0_166, %c0_167] : memref<2x1x32xf32, #tpu.memory_space<vmem>>, vector<1x1x32xf32>
    %330 = vector.shape_cast %329 : vector<1x1x32xf32> to vector<1x32xf32>
    %c1_168 = arith.constant 1 : index
    %c0_169 = arith.constant 0 : index
    %c0_170 = arith.constant 0 : index
    %331 = vector.load %arg12[%c1_168, %c0_169, %c0_170] : memref<2x1x32xf32, #tpu.memory_space<vmem>>, vector<1x1x32xf32>
    %332 = vector.shape_cast %331 : vector<1x1x32xf32> to vector<1x32xf32>
    %cst_171 = arith.constant dense<0.000000e+00> : vector<5xf32>
    %333 = vector.multi_reduction <add>, %328, %cst_171 [1] : vector<5x32xf32> to vector<5xf32>
    %334 = vector.shape_cast %333 : vector<5xf32> to vector<5x1xf32>
    %cst_172 = arith.constant 3.200000e+01 : f32
    %335 = vector.broadcast %cst_172 : f32 to vector<5x1xf32>
    %336 = arith.divf %334, %335 : vector<5x1xf32>
    %337 = vector.broadcast %336 : vector<5x1xf32> to vector<5x32xf32>
    %338 = arith.subf %328, %337 : vector<5x32xf32>
    %339 = arith.mulf %338, %338 : vector<5x32xf32>
    %cst_173 = arith.constant dense<0.000000e+00> : vector<5xf32>
    %340 = vector.multi_reduction <add>, %339, %cst_173 [1] : vector<5x32xf32> to vector<5xf32>
    %341 = vector.shape_cast %340 : vector<5xf32> to vector<5x1xf32>
    %cst_174 = arith.constant 3.200000e+01 : f32
    %342 = vector.broadcast %cst_174 : f32 to vector<5x1xf32>
    %343 = arith.divf %341, %342 : vector<5x1xf32>
    %344 = vector.broadcast %336 : vector<5x1xf32> to vector<5x32xf32>
    %345 = arith.subf %328, %344 : vector<5x32xf32>
    %cst_175 = arith.constant 9.99999997E-7 : f32
    %346 = vector.broadcast %cst_175 : f32 to vector<5x1xf32>
    %347 = arith.addf %343, %346 : vector<5x1xf32>
    %348 = math.rsqrt %347 : vector<5x1xf32>
    %349 = vector.broadcast %348 : vector<5x1xf32> to vector<5x32xf32>
    %350 = arith.mulf %345, %349 : vector<5x32xf32>
    %351 = vector.broadcast %330 : vector<1x32xf32> to vector<5x32xf32>
    %352 = arith.mulf %350, %351 : vector<5x32xf32>
    %353 = vector.broadcast %332 : vector<1x32xf32> to vector<5x32xf32>
    %354 = arith.addf %352, %353 : vector<5x32xf32>
    %c1_176 = arith.constant 1 : index
    %c0_177 = arith.constant 0 : index
    %c0_178 = arith.constant 0 : index
    %355 = vector.load %arg13[%c1_176, %c0_177, %c0_178] : memref<2x32x64xf32, #tpu.memory_space<vmem>>, vector<1x32x64xf32>
    %356 = vector.shape_cast %355 : vector<1x32x64xf32> to vector<32x64xf32>
    %cst_179 = arith.constant dense<0.000000e+00> : vector<5x64xf32>
    %357 = tpu.matmul %354, %356, %cst_179 {dimension_numbers = #tpu.dot_dimension_numbers<[1], [0], [0], [1], [0, 0, 1, 1], [], []>} : vector<5x32xf32>, vector<32x64xf32>, vector<5x64xf32> -> vector<5x64xf32>
    %c1_180 = arith.constant 1 : index
    %c0_181 = arith.constant 0 : index
    %c0_182 = arith.constant 0 : index
    %358 = vector.load %arg14[%c1_180, %c0_181, %c0_182] : memref<2x1x64xf32, #tpu.memory_space<vmem>>, vector<1x1x64xf32>
    %359 = vector.shape_cast %358 : vector<1x1x64xf32> to vector<1x64xf32>
    %360 = vector.broadcast %359 : vector<1x64xf32> to vector<5x64xf32>
    %361 = arith.addf %357, %360 : vector<5x64xf32>
    %cst_183 = arith.constant 5.000000e-01 : f32
    %362 = vector.broadcast %cst_183 : f32 to vector<5x64xf32>
    %363 = arith.mulf %362, %361 : vector<5x64xf32>
    %cst_184 = arith.constant 0.707106769 : f32
    %364 = vector.broadcast %cst_184 : f32 to vector<5x64xf32>
    %365 = arith.mulf %361, %364 : vector<5x64xf32>
    %366 = math.absf %365 : vector<5x64xf32>
    %cst_185 = arith.constant 0.327591091 : f32
    %367 = vector.broadcast %cst_185 : f32 to vector<5x64xf32>
    %368 = arith.mulf %367, %366 : vector<5x64xf32>
    %cst_186 = arith.constant 1.000000e+00 : f32
    %369 = vector.broadcast %cst_186 : f32 to vector<5x64xf32>
    %370 = arith.addf %369, %368 : vector<5x64xf32>
    %cst_187 = arith.constant 1.000000e+00 : f32
    %371 = vector.broadcast %cst_187 : f32 to vector<5x64xf32>
    %372 = arith.divf %371, %370 : vector<5x64xf32>
    %cst_188 = arith.constant 1.06140542 : f32
    %373 = vector.broadcast %cst_188 : f32 to vector<5x64xf32>
    %374 = arith.mulf %373, %372 : vector<5x64xf32>
    %cst_189 = arith.constant -1.45315206 : f32
    %375 = vector.broadcast %cst_189 : f32 to vector<5x64xf32>
    %376 = arith.addf %374, %375 : vector<5x64xf32>
    %377 = arith.mulf %376, %372 : vector<5x64xf32>
    %cst_190 = arith.constant 1.42141378 : f32
    %378 = vector.broadcast %cst_190 : f32 to vector<5x64xf32>
    %379 = arith.addf %377, %378 : vector<5x64xf32>
    %380 = arith.mulf %379, %372 : vector<5x64xf32>
    %cst_191 = arith.constant -0.284496725 : f32
    %381 = vector.broadcast %cst_191 : f32 to vector<5x64xf32>
    %382 = arith.addf %380, %381 : vector<5x64xf32>
    %383 = arith.mulf %382, %372 : vector<5x64xf32>
    %cst_192 = arith.constant 0.254829586 : f32
    %384 = vector.broadcast %cst_192 : f32 to vector<5x64xf32>
    %385 = arith.addf %383, %384 : vector<5x64xf32>
    %386 = arith.mulf %385, %372 : vector<5x64xf32>
    %cst_193 = arith.constant 0.000000e+00 : f32
    %387 = vector.broadcast %cst_193 : f32 to vector<5x64xf32>
    %388 = arith.subf %387, %366 : vector<5x64xf32>
    %389 = arith.mulf %388, %366 : vector<5x64xf32>
    %390 = math.exp %389 : vector<5x64xf32>
    %391 = arith.mulf %386, %390 : vector<5x64xf32>
    %cst_194 = arith.constant 1.000000e+00 : f32
    %392 = vector.broadcast %cst_194 : f32 to vector<5x64xf32>
    %393 = arith.subf %392, %391 : vector<5x64xf32>
    %cst_195 = arith.constant 0.000000e+00 : f32
    %394 = vector.broadcast %cst_195 : f32 to vector<5x64xf32>
    %395 = arith.cmpf oge, %365, %394 : vector<5x64xf32>
    %cst_196 = arith.constant 0.000000e+00 : f32
    %396 = vector.broadcast %cst_196 : f32 to vector<5x64xf32>
    %397 = arith.subf %396, %393 : vector<5x64xf32>
    %398 = arith.select %395, %393, %397 : vector<5x64xi1>, vector<5x64xf32>
    %cst_197 = arith.constant 1.000000e+00 : f32
    %399 = vector.broadcast %cst_197 : f32 to vector<5x64xf32>
    %400 = arith.addf %399, %398 : vector<5x64xf32>
    %401 = arith.mulf %363, %400 : vector<5x64xf32>
    %c1_198 = arith.constant 1 : index
    %c0_199 = arith.constant 0 : index
    %c0_200 = arith.constant 0 : index
    %402 = vector.load %arg15[%c1_198, %c0_199, %c0_200] : memref<2x64x32xf32, #tpu.memory_space<vmem>>, vector<1x64x32xf32>
    %403 = vector.shape_cast %402 : vector<1x64x32xf32> to vector<64x32xf32>
    %cst_201 = arith.constant dense<0.000000e+00> : vector<5x32xf32>
    %404 = tpu.matmul %401, %403, %cst_201 {dimension_numbers = #tpu.dot_dimension_numbers<[1], [0], [0], [1], [0, 0, 1, 1], [], []>} : vector<5x64xf32>, vector<64x32xf32>, vector<5x32xf32> -> vector<5x32xf32>
    %405 = arith.addf %328, %404 : vector<5x32xf32>
    %c1_202 = arith.constant 1 : index
    %c0_203 = arith.constant 0 : index
    %c0_204 = arith.constant 0 : index
    %406 = vector.load %arg16[%c1_202, %c0_203, %c0_204] : memref<2x1x32xf32, #tpu.memory_space<vmem>>, vector<1x1x32xf32>
    %407 = vector.shape_cast %406 : vector<1x1x32xf32> to vector<1x32xf32>
    %408 = vector.broadcast %407 : vector<1x32xf32> to vector<5x32xf32>
    %409 = arith.addf %405, %408 : vector<5x32xf32>
    %410 = vector.extract_strided_slice %409 {offsets = [0, 0], sizes = [1, 32], strides = [1, 1]} : vector<5x32xf32> to vector<1x32xf32>
    %c0_205 = arith.constant 0 : index
    %c0_206 = arith.constant 0 : index
    %411 = vector.load %arg17[%c0_205, %c0_206] : memref<1x32xf32, #tpu.memory_space<vmem>>, vector<1x32xf32>
    %c0_207 = arith.constant 0 : index
    %c0_208 = arith.constant 0 : index
    %412 = vector.load %arg18[%c0_207, %c0_208] : memref<1x32xf32, #tpu.memory_space<vmem>>, vector<1x32xf32>
    %cst_209 = arith.constant dense<0.000000e+00> : vector<1xf32>
    %413 = vector.multi_reduction <add>, %410, %cst_209 [1] : vector<1x32xf32> to vector<1xf32>
    %414 = vector.shape_cast %413 : vector<1xf32> to vector<1x1xf32>
    %cst_210 = arith.constant 3.200000e+01 : f32
    %415 = vector.broadcast %cst_210 : f32 to vector<1x1xf32>
    %416 = arith.divf %414, %415 : vector<1x1xf32>
    %417 = vector.broadcast %416 : vector<1x1xf32> to vector<1x32xf32>
    %418 = arith.subf %410, %417 : vector<1x32xf32>
    %419 = arith.mulf %418, %418 : vector<1x32xf32>
    %cst_211 = arith.constant dense<0.000000e+00> : vector<1xf32>
    %420 = vector.multi_reduction <add>, %419, %cst_211 [1] : vector<1x32xf32> to vector<1xf32>
    %421 = vector.shape_cast %420 : vector<1xf32> to vector<1x1xf32>
    %cst_212 = arith.constant 3.200000e+01 : f32
    %422 = vector.broadcast %cst_212 : f32 to vector<1x1xf32>
    %423 = arith.divf %421, %422 : vector<1x1xf32>
    %424 = vector.broadcast %416 : vector<1x1xf32> to vector<1x32xf32>
    %425 = arith.subf %410, %424 : vector<1x32xf32>
    %cst_213 = arith.constant 9.99999997E-7 : f32
    %426 = vector.broadcast %cst_213 : f32 to vector<1x1xf32>
    %427 = arith.addf %423, %426 : vector<1x1xf32>
    %428 = math.rsqrt %427 : vector<1x1xf32>
    %429 = vector.broadcast %428 : vector<1x1xf32> to vector<1x32xf32>
    %430 = arith.mulf %425, %429 : vector<1x32xf32>
    %431 = arith.mulf %430, %411 : vector<1x32xf32>
    %432 = arith.addf %431, %412 : vector<1x32xf32>
    %c0_214 = arith.constant 0 : index
    %c0_215 = arith.constant 0 : index
    %c0_216 = arith.constant 0 : index
    %433 = vector.load %arg3[%c0_214, %c0_215, %c0_216] : memref<1x1x12xf32, #tpu.memory_space<vmem>>, vector<1x1x12xf32>
    %434 = vector.shape_cast %433 : vector<1x1x12xf32> to vector<1x12xf32>
    %c0_217 = arith.constant 0 : index
    %c0_218 = arith.constant 0 : index
    %435 = vector.load %arg21[%c0_217, %c0_218] : memref<32x15xf32, #tpu.memory_space<vmem>>, vector<32x15xf32>
    %cst_219 = arith.constant dense<0.000000e+00> : vector<1x15xf32>
    %436 = tpu.matmul %432, %435, %cst_219 {dimension_numbers = #tpu.dot_dimension_numbers<[1], [0], [0], [1], [0, 0, 1, 1], [], []>} : vector<1x32xf32>, vector<32x15xf32>, vector<1x15xf32> -> vector<1x15xf32>
    %c0_220 = arith.constant 0 : index
    %c0_221 = arith.constant 0 : index
    %437 = vector.load %arg22[%c0_220, %c0_221] : memref<12x15xf32, #tpu.memory_space<vmem>>, vector<12x15xf32>
    %cst_222 = arith.constant dense<0.000000e+00> : vector<1x15xf32>
    %438 = tpu.matmul %434, %437, %cst_222 {dimension_numbers = #tpu.dot_dimension_numbers<[1], [0], [0], [1], [0, 0, 1, 1], [], []>} : vector<1x12xf32>, vector<12x15xf32>, vector<1x15xf32> -> vector<1x15xf32>
    %439 = arith.addf %436, %438 : vector<1x15xf32>
    %c0_223 = arith.constant 0 : index
    %c0_224 = arith.constant 0 : index
    %440 = vector.load %arg23[%c0_223, %c0_224] : memref<1x15xf32, #tpu.memory_space<vmem>>, vector<1x15xf32>
    %441 = arith.addf %439, %440 : vector<1x15xf32>
    %c0_225 = arith.constant 0 : index
    %c0_226 = arith.constant 0 : index
    %c0_227 = arith.constant 0 : index
    %442 = vector.load %arg25[%c0_225, %c0_226, %c0_227] : memref<1x1x15xf32, #tpu.memory_space<vmem>>, vector<1x1x15xf32>
    %443 = vector.shape_cast %442 : vector<1x1x15xf32> to vector<1x15xf32>
    %444 = vector.shape_cast %441 : vector<1x15xf32> to vector<1x1x15xf32>
    tpu.vector_store %arg25[%c0_225, %c0_226, %c0_227], %444 {strides = array<i32>} : memref<1x1x15xf32, #tpu.memory_space<vmem>>, vector<1x1x15xf32>,
    %c0_228 = arith.constant 0 : index
    %c0_229 = arith.constant 0 : index
    %445 = vector.load %arg19[%c0_228, %c0_229] : memref<32x15xf32, #tpu.memory_space<vmem>>, vector<32x15xf32>
    %cst_230 = arith.constant dense<0.000000e+00> : vector<1x15xf32>
    %446 = tpu.matmul %432, %445, %cst_230 {dimension_numbers = #tpu.dot_dimension_numbers<[1], [0], [0], [1], [0, 0, 1, 1], [], []>} : vector<1x32xf32>, vector<32x15xf32>, vector<1x15xf32> -> vector<1x15xf32>
    %c0_231 = arith.constant 0 : index
    %c0_232 = arith.constant 0 : index
    %447 = vector.load %arg20[%c0_231, %c0_232] : memref<12x15xf32, #tpu.memory_space<vmem>>, vector<12x15xf32>
    %cst_233 = arith.constant dense<0.000000e+00> : vector<1x15xf32>
    %448 = tpu.matmul %434, %447, %cst_233 {dimension_numbers = #tpu.dot_dimension_numbers<[1], [0], [0], [1], [0, 0, 1, 1], [], []>} : vector<1x12xf32>, vector<12x15xf32>, vector<1x15xf32> -> vector<1x15xf32>
    %449 = arith.addf %446, %448 : vector<1x15xf32>
    %c0_234 = arith.constant 0 : index
    %c0_235 = arith.constant 0 : index
    %450 = vector.load %arg19[%c0_234, %c0_235] : memref<32x15xf32, #tpu.memory_space<vmem>>, vector<32x15xf32>
    %451 = arith.mulf %450, %450 : vector<32x15xf32>
    %cst_236 = arith.constant dense<0.000000e+00> : vector<15xf32>
    %452 = vector.multi_reduction <add>, %451, %cst_236 [0] : vector<32x15xf32> to vector<15xf32>
    %453 = vector.shape_cast %452 : vector<15xf32> to vector<1x15xf32>
    %c0_237 = arith.constant 0 : index
    %c0_238 = arith.constant 0 : index
    %454 = vector.load %arg20[%c0_237, %c0_238] : memref<12x15xf32, #tpu.memory_space<vmem>>, vector<12x15xf32>
    %455 = arith.mulf %454, %454 : vector<12x15xf32>
    %cst_239 = arith.constant dense<0.000000e+00> : vector<15xf32>
    %456 = vector.multi_reduction <add>, %455, %cst_239 [0] : vector<12x15xf32> to vector<15xf32>
    %457 = vector.shape_cast %456 : vector<15xf32> to vector<1x15xf32>
    %458 = arith.addf %453, %457 : vector<1x15xf32>
    %459 = arith.mulf %432, %432 : vector<1x32xf32>
    %cst_240 = arith.constant dense<0.000000e+00> : vector<1xf32>
    %460 = vector.multi_reduction <add>, %459, %cst_240 [1] : vector<1x32xf32> to vector<1xf32>
    %461 = vector.shape_cast %460 : vector<1xf32> to vector<1x1xf32>
    %462 = arith.mulf %434, %434 : vector<1x12xf32>
    %cst_241 = arith.constant dense<0.000000e+00> : vector<1xf32>
    %463 = vector.multi_reduction <add>, %462, %cst_241 [1] : vector<1x12xf32> to vector<1xf32>
    %464 = vector.shape_cast %463 : vector<1xf32> to vector<1x1xf32>
    %465 = arith.addf %461, %464 : vector<1x1xf32>
    %466 = math.sqrt %458 : vector<1x15xf32>
    %cst_242 = arith.constant 9.99999996E-13 : f32
    %467 = vector.broadcast %cst_242 : f32 to vector<1x15xf32>
    %468 = arith.maximumf %466, %467 : vector<1x15xf32>
    %cst_243 = arith.constant 1.000000e+00 : f32
    %469 = vector.broadcast %cst_243 : f32 to vector<1x15xf32>
    %470 = arith.divf %469, %468 : vector<1x15xf32>
    %471 = math.sqrt %465 : vector<1x1xf32>
    %cst_244 = arith.constant 9.99999996E-13 : f32
    %472 = vector.broadcast %cst_244 : f32 to vector<1x1xf32>
    %473 = arith.maximumf %471, %472 : vector<1x1xf32>
    %cst_245 = arith.constant 1.000000e+00 : f32
    %474 = vector.broadcast %cst_245 : f32 to vector<1x1xf32>
    %475 = arith.divf %474, %473 : vector<1x1xf32>
    %476 = arith.mulf %449, %470 : vector<1x15xf32>
    %477 = vector.broadcast %475 : vector<1x1xf32> to vector<1x15xf32>
    %478 = arith.mulf %476, %477 : vector<1x15xf32>
    %c0_246 = arith.constant 0 : index
    %c0_247 = arith.constant 0 : index
    %c0_248 = arith.constant 0 : index
    %479 = vector.load %arg24[%c0_246, %c0_247, %c0_248] : memref<1x1x15xf32, #tpu.memory_space<vmem>>, vector<1x1x15xf32>
    %480 = vector.shape_cast %479 : vector<1x1x15xf32> to vector<1x15xf32>
    %481 = vector.shape_cast %478 : vector<1x15xf32> to vector<1x1x15xf32>
    tpu.vector_store %arg24[%c0_246, %c0_247, %c0_248], %481 {strides = array<i32>} : memref<1x1x15xf32, #tpu.memory_space<vmem>>, vector<1x1x15xf32>,
    return
  }
  func.func @transform_0(%arg0: i32) -> (i32, i32, i32) {
    %c0_i32 = arith.constant 0 : i32
    %c0_i32_0 = arith.constant 0 : i32
    %c0_i32_1 = arith.constant 0 : i32
    return %arg0, %c0_i32, %c0_i32_0 : i32, i32, i32
  }
  func.func @transform_1(%arg0: i32) -> (i32, i32) {
    %c0_i32 = arith.constant 0 : i32
    %c0_i32_0 = arith.constant 0 : i32
    %c0_i32_1 = arith.constant 0 : i32
    return %c0_i32, %c0_i32_0 : i32, i32
  }
  func.func @transform_2(%arg0: i32) -> (i32, i32, i32) {
    %c0_i32 = arith.constant 0 : i32
    %c0_i32_0 = arith.constant 0 : i32
    %c0_i32_1 = arith.constant 0 : i32
    return %arg0, %c0_i32, %c0_i32_0 : i32, i32, i32
  }
  func.func @transform_3(%arg0: i32) -> (i32, i32) {
    %c0_i32 = arith.constant 0 : i32
    %c0_i32_0 = arith.constant 0 : i32
    %c0_i32_1 = arith.constant 0 : i32
    return %c0_i32, %c0_i32_0 : i32, i32
  }
  func.func @transform_4(%arg0: i32) -> (i32, i32, i32) {
    %c0_i32 = arith.constant 0 : i32
    %c0_i32_0 = arith.constant 0 : i32
    %c0_i32_1 = arith.constant 0 : i32
    %c0_i32_2 = arith.constant 0 : i32
    return %c0_i32, %c0_i32_0, %c0_i32_1 : i32, i32, i32
  }
  func.func @transform_5(%arg0: i32) -> (i32, i32, i32) {
    %c0_i32 = arith.constant 0 : i32
    %c0_i32_0 = arith.constant 0 : i32
    %c0_i32_1 = arith.constant 0 : i32
    %c0_i32_2 = arith.constant 0 : i32
    return %c0_i32, %c0_i32_0, %c0_i32_1 : i32, i32, i32
  }
  func.func @transform_6(%arg0: i32) -> (i32, i32, i32) {
    %c0_i32 = arith.constant 0 : i32
    %c0_i32_0 = arith.constant 0 : i32
    %c0_i32_1 = arith.constant 0 : i32
    %c0_i32_2 = arith.constant 0 : i32
    return %c0_i32, %c0_i32_0, %c0_i32_1 : i32, i32, i32
  }
  func.func @transform_7(%arg0: i32) -> (i32, i32, i32) {
    %c0_i32 = arith.constant 0 : i32
    %c0_i32_0 = arith.constant 0 : i32
    %c0_i32_1 = arith.constant 0 : i32
    %c0_i32_2 = arith.constant 0 : i32
    return %c0_i32, %c0_i32_0, %c0_i32_1 : i32, i32, i32
  }
  func.func @transform_8(%arg0: i32) -> (i32, i32, i32, i32) {
    %c0_i32 = arith.constant 0 : i32
    %c0_i32_0 = arith.constant 0 : i32
    %c0_i32_1 = arith.constant 0 : i32
    %c0_i32_2 = arith.constant 0 : i32
    %c0_i32_3 = arith.constant 0 : i32
    return %c0_i32, %c0_i32_0, %c0_i32_1, %c0_i32_2 : i32, i32, i32, i32
  }
  func.func @transform_9(%arg0: i32) -> (i32, i32, i32) {
    %c0_i32 = arith.constant 0 : i32
    %c0_i32_0 = arith.constant 0 : i32
    %c0_i32_1 = arith.constant 0 : i32
    %c0_i32_2 = arith.constant 0 : i32
    return %c0_i32, %c0_i32_0, %c0_i32_1 : i32, i32, i32
  }
  func.func @transform_10(%arg0: i32) -> (i32, i32, i32) {
    %c0_i32 = arith.constant 0 : i32
    %c0_i32_0 = arith.constant 0 : i32
    %c0_i32_1 = arith.constant 0 : i32
    %c0_i32_2 = arith.constant 0 : i32
    return %c0_i32, %c0_i32_0, %c0_i32_1 : i32, i32, i32
  }
  func.func @transform_11(%arg0: i32) -> (i32, i32, i32) {
    %c0_i32 = arith.constant 0 : i32
    %c0_i32_0 = arith.constant 0 : i32
    %c0_i32_1 = arith.constant 0 : i32
    %c0_i32_2 = arith.constant 0 : i32
    return %c0_i32, %c0_i32_0, %c0_i32_1 : i32, i32, i32
  }
  func.func @transform_12(%arg0: i32) -> (i32, i32, i32) {
    %c0_i32 = arith.constant 0 : i32
    %c0_i32_0 = arith.constant 0 : i32
    %c0_i32_1 = arith.constant 0 : i32
    %c0_i32_2 = arith.constant 0 : i32
    return %c0_i32, %c0_i32_0, %c0_i32_1 : i32, i32, i32
  }
  func.func @transform_13(%arg0: i32) -> (i32, i32, i32) {
    %c0_i32 = arith.constant 0 : i32
    %c0_i32_0 = arith.constant 0 : i32
    %c0_i32_1 = arith.constant 0 : i32
    %c0_i32_2 = arith.constant 0 : i32
    return %c0_i32, %c0_i32_0, %c0_i32_1 : i32, i32, i32
  }
  func.func @transform_14(%arg0: i32) -> (i32, i32, i32) {
    %c0_i32 = arith.constant 0 : i32
    %c0_i32_0 = arith.constant 0 : i32
    %c0_i32_1 = arith.constant 0 : i32
    %c0_i32_2 = arith.constant 0 : i32
    return %c0_i32, %c0_i32_0, %c0_i32_1 : i32, i32, i32
  }
  func.func @transform_15(%arg0: i32) -> (i32, i32, i32) {
    %c0_i32 = arith.constant 0 : i32
    %c0_i32_0 = arith.constant 0 : i32
    %c0_i32_1 = arith.constant 0 : i32
    %c0_i32_2 = arith.constant 0 : i32
    return %c0_i32, %c0_i32_0, %c0_i32_1 : i32, i32, i32
  }
  func.func @transform_16(%arg0: i32) -> (i32, i32) {
    %c0_i32 = arith.constant 0 : i32
    %c0_i32_0 = arith.constant 0 : i32
    %c0_i32_1 = arith.constant 0 : i32
    return %c0_i32, %c0_i32_0 : i32, i32
  }
  func.func @transform_17(%arg0: i32) -> (i32, i32) {
    %c0_i32 = arith.constant 0 : i32
    %c0_i32_0 = arith.constant 0 : i32
    %c0_i32_1 = arith.constant 0 : i32
    return %c0_i32, %c0_i32_0 : i32, i32
  }
  func.func @transform_18(%arg0: i32) -> (i32, i32) {
    %c0_i32 = arith.constant 0 : i32
    %c0_i32_0 = arith.constant 0 : i32
    %c0_i32_1 = arith.constant 0 : i32
    return %c0_i32, %c0_i32_0 : i32, i32
  }
  func.func @transform_19(%arg0: i32) -> (i32, i32) {
    %c0_i32 = arith.constant 0 : i32
    %c0_i32_0 = arith.constant 0 : i32
    %c0_i32_1 = arith.constant 0 : i32
    return %c0_i32, %c0_i32_0 : i32, i32
  }
  func.func @transform_20(%arg0: i32) -> (i32, i32) {
    %c0_i32 = arith.constant 0 : i32
    %c0_i32_0 = arith.constant 0 : i32
    %c0_i32_1 = arith.constant 0 : i32
    return %c0_i32, %c0_i32_0 : i32, i32
  }
  func.func @transform_21(%arg0: i32) -> (i32, i32) {
    %c0_i32 = arith.constant 0 : i32
    %c0_i32_0 = arith.constant 0 : i32
    %c0_i32_1 = arith.constant 0 : i32
    return %c0_i32, %c0_i32_0 : i32, i32
  }
  func.func @transform_22(%arg0: i32) -> (i32, i32) {
    %c0_i32 = arith.constant 0 : i32
    %c0_i32_0 = arith.constant 0 : i32
    %c0_i32_1 = arith.constant 0 : i32
    return %c0_i32, %c0_i32_0 : i32, i32
  }
  func.func @transform_23(%arg0: i32) -> (i32, i32, i32) {
    %c0_i32 = arith.constant 0 : i32
    %c0_i32_0 = arith.constant 0 : i32
    %c0_i32_1 = arith.constant 0 : i32
    return %arg0, %c0_i32, %c0_i32_0 : i32, i32, i32
  }
  func.func @transform_24(%arg0: i32) -> (i32, i32, i32) {
    %c0_i32 = arith.constant 0 : i32
    %c0_i32_0 = arith.constant 0 : i32
    %c0_i32_1 = arith.constant 0 : i32
    return %arg0, %c0_i32, %c0_i32_0 : i32, i32, i32
  }
}

</mosaic_0001>

<llo_original>
// kernel: custom_vit_forward.1
$region0: #{custom_vit_forward.1}
  #allocation0 [shape = 'u32[]', space=smem, size = 0x4, offset = 0x4, fixed_abs, tag = 'smem constant byte address 0x4 - core index']
  #allocation1 [shape = 'u32[144,128]{1,0:T(1,128)}', space=vmem, size = 0x12000, scoped, tag = 'internal scratch']
  %s0 = inlined_call_operand.vmem [shape: f32[2,5,1536], index: 0, kind: input, shape index: {}]
  %s1 = inlined_call_operand.vmem [shape: f32[5,32], index: 1, kind: input, shape index: {}]
  %s2 = inlined_call_operand.vmem [shape: f32[2,1,12], index: 2, kind: input, shape index: {}]
  %s3 = inlined_call_operand.vmem [shape: f32[1536,32], index: 3, kind: input, shape index: {}]
  %s4 = inlined_call_operand.vmem [shape: f32[2,1,32], index: 4, kind: input, shape index: {}]
  %s5 = inlined_call_operand.vmem [shape: f32[2,1,32], index: 5, kind: input, shape index: {}]
  %s6 = inlined_call_operand.vmem [shape: f32[2,32,96], index: 6, kind: input, shape index: {}]
  %s7 = inlined_call_operand.vmem [shape: f32[2,1,96], index: 7, kind: input, shape index: {}]
  %s8 = inlined_call_operand.vmem [shape: f32[2,4,8,32], index: 8, kind: input, shape index: {}]
  %s9 = inlined_call_operand.vmem [shape: f32[2,1,32], index: 9, kind: input, shape index: {}]
  %s10 = inlined_call_operand.vmem [shape: f32[2,1,32], index: 10, kind: input, shape index: {}]
  %s11 = inlined_call_operand.vmem [shape: f32[2,1,32], index: 11, kind: input, shape index: {}]
  %s12 = inlined_call_operand.vmem [shape: f32[2,32,64], index: 12, kind: input, shape index: {}]
  %s13 = inlined_call_operand.vmem [shape: f32[2,1,64], index: 13, kind: input, shape index: {}]
  %s14 = inlined_call_operand.vmem [shape: f32[2,64,32], index: 14, kind: input, shape index: {}]
  %s15 = inlined_call_operand.vmem [shape: f32[2,1,32], index: 15, kind: input, shape index: {}]
  %s16 = inlined_call_operand.vmem [shape: f32[1,32], index: 16, kind: input, shape index: {}]
  %s17 = inlined_call_operand.vmem [shape: f32[1,32], index: 17, kind: input, shape index: {}]
  %s18 = inlined_call_operand.vmem [shape: f32[32,15], index: 18, kind: input, shape index: {}]
  %s19 = inlined_call_operand.vmem [shape: f32[12,15], index: 19, kind: input, shape index: {}]
  %s20 = inlined_call_operand.vmem [shape: f32[32,15], index: 20, kind: input, shape index: {}]
  %s21 = inlined_call_operand.vmem [shape: f32[12,15], index: 21, kind: input, shape index: {}]
  %s22 = inlined_call_operand.vmem [shape: f32[1,15], index: 22, kind: input, shape index: {}]
  %s23 = inlined_call_operand.hbm [shape: f32[2,1,15], index: 23, kind: output, shape index: {0}]
  %s24 = inlined_call_operand.hbm [shape: f32[2,1,15], index: 24, kind: output, shape index: {1}]
  %25 = xla_tuple %s23, %s24
  %s26 = sld [smem:[#allocation0]]
  $region133: #{custom_vit_forward.1} parent=0
    _
  %s28 = ssub.s32 1, %s26
  %s29 = scalar_select 0, %s28, %s26
  $region1: #{custom_vit_forward.1} parent=0
    #allocation2 [shape = 'u8[1024]{0}', space=vmem, size = 0x400, scoped, tag = 'output window, operand 0']
    #allocation3 [shape = 's32[2]{0}', space=sflag, size = 0x8, scoped, tag = 'scoped memory for custom_vit_forward.1']
    #allocation4 [shape = 'u8[1024]{0}', space=vmem, size = 0x400, scoped, tag = 'output window, operand 1']
    #allocation5 [shape = 's32[2]{0}', space=sflag, size = 0x8, scoped, tag = 'scoped memory for custom_vit_forward.1']
    %30 = vsyncpa [#allocation3], 0
    %s31 = scalar_lea.sflag [#allocation3], 1
    %32 = vsyncpa %s31, 0
    %33 = vsyncpa [#allocation5], 0
    %s34 = scalar_lea.sflag [#allocation5], 1
    %35 = vsyncpa %s34, 0
    loop: start=0, step=1, limit=4
    $region2: #{custom_vit_forward.1} parent=1 // loop_pre_header
      _
    $region3: #{custom_vit_forward.1} parent=1 // loop_header
      %s37 = sphi 0, %s41
      %p38 = scmp.ge.s32.totalorder %s37, 4
      %s47 = sphi 0, %s49
      %s50 = sphi 0, %s47
      %s51 = sphi 0, %s50
      %s67 = sphi 0, %s51
      %s71 = sphi 0, %s71
      %s73 = sphi 0, %s71
      %s74 = sphi 0, %s73
      %s88 = sphi 0, %s74
      %s94 = sphi 0, %s96
      %s97 = sphi 0, %s94
      %s98 = sphi 0, %s97
      %s114 = sphi 0, %s98
      %s118 = sphi 0, %s118
      %s120 = sphi 0, %s118
      %s121 = sphi 0, %s120
      %s135 = sphi 0, %s121
      %s139 = sphi 0, %s139
      %s141 = sphi 0, %s139
      %s142 = sphi 0, %s141
      %s156 = sphi 0, %s142
      %s160 = sphi 0, %s160
      %s162 = sphi 0, %s160
      %s163 = sphi 0, %s162
      %s177 = sphi 0, %s163
      %s181 = sphi 0, %s181
      %s183 = sphi 0, %s181
      %s184 = sphi 0, %s183
      %s198 = sphi 0, %s184
      %s202 = sphi 0, %s202
      %s204 = sphi 0, %s202
      %s205 = sphi 0, %s204
      %s219 = sphi 0, %s205
      %s223 = sphi 0, %s223
      %s225 = sphi 0, %s223
      %s226 = sphi 0, %s225
      %s240 = sphi 0, %s226
      %s244 = sphi 0, %s244
      %s246 = sphi 0, %s244
      %s247 = sphi 0, %s246
      %s261 = sphi 0, %s247
      %s265 = sphi 0, %s265
      %s267 = sphi 0, %s265
      %s268 = sphi 0, %s267
      %s282 = sphi 0, %s268
      %s286 = sphi 0, %s286
      %s288 = sphi 0, %s286
      %s289 = sphi 0, %s288
      %s303 = sphi 0, %s289
      %s307 = sphi 0, %s307
      %s309 = sphi 0, %s307
      %s310 = sphi 0, %s309
      %s324 = sphi 0, %s310
      %s328 = sphi 0, %s328
      %s330 = sphi 0, %s328
      %s331 = sphi 0, %s330
      %s345 = sphi 0, %s331
      %s349 = sphi 0, %s349
      %s351 = sphi 0, %s349
      %s352 = sphi 0, %s351
      %s366 = sphi 0, %s352
      %s370 = sphi 0, %s370
      %s372 = sphi 0, %s370
      %s373 = sphi 0, %s372
      %s387 = sphi 0, %s373
      %s391 = sphi 0, %s391
      %s393 = sphi 0, %s391
      %s394 = sphi 0, %s393
      %s408 = sphi 0, %s394
      %s412 = sphi 0, %s412
      %s414 = sphi 0, %s412
      %s415 = sphi 0, %s414
      %s429 = sphi 0, %s415
      %s433 = sphi 0, %s433
      %s435 = sphi 0, %s433
      %s436 = sphi 0, %s435
      %s450 = sphi 0, %s436
      %s454 = sphi 0, %s454
      %s456 = sphi 0, %s454
      %s457 = sphi 0, %s456
      %s471 = sphi 0, %s457
      %s475 = sphi 0, %s475
      %s477 = sphi 0, %s475
      %s478 = sphi 0, %s477
      %s492 = sphi 0, %s478
      %s496 = sphi 0, %s496
      %s498 = sphi 0, %s496
      %s499 = sphi 0, %s498
      %s513 = sphi 0, %s499
      %s517 = sphi 0, %s517
      %s519 = sphi 0, %s517
      %s520 = sphi 0, %s519
      %s534 = sphi 0, %s520
      %s540 = sphi 0, %s542
      %s543 = sphi 0, %s540
      %s544 = sphi 0, %s543
      %s560 = sphi 0, %s544
      %s566 = sphi 0, %s568
      %s569 = sphi 0, %s566
      %s570 = sphi 0, %s569
      %s586 = sphi 0, %s570
    $region4: #{custom_vit_forward.1} parent=1 // loop_header_branch
      %40 = sbr.rel (%p38) target = $region8
    $region5: #{custom_vit_forward.1} parent=1 // loop_body
      %s42 = ssub.s32 %s37, 1
      %s43 = ssub.s32 %s37, 2
      %s44 = sadd.s32 %s37, 1
      %s45 = ssub.s32 %s37, %s44
      %p46 = scmp.eq.s32.totalorder %s45, 0
      %s48 = sadd.s32 %s47, 1
      %s49 = scalar_select %p46, %s47, %s48
      %p52 = pneg %p46
      %p53 = scmp.eq.s32.totalorder %s37, 1
      %p54 = por %p52, %p53
      %p55 = scmp.ne.s32.totalorder %s47, %s50
      %p56 = scmp.eq.s32.totalorder %s37, 0
      %p57 = por %p55, %p56
      %p58 = scmp.ne.s32.totalorder %s47, %s50
      %p59 = scmp.eq.s32.totalorder %s42, 1
      %p60 = por %p58, %p59
      %p61 = scmp.ne.s32.totalorder %s50, %s51
      %p62 = scmp.eq.s32.totalorder %s42, 0
      %p63 = por %p61, %p62
      %p64 = scmp.ne.s32.totalorder %s50, %s51
      %p65 = scmp.eq.s32.totalorder %s43, 1
      %p66 = por %p64, %p65
      %p68 = scmp.ne.s32.totalorder %s51, %s67
      %p69 = scmp.eq.s32.totalorder %s43, 0
      %p70 = por %p68, %p69
      %s72 = sadd.s32 %s71, 1
      %p75 = scmp.eq.s32.totalorder %s37, 1
      %p76 = scmp.ne.s32.totalorder %s71, %s73
      %p77 = scmp.eq.s32.totalorder %s37, 0
      %p78 = por %p76, %p77
      %p79 = scmp.ne.s32.totalorder %s71, %s73
      %p80 = scmp.eq.s32.totalorder %s42, 1
      %p81 = por %p79, %p80
      %p82 = scmp.ne.s32.totalorder %s73, %s74
      %p83 = scmp.eq.s32.totalorder %s42, 0
      %p84 = por %p82, %p83
      %p85 = scmp.ne.s32.totalorder %s73, %s74
      %p86 = scmp.eq.s32.totalorder %s43, 1
      %p87 = por %p85, %p86
      %p89 = scmp.ne.s32.totalorder %s74, %s88
      %p90 = scmp.eq.s32.totalorder %s43, 0
      %p91 = por %p89, %p90
      %s92 = ssub.s32 %s37, %s44
      %p93 = scmp.eq.s32.totalorder %s92, 0
      %s95 = sadd.s32 %s94, 1
      %s96 = scalar_select %p93, %s94, %s95
      %p99 = pneg %p93
      %p100 = scmp.eq.s32.totalorder %s37, 1
      %p101 = por %p99, %p100
      %p102 = scmp.ne.s32.totalorder %s94, %s97
      %p103 = scmp.eq.s32.totalorder %s37, 0
      %p104 = por %p102, %p103
      %p105 = scmp.ne.s32.totalorder %s94, %s97
      %p106 = scmp.eq.s32.totalorder %s42, 1
      %p107 = por %p105, %p106
      %p108 = scmp.ne.s32.totalorder %s97, %s98
      %p109 = scmp.eq.s32.totalorder %s42, 0
      %p110 = por %p108, %p109
      %p111 = scmp.ne.s32.totalorder %s97, %s98
      %p112 = scmp.eq.s32.totalorder %s43, 1
      %p113 = por %p111, %p112
      %p115 = scmp.ne.s32.totalorder %s98, %s114
      %p116 = scmp.eq.s32.totalorder %s43, 0
      %p117 = por %p115, %p116
      %s119 = sadd.s32 %s118, 1
      %p122 = scmp.eq.s32.totalorder %s37, 1
      %p123 = scmp.ne.s32.totalorder %s118, %s120
      %p124 = scmp.eq.s32.totalorder %s37, 0
      %p125 = por %p123, %p124
      %p126 = scmp.ne.s32.totalorder %s118, %s120
      %p127 = scmp.eq.s32.totalorder %s42, 1
      %p128 = por %p126, %p127
      %p129 = scmp.ne.s32.totalorder %s120, %s121
      %p130 = scmp.eq.s32.totalorder %s42, 0
      %p131 = por %p129, %p130
      %p132 = scmp.ne.s32.totalorder %s120, %s121
      %p133 = scmp.eq.s32.totalorder %s43, 1
      %p134 = por %p132, %p133
      %p136 = scmp.ne.s32.totalorder %s121, %s135
      %p137 = scmp.eq.s32.totalorder %s43, 0
      %p138 = por %p136, %p137
      %s140 = sadd.s32 %s139, 1
      %p143 = scmp.eq.s32.totalorder %s37, 1
      %p144 = scmp.ne.s32.totalorder %s139, %s141
      %p145 = scmp.eq.s32.totalorder %s37, 0
      %p146 = por %p144, %p145
      %p147 = scmp.ne.s32.totalorder %s139, %s141
      %p148 = scmp.eq.s32.totalorder %s42, 1
      %p149 = por %p147, %p148
      %p150 = scmp.ne.s32.totalorder %s141, %s142
      %p151 = scmp.eq.s32.totalorder %s42, 0
      %p152 = por %p150, %p151
      %p153 = scmp.ne.s32.totalorder %s141, %s142
      %p154 = scmp.eq.s32.totalorder %s43, 1
      %p155 = por %p153, %p154
      %p157 = scmp.ne.s32.totalorder %s142, %s156
      %p158 = scmp.eq.s32.totalorder %s43, 0
      %p159 = por %p157, %p158
      %s161 = sadd.s32 %s160, 1
      %p164 = scmp.eq.s32.totalorder %s37, 1
      %p165 = scmp.ne.s32.totalorder %s160, %s162
      %p166 = scmp.eq.s32.totalorder %s37, 0
      %p167 = por %p165, %p166
      %p168 = scmp.ne.s32.totalorder %s160, %s162
      %p169 = scmp.eq.s32.totalorder %s42, 1
      %p170 = por %p168, %p169
      %p171 = scmp.ne.s32.totalorder %s162, %s163
      %p172 = scmp.eq.s32.totalorder %s42, 0
      %p173 = por %p171, %p172
      %p174 = scmp.ne.s32.totalorder %s162, %s163
      %p175 = scmp.eq.s32.totalorder %s43, 1
      %p176 = por %p174, %p175
      %p178 = scmp.ne.s32.totalorder %s163, %s177
      %p179 = scmp.eq.s32.totalorder %s43, 0
      %p180 = por %p178, %p179
      %s182 = sadd.s32 %s181, 1
      %p185 = scmp.eq.s32.totalorder %s37, 1
      %p186 = scmp.ne.s32.totalorder %s181, %s183
      %p187 = scmp.eq.s32.totalorder %s37, 0
      %p188 = por %p186, %p187
      %p189 = scmp.ne.s32.totalorder %s181, %s183
      %p190 = scmp.eq.s32.totalorder %s42, 1
      %p191 = por %p189, %p190
      %p192 = scmp.ne.s32.totalorder %s183, %s184
      %p193 = scmp.eq.s32.totalorder %s42, 0
      %p194 = por %p192, %p193
      %p195 = scmp.ne.s32.totalorder %s183, %s184
      %p196 = scmp.eq.s32.totalorder %s43, 1
      %p197 = por %p195, %p196
      %p199 = scmp.ne.s32.totalorder %s184, %s198
      %p200 = scmp.eq.s32.totalorder %s43, 0
      %p201 = por %p199, %p200
      %s203 = sadd.s32 %s202, 1
      %p206 = scmp.eq.s32.totalorder %s37, 1
      %p207 = scmp.ne.s32.totalorder %s202, %s204
      %p208 = scmp.eq.s32.totalorder %s37, 0
      %p209 = por %p207, %p208
      %p210 = scmp.ne.s32.totalorder %s202, %s204
      %p211 = scmp.eq.s32.totalorder %s42, 1
      %p212 = por %p210, %p211
      %p213 = scmp.ne.s32.totalorder %s204, %s205
      %p214 = scmp.eq.s32.totalorder %s42, 0
      %p215 = por %p213, %p214
      %p216 = scmp.ne.s32.totalorder %s204, %s205
      %p217 = scmp.eq.s32.totalorder %s43, 1
      %p218 = por %p216, %p217
      %p220 = scmp.ne.s32.totalorder %s205, %s219
      %p221 = scmp.eq.s32.totalorder %s43, 0
      %p222 = por %p220, %p221
      %s224 = sadd.s32 %s223, 1
      %p227 = scmp.eq.s32.totalorder %s37, 1
      %p228 = scmp.ne.s32.totalorder %s223, %s225
      %p229 = scmp.eq.s32.totalorder %s37, 0
      %p230 = por %p228, %p229
      %p231 = scmp.ne.s32.totalorder %s223, %s225
      %p232 = scmp.eq.s32.totalorder %s42, 1
      %p233 = por %p231, %p232
      %p234 = scmp.ne.s32.totalorder %s225, %s226
      %p235 = scmp.eq.s32.totalorder %s42, 0
      %p236 = por %p234, %p235
      %p237 = scmp.ne.s32.totalorder %s225, %s226
      %p238 = scmp.eq.s32.totalorder %s43, 1
      %p239 = por %p237, %p238
      %p241 = scmp.ne.s32.totalorder %s226, %s240
      %p242 = scmp.eq.s32.totalorder %s43, 0
      %p243 = por %p241, %p242
      %s245 = sadd.s32 %s244, 1
      %p248 = scmp.eq.s32.totalorder %s37, 1
      %p249 = scmp.ne.s32.totalorder %s244, %s246
      %p250 = scmp.eq.s32.totalorder %s37, 0
      %p251 = por %p249, %p250
      %p252 = scmp.ne.s32.totalorder %s244, %s246
      %p253 = scmp.eq.s32.totalorder %s42, 1
      %p254 = por %p252, %p253
      %p255 = scmp.ne.s32.totalorder %s246, %s247
      %p256 = scmp.eq.s32.totalorder %s42, 0
      %p257 = por %p255, %p256
      %p258 = scmp.ne.s32.totalorder %s246, %s247
      %p259 = scmp.eq.s32.totalorder %s43, 1
      %p260 = por %p258, %p259
      %p262 = scmp.ne.s32.totalorder %s247, %s261
      %p263 = scmp.eq.s32.totalorder %s43, 0
      %p264 = por %p262, %p263
      %s266 = sadd.s32 %s265, 1
      %p269 = scmp.eq.s32.totalorder %s37, 1
      %p270 = scmp.ne.s32.totalorder %s265, %s267
      %p271 = scmp.eq.s32.totalorder %s37, 0
      %p272 = por %p270, %p271
      %p273 = scmp.ne.s32.totalorder %s265, %s267
      %p274 = scmp.eq.s32.totalorder %s42, 1
      %p275 = por %p273, %p274
      %p276 = scmp.ne.s32.totalorder %s267, %s268
      %p277 = scmp.eq.s32.totalorder %s42, 0
      %p278 = por %p276, %p277
      %p279 = scmp.ne.s32.totalorder %s267, %s268
      %p280 = scmp.eq.s32.totalorder %s43, 1
      %p281 = por %p279, %p280
      %p283 = scmp.ne.s32.totalorder %s268, %s282
      %p284 = scmp.eq.s32.totalorder %s43, 0
      %p285 = por %p283, %p284
      %s287 = sadd.s32 %s286, 1
      %p290 = scmp.eq.s32.totalorder %s37, 1
      %p291 = scmp.ne.s32.totalorder %s286, %s288
      %p292 = scmp.eq.s32.totalorder %s37, 0
      %p293 = por %p291, %p292
      %p294 = scmp.ne.s32.totalorder %s286, %s288
      %p295 = scmp.eq.s32.totalorder %s42, 1
      %p296 = por %p294, %p295
      %p297 = scmp.ne.s32.totalorder %s288, %s289
      %p298 = scmp.eq.s32.totalorder %s42, 0
      %p299 = por %p297, %p298
      %p300 = scmp.ne.s32.totalorder %s288, %s289
      %p301 = scmp.eq.s32.totalorder %s43, 1
      %p302 = por %p300, %p301
      %p304 = scmp.ne.s32.totalorder %s289, %s303
      %p305 = scmp.eq.s32.totalorder %s43, 0
      %p306 = por %p304, %p305
      %s308 = sadd.s32 %s307, 1
      %p311 = scmp.eq.s32.totalorder %s37, 1
      %p312 = scmp.ne.s32.totalorder %s307, %s309
      %p313 = scmp.eq.s32.totalorder %s37, 0
      %p314 = por %p312, %p313
      %p315 = scmp.ne.s32.totalorder %s307, %s309
      %p316 = scmp.eq.s32.totalorder %s42, 1
      %p317 = por %p315, %p316
      %p318 = scmp.ne.s32.totalorder %s309, %s310
      %p319 = scmp.eq.s32.totalorder %s42, 0
      %p320 = por %p318, %p319
      %p321 = scmp.ne.s32.totalorder %s309, %s310
      %p322 = scmp.eq.s32.totalorder %s43, 1
      %p323 = por %p321, %p322
      %p325 = scmp.ne.s32.totalorder %s310, %s324
      %p326 = scmp.eq.s32.totalorder %s43, 0
      %p327 = por %p325, %p326
      %s329 = sadd.s32 %s328, 1
      %p332 = scmp.eq.s32.totalorder %s37, 1
      %p333 = scmp.ne.s32.totalorder %s328, %s330
      %p334 = scmp.eq.s32.totalorder %s37, 0
      %p335 = por %p333, %p334
      %p336 = scmp.ne.s32.totalorder %s328, %s330
      %p337 = scmp.eq.s32.totalorder %s42, 1
      %p338 = por %p336, %p337
      %p339 = scmp.ne.s32.totalorder %s330, %s331
      %p340 = scmp.eq.s32.totalorder %s42, 0
      %p341 = por %p339, %p340
      %p342 = scmp.ne.s32.totalorder %s330, %s331
      %p343 = scmp.eq.s32.totalorder %s43, 1
      %p344 = por %p342, %p343
      %p346 = scmp.ne.s32.totalorder %s331, %s345
      %p347 = scmp.eq.s32.totalorder %s43, 0
      %p348 = por %p346, %p347
      %s350 = sadd.s32 %s349, 1
      %p353 = scmp.eq.s32.totalorder %s37, 1
      %p354 = scmp.ne.s32.totalorder %s349, %s351
      %p355 = scmp.eq.s32.totalorder %s37, 0
      %p356 = por %p354, %p355
      %p357 = scmp.ne.s32.totalorder %s349, %s351
      %p358 = scmp.eq.s32.totalorder %s42, 1
      %p359 = por %p357, %p358
      %p360 = scmp.ne.s32.totalorder %s351, %s352
      %p361 = scmp.eq.s32.totalorder %s42, 0
      %p362 = por %p360, %p361
      %p363 = scmp.ne.s32.totalorder %s351, %s352
      %p364 = scmp.eq.s32.totalorder %s43, 1
      %p365 = por %p363, %p364
      %p367 = scmp.ne.s32.totalorder %s352, %s366
      %p368 = scmp.eq.s32.totalorder %s43, 0
      %p369 = por %p367, %p368
      %s371 = sadd.s32 %s370, 1
      %p374 = scmp.eq.s32.totalorder %s37, 1
      %p375 = scmp.ne.s32.totalorder %s370, %s372
      %p376 = scmp.eq.s32.totalorder %s37, 0
      %p377 = por %p375, %p376
      %p378 = scmp.ne.s32.totalorder %s370, %s372
      %p379 = scmp.eq.s32.totalorder %s42, 1
      %p380 = por %p378, %p379
      %p381 = scmp.ne.s32.totalorder %s372, %s373
      %p382 = scmp.eq.s32.totalorder %s42, 0
      %p383 = por %p381, %p382
      %p384 = scmp.ne.s32.totalorder %s372, %s373
      %p385 = scmp.eq.s32.totalorder %s43, 1
      %p386 = por %p384, %p385
      %p388 = scmp.ne.s32.totalorder %s373, %s387
      %p389 = scmp.eq.s32.totalorder %s43, 0
      %p390 = por %p388, %p389
      %s392 = sadd.s32 %s391, 1
      %p395 = scmp.eq.s32.totalorder %s37, 1
      %p396 = scmp.ne.s32.totalorder %s391, %s393
      %p397 = scmp.eq.s32.totalorder %s37, 0
      %p398 = por %p396, %p397
      %p399 = scmp.ne.s32.totalorder %s391, %s393
      %p400 = scmp.eq.s32.totalorder %s42, 1
      %p401 = por %p399, %p400
      %p402 = scmp.ne.s32.totalorder %s393, %s394
      %p403 = scmp.eq.s32.totalorder %s42, 0
      %p404 = por %p402, %p403
      %p405 = scmp.ne.s32.totalorder %s393, %s394
      %p406 = scmp.eq.s32.totalorder %s43, 1
      %p407 = por %p405, %p406
      %p409 = scmp.ne.s32.totalorder %s394, %s408
      %p410 = scmp.eq.s32.totalorder %s43, 0
      %p411 = por %p409, %p410
      %s413 = sadd.s32 %s412, 1
      %p416 = scmp.eq.s32.totalorder %s37, 1
      %p417 = scmp.ne.s32.totalorder %s412, %s414
      %p418 = scmp.eq.s32.totalorder %s37, 0
      %p419 = por %p417, %p418
      %p420 = scmp.ne.s32.totalorder %s412, %s414
      %p421 = scmp.eq.s32.totalorder %s42, 1
      %p422 = por %p420, %p421
      %p423 = scmp.ne.s32.totalorder %s414, %s415
      %p424 = scmp.eq.s32.totalorder %s42, 0
      %p425 = por %p423, %p424
      %p426 = scmp.ne.s32.totalorder %s414, %s415
      %p427 = scmp.eq.s32.totalorder %s43, 1
      %p428 = por %p426, %p427
      %p430 = scmp.ne.s32.totalorder %s415, %s429
      %p431 = scmp.eq.s32.totalorder %s43, 0
      %p432 = por %p430, %p431
      %s434 = sadd.s32 %s433, 1
      %p437 = scmp.eq.s32.totalorder %s37, 1
      %p438 = scmp.ne.s32.totalorder %s433, %s435
      %p439 = scmp.eq.s32.totalorder %s37, 0
      %p440 = por %p438, %p439
      %p441 = scmp.ne.s32.totalorder %s433, %s435
      %p442 = scmp.eq.s32.totalorder %s42, 1
      %p443 = por %p441, %p442
      %p444 = scmp.ne.s32.totalorder %s435, %s436
      %p445 = scmp.eq.s32.totalorder %s42, 0
      %p446 = por %p444, %p445
      %p447 = scmp.ne.s32.totalorder %s435, %s436
      %p448 = scmp.eq.s32.totalorder %s43, 1
      %p449 = por %p447, %p448
      %p451 = scmp.ne.s32.totalorder %s436, %s450
      %p452 = scmp.eq.s32.totalorder %s43, 0
      %p453 = por %p451, %p452
      %s455 = sadd.s32 %s454, 1
      %p458 = scmp.eq.s32.totalorder %s37, 1
      %p459 = scmp.ne.s32.totalorder %s454, %s456
      %p460 = scmp.eq.s32.totalorder %s37, 0
      %p461 = por %p459, %p460
      %p462 = scmp.ne.s32.totalorder %s454, %s456
      %p463 = scmp.eq.s32.totalorder %s42, 1
      %p464 = por %p462, %p463
      %p465 = scmp.ne.s32.totalorder %s456, %s457
      %p466 = scmp.eq.s32.totalorder %s42, 0
      %p467 = por %p465, %p466
      %p468 = scmp.ne.s32.totalorder %s456, %s457
      %p469 = scmp.eq.s32.totalorder %s43, 1
      %p470 = por %p468, %p469
      %p472 = scmp.ne.s32.totalorder %s457, %s471
      %p473 = scmp.eq.s32.totalorder %s43, 0
      %p474 = por %p472, %p473
      %s476 = sadd.s32 %s475, 1
      %p479 = scmp.eq.s32.totalorder %s37, 1
      %p480 = scmp.ne.s32.totalorder %s475, %s477
      %p481 = scmp.eq.s32.totalorder %s37, 0
      %p482 = por %p480, %p481
      %p483 = scmp.ne.s32.totalorder %s475, %s477
      %p484 = scmp.eq.s32.totalorder %s42, 1
      %p485 = por %p483, %p484
      %p486 = scmp.ne.s32.totalorder %s477, %s478
      %p487 = scmp.eq.s32.totalorder %s42, 0
      %p488 = por %p486, %p487
      %p489 = scmp.ne.s32.totalorder %s477, %s478
      %p490 = scmp.eq.s32.totalorder %s43, 1
      %p491 = por %p489, %p490
      %p493 = scmp.ne.s32.totalorder %s478, %s492
      %p494 = scmp.eq.s32.totalorder %s43, 0
      %p495 = por %p493, %p494
      %s497 = sadd.s32 %s496, 1
      %p500 = scmp.eq.s32.totalorder %s37, 1
      %p501 = scmp.ne.s32.totalorder %s496, %s498
      %p502 = scmp.eq.s32.totalorder %s37, 0
      %p503 = por %p501, %p502
      %p504 = scmp.ne.s32.totalorder %s496, %s498
      %p505 = scmp.eq.s32.totalorder %s42, 1
      %p506 = por %p504, %p505
      %p507 = scmp.ne.s32.totalorder %s498, %s499
      %p508 = scmp.eq.s32.totalorder %s42, 0
      %p509 = por %p507, %p508
      %p510 = scmp.ne.s32.totalorder %s498, %s499
      %p511 = scmp.eq.s32.totalorder %s43, 1
      %p512 = por %p510, %p511
      %p514 = scmp.ne.s32.totalorder %s499, %s513
      %p515 = scmp.eq.s32.totalorder %s43, 0
      %p516 = por %p514, %p515
      %s518 = sadd.s32 %s517, 1
      %p521 = scmp.eq.s32.totalorder %s37, 1
      %p522 = scmp.ne.s32.totalorder %s517, %s519
      %p523 = scmp.eq.s32.totalorder %s37, 0
      %p524 = por %p522, %p523
      %p525 = scmp.ne.s32.totalorder %s517, %s519
      %p526 = scmp.eq.s32.totalorder %s42, 1
      %p527 = por %p525, %p526
      %p528 = scmp.ne.s32.totalorder %s519, %s520
      %p529 = scmp.eq.s32.totalorder %s42, 0
      %p530 = por %p528, %p529
      %p531 = scmp.ne.s32.totalorder %s519, %s520
      %p532 = scmp.eq.s32.totalorder %s43, 1
      %p533 = por %p531, %p532
      %p535 = scmp.ne.s32.totalorder %s520, %s534
      %p536 = scmp.eq.s32.totalorder %s43, 0
      %p537 = por %p535, %p536
      %s538 = ssub.s32 %s37, %s44
      %p539 = scmp.eq.s32.totalorder %s538, 0
      %s541 = sadd.s32 %s540, 1
      %s542 = scalar_select %p539, %s540, %s541
      %p545 = pneg %p539
      %p546 = scmp.eq.s32.totalorder %s37, 1
      %p547 = por %p545, %p546
      %p548 = scmp.ne.s32.totalorder %s540, %s543
      %p549 = scmp.eq.s32.totalorder %s37, 0
      %p550 = por %p548, %p549
      %p551 = scmp.ne.s32.totalorder %s540, %s543
      %p552 = scmp.eq.s32.totalorder %s42, 1
      %p553 = por %p551, %p552
      %p554 = scmp.ne.s32.totalorder %s543, %s544
      %p555 = scmp.eq.s32.totalorder %s42, 0
      %p556 = por %p554, %p555
      %p557 = scmp.ne.s32.totalorder %s543, %s544
      %p558 = scmp.eq.s32.totalorder %s43, 1
      %p559 = por %p557, %p558
      %p561 = scmp.ne.s32.totalorder %s544, %s560
      %p562 = scmp.eq.s32.totalorder %s43, 0
      %p563 = por %p561, %p562
      %s564 = ssub.s32 %s37, %s44
      %p565 = scmp.eq.s32.totalorder %s564, 0
      %s567 = sadd.s32 %s566, 1
      %s568 = scalar_select %p565, %s566, %s567
      %p571 = pneg %p565
      %p572 = scmp.eq.s32.totalorder %s37, 1
      %p573 = por %p571, %p572
      %p574 = scmp.ne.s32.totalorder %s566, %s569
      %p575 = scmp.eq.s32.totalorder %s37, 0
      %p576 = por %p574, %p575
      %p577 = scmp.ne.s32.totalorder %s566, %s569
      %p578 = scmp.eq.s32.totalorder %s42, 1
      %p579 = por %p577, %p578
      %p580 = scmp.ne.s32.totalorder %s569, %s570
      %p581 = scmp.eq.s32.totalorder %s42, 0
      %p582 = por %p580, %p581
      %p583 = scmp.ne.s32.totalorder %s569, %s570
      %p584 = scmp.eq.s32.totalorder %s43, 1
      %p585 = por %p583, %p584
      %p587 = scmp.ne.s32.totalorder %s570, %s586
      %p588 = scmp.eq.s32.totalorder %s43, 0
      %p589 = por %p587, %p588
      %p590 = scmp.le.s32.totalorder 1, %s37
      %p591 = scmp.lt.s32.totalorder %s37, 3
      %p592 = pnand %p590, %p591
      %p593 = pneg %p592
      // Predicated region
      $region9: #{custom_vit_forward.1} parent=5 // pred_check
        _
      $region10: #{custom_vit_forward.1} parent=5 // pred_check_branch
        %595 = sbr.rel (%p592) target = $region12
      $region11: #{custom_vit_forward.1} parent=5 // pred_region
        %s596 = ssub.s32 %s37, 1
        // Predicated region
        $region13: #{custom_vit_forward.1} parent=11 // pred_check
          %p597 = pneg %p84
        $region14: #{custom_vit_forward.1} parent=11 // pred_check_branch
          %599 = sbr.rel (%p597) target = $region16
        $region15: #{custom_vit_forward.1} parent=11 // pred_region
          _
        $region16: #{custom_vit_forward.1} parent=11 // pred_fallthru
          _
        // Predicated region
        $region17: #{custom_vit_forward.1} parent=11 // pred_check
          %p600 = pneg %p131
        $region18: #{custom_vit_forward.1} parent=11 // pred_check_branch
          %602 = sbr.rel (%p600) target = $region20
        $region19: #{custom_vit_forward.1} parent=11 // pred_region
          _
        $region20: #{custom_vit_forward.1} parent=11 // pred_fallthru
          _
        // Predicated region
        $region21: #{custom_vit_forward.1} parent=11 // pred_check
          %p603 = pneg %p152
        $region22: #{custom_vit_forward.1} parent=11 // pred_check_branch
          %605 = sbr.rel (%p603) target = $region24
        $region23: #{custom_vit_forward.1} parent=11 // pred_region
          _
        $region24: #{custom_vit_forward.1} parent=11 // pred_fallthru
          _
        // Predicated region
        $region25: #{custom_vit_forward.1} parent=11 // pred_check
          %p606 = pneg %p173
        $region26: #{custom_vit_forward.1} parent=11 // pred_check_branch
          %608 = sbr.rel (%p606) target = $region28
        $region27: #{custom_vit_forward.1} parent=11 // pred_region
          _
        $region28: #{custom_vit_forward.1} parent=11 // pred_fallthru
          _
        // Predicated region
        $region29: #{custom_vit_forward.1} parent=11 // pred_check
          %p609 = pneg %p194
        $region30: #{custom_vit_forward.1} parent=11 // pred_check_branch
          %611 = sbr.rel (%p609) target = $region32
        $region31: #{custom_vit_forward.1} parent=11 // pred_region
          _
        $region32: #{custom_vit_forward.1} parent=11 // pred_fallthru
          _
        // Predicated region
        $region33: #{custom_vit_forward.1} parent=11 // pred_check
          %p612 = pneg %p215
        $region34: #{custom_vit_forward.1} parent=11 // pred_check_branch
          %614 = sbr.rel (%p612) target = $region36
        $region35: #{custom_vit_forward.1} parent=11 // pred_region
          _
        $region36: #{custom_vit_forward.1} parent=11 // pred_fallthru
          _
        // Predicated region
        $region37: #{custom_vit_forward.1} parent=11 // pred_check
          %p615 = pneg %p236
        $region38: #{custom_vit_forward.1} parent=11 // pred_check_branch
          %617 = sbr.rel (%p615) target = $region40
        $region39: #{custom_vit_forward.1} parent=11 // pred_region
          _
        $region40: #{custom_vit_forward.1} parent=11 // pred_fallthru
          _
        // Predicated region
        $region41: #{custom_vit_forward.1} parent=11 // pred_check
          %p618 = pneg %p257
        $region42: #{custom_vit_forward.1} parent=11 // pred_check_branch
          %620 = sbr.rel (%p618) target = $region44
        $region43: #{custom_vit_forward.1} parent=11 // pred_region
          _
        $region44: #{custom_vit_forward.1} parent=11 // pred_fallthru
          _
        // Predicated region
        $region45: #{custom_vit_forward.1} parent=11 // pred_check
          %p621 = pneg %p278
        $region46: #{custom_vit_forward.1} parent=11 // pred_check_branch
          %623 = sbr.rel (%p621) target = $region48
        $region47: #{custom_vit_forward.1} parent=11 // pred_region
          _
        $region48: #{custom_vit_forward.1} parent=11 // pred_fallthru
          _
        // Predicated region
        $region49: #{custom_vit_forward.1} parent=11 // pred_check
          %p624 = pneg %p299
        $region50: #{custom_vit_forward.1} parent=11 // pred_check_branch
          %626 = sbr.rel (%p624) target = $region52
        $region51: #{custom_vit_forward.1} parent=11 // pred_region
          _
        $region52: #{custom_vit_forward.1} parent=11 // pred_fallthru
          _
        // Predicated region
        $region53: #{custom_vit_forward.1} parent=11 // pred_check
          %p627 = pneg %p320
        $region54: #{custom_vit_forward.1} parent=11 // pred_check_branch
          %629 = sbr.rel (%p627) target = $region56
        $region55: #{custom_vit_forward.1} parent=11 // pred_region
          _
        $region56: #{custom_vit_forward.1} parent=11 // pred_fallthru
          _
        // Predicated region
        $region57: #{custom_vit_forward.1} parent=11 // pred_check
          %p630 = pneg %p341
        $region58: #{custom_vit_forward.1} parent=11 // pred_check_branch
          %632 = sbr.rel (%p630) target = $region60
        $region59: #{custom_vit_forward.1} parent=11 // pred_region
          _
        $region60: #{custom_vit_forward.1} parent=11 // pred_fallthru
          _
        // Predicated region
        $region61: #{custom_vit_forward.1} parent=11 // pred_check
          %p633 = pneg %p362
        $region62: #{custom_vit_forward.1} parent=11 // pred_check_branch
          %635 = sbr.rel (%p633) target = $region64
        $region63: #{custom_vit_forward.1} parent=11 // pred_region
          _
        $region64: #{custom_vit_forward.1} parent=11 // pred_fallthru
          _
        // Predicated region
        $region65: #{custom_vit_forward.1} parent=11 // pred_check
          %p636 = pneg %p383
        $region66: #{custom_vit_forward.1} parent=11 // pred_check_branch
          %638 = sbr.rel (%p636) target = $region68
        $region67: #{custom_vit_forward.1} parent=11 // pred_region
          _
        $region68: #{custom_vit_forward.1} parent=11 // pred_fallthru
          _
        // Predicated region
        $region69: #{custom_vit_forward.1} parent=11 // pred_check
          %p639 = pneg %p404
        $region70: #{custom_vit_forward.1} parent=11 // pred_check_branch
          %641 = sbr.rel (%p639) target = $region72
        $region71: #{custom_vit_forward.1} parent=11 // pred_region
          _
        $region72: #{custom_vit_forward.1} parent=11 // pred_fallthru
          _
        // Predicated region
        $region73: #{custom_vit_forward.1} parent=11 // pred_check
          %p642 = pneg %p425
        $region74: #{custom_vit_forward.1} parent=11 // pred_check_branch
          %644 = sbr.rel (%p642) target = $region76
        $region75: #{custom_vit_forward.1} parent=11 // pred_region
          _
        $region76: #{custom_vit_forward.1} parent=11 // pred_fallthru
          _
        // Predicated region
        $region77: #{custom_vit_forward.1} parent=11 // pred_check
          %p645 = pneg %p446
        $region78: #{custom_vit_forward.1} parent=11 // pred_check_branch
          %647 = sbr.rel (%p645) target = $region80
        $region79: #{custom_vit_forward.1} parent=11 // pred_region
          _
        $region80: #{custom_vit_forward.1} parent=11 // pred_fallthru
          _
        // Predicated region
        $region81: #{custom_vit_forward.1} parent=11 // pred_check
          %p648 = pneg %p467
        $region82: #{custom_vit_forward.1} parent=11 // pred_check_branch
          %650 = sbr.rel (%p648) target = $region84
        $region83: #{custom_vit_forward.1} parent=11 // pred_region
          _
        $region84: #{custom_vit_forward.1} parent=11 // pred_fallthru
          _
        // Predicated region
        $region85: #{custom_vit_forward.1} parent=11 // pred_check
          %p651 = pneg %p488
        $region86: #{custom_vit_forward.1} parent=11 // pred_check_branch
          %653 = sbr.rel (%p651) target = $region88
        $region87: #{custom_vit_forward.1} parent=11 // pred_region
          _
        $region88: #{custom_vit_forward.1} parent=11 // pred_fallthru
          _
        // Predicated region
        $region89: #{custom_vit_forward.1} parent=11 // pred_check
          %p654 = pneg %p509
        $region90: #{custom_vit_forward.1} parent=11 // pred_check_branch
          %656 = sbr.rel (%p654) target = $region92
        $region91: #{custom_vit_forward.1} parent=11 // pred_region
          _
        $region92: #{custom_vit_forward.1} parent=11 // pred_fallthru
          _
        // Predicated region
        $region93: #{custom_vit_forward.1} parent=11 // pred_check
          %p657 = pneg %p530
        $region94: #{custom_vit_forward.1} parent=11 // pred_check_branch
          %659 = sbr.rel (%p657) target = $region96
        $region95: #{custom_vit_forward.1} parent=11 // pred_region
          _
        $region96: #{custom_vit_forward.1} parent=11 // pred_fallthru
          _
      $region12: #{custom_vit_forward.1} parent=5 // pred_fallthru
        _
      %p660 = scmp.lt.s32.totalorder %s37, 2
      // Predicated region
      $region97: #{custom_vit_forward.1} parent=5 // pred_check
        %p661 = pneg %p660
      $region98: #{custom_vit_forward.1} parent=5 // pred_check_branch
        %663 = sbr.rel (%p661) target = $region100
      $region99: #{custom_vit_forward.1} parent=5 // pred_region
        // Predicated region
        $region101: #{custom_vit_forward.1} parent=99 // pred_check
          %p664 = pneg %p57
        $region102: #{custom_vit_forward.1} parent=99 // pred_check_branch
          %666 = sbr.rel (%p664) target = $region104
        $region103: #{custom_vit_forward.1} parent=99 // pred_region
          %p667 = scmp.lt.s32.totalorder %s37, 1
          %s668 = scalar_select %p667, %s37, 1
          %s669 = smul.addr %s668, 12
          %s670 = smul.addr %s669, 8
          %s671 = scalar_lea.vmem %s0, %s670
        $region104: #{custom_vit_forward.1} parent=99 // pred_fallthru
          _
        // Predicated region
        $region105: #{custom_vit_forward.1} parent=99 // pred_check
          %p672 = pneg %p104
        $region106: #{custom_vit_forward.1} parent=99 // pred_check_branch
          %674 = sbr.rel (%p672) target = $region108
        $region107: #{custom_vit_forward.1} parent=99 // pred_region
          %p675 = scmp.lt.s32.totalorder %s37, 1
          %s676 = scalar_select %p675, %s37, 1
          %s677 = scalar_lea.vmem %s2, %s676
        $region108: #{custom_vit_forward.1} parent=99 // pred_fallthru
          _
      $region100: #{custom_vit_forward.1} parent=5 // pred_fallthru
        _
      %p678 = scmp.le.s32.totalorder 1, %s37
      %p679 = scmp.lt.s32.totalorder %s37, 3
      %p680 = pnand %p678, %p679
      %p681 = pneg %p680
      // Predicated region
      $region109: #{custom_vit_forward.1} parent=5 // pred_check
        _
      $region110: #{custom_vit_forward.1} parent=5 // pred_check_branch
        %683 = sbr.rel (%p680) target = $region112
      $region111: #{custom_vit_forward.1} parent=5 // pred_region
        %s684 = ssub.s32 %s37, 1
        %p685 = scmp.lt.s32.totalorder %s42, 1
        %s686 = scalar_select %p685, %s42, 1
        %s687 = smul.addr %s686, 12
        %s688 = smul.addr %s687, 8
        %s689 = scalar_lea.vmem %s0, %s688
        %p690 = pneg %p63
        %p691 = pneg %p60
        %p692 = pneg %p84
        %p693 = pneg %p81
        %p694 = scmp.lt.s32.totalorder %s42, 1
        %s695 = scalar_select %p694, %s42, 1
        %s696 = scalar_lea.vmem %s2, %s695
        %p697 = pneg %p110
        %p698 = pneg %p107
        %p699 = pneg %p131
        %p700 = pneg %p128
        %p701 = pneg %p152
        %p702 = pneg %p149
        %p703 = pneg %p173
        %p704 = pneg %p170
        %p705 = pneg %p194
        %p706 = pneg %p191
        %p707 = pneg %p215
        %p708 = pneg %p212
        %p709 = pneg %p236
        %p710 = pneg %p233
        %p711 = pneg %p257
        %p712 = pneg %p254
        %p713 = pneg %p278
        %p714 = pneg %p275
        %p715 = pneg %p299
        %p716 = pneg %p296
        %p717 = pneg %p320
        %p718 = pneg %p317
        %p719 = pneg %p341
        %p720 = pneg %p338
        %p721 = pneg %p362
        %p722 = pneg %p359
        %p723 = pneg %p383
        %p724 = pneg %p380
        %p725 = pneg %p404
        %p726 = pneg %p401
        %p727 = pneg %p425
        %p728 = pneg %p422
        %p729 = pneg %p446
        %p730 = pneg %p443
        %p731 = pneg %p467
        %p732 = pneg %p464
        %p733 = pneg %p488
        %p734 = pneg %p485
        %p735 = pneg %p509
        %p736 = pneg %p506
        %p737 = pneg %p530
        %p738 = pneg %p527
        %p739 = pneg %p556
        %p740 = pneg %p553
        %s741 = sand.u32 %s543, 1
        %s742 = scalar_lea.sflag [#allocation3], %s741
        %s743 = sand.u32 %s543, 1
        %s744 = scalar_lea.vmem [#allocation2], %s743
        %p745 = pneg %p582
        %p746 = pneg %p579
        %s747 = sand.u32 %s569, 1
        %s748 = scalar_lea.sflag [#allocation5], %s747
        %s749 = sand.u32 %s569, 1
        %s750 = scalar_lea.vmem [#allocation4], %s749
        %p751 = scmp.lt.s32.totalorder %s42, 1
        %s752 = scalar_select %p751, %s42, 1
        %s753 = smul.addr %s752, 12
        %s754 = smul.addr %s753, 8
        %s755 = scalar_lea.vmem %s0, %s754
        %p756 = scmp.lt.s32.totalorder %s42, 1
        %s757 = scalar_select %p756, %s42, 1
        %s758 = scalar_lea.vmem %s2, %s757
        %v759 = vld [vmem:[%s755] sm:$0x1f]
        %v760 = vld [vmem:[%s755 + $0x8] sm:$0x1f]
        %v761 = vld [vmem:[%s755 + $0x10] sm:$0x1f]
        %v762 = vld [vmem:[%s755 + $0x18] sm:$0x1f]
        %v763 = vld [vmem:[%s755 + $0x20] sm:$0x1f]
        %v764 = vld [vmem:[%s755 + $0x28] sm:$0x1f]
        %v765 = vld [vmem:[%s755 + $0x30] sm:$0x1f]
        %v766 = vld [vmem:[%s755 + $0x38] sm:$0x1f]
        %v767 = vld [vmem:[%s755 + $0x40] sm:$0x1f]
        %v768 = vld [vmem:[%s755 + $0x48] sm:$0x1f]
        %v769 = vld [vmem:[%s755 + $0x50] sm:$0x1f]
        %v770 = vld [vmem:[%s755 + $0x58] sm:$0x1f]
        %v771 = vld [vmem:[%s3] sm:$0xff]
        %v772 = vld [vmem:[%s3 + $0x8] sm:$0xff]
        %v773 = vld [vmem:[%s3 + $0x10] sm:$0xff]
        %v774 = vld [vmem:[%s3 + $0x18] sm:$0xff]
        %v775 = vld [vmem:[%s3 + $0x20] sm:$0xff]
        %v776 = vld [vmem:[%s3 + $0x28] sm:$0xff]
        %v777 = vld [vmem:[%s3 + $0x30] sm:$0xff]
        %v778 = vld [vmem:[%s3 + $0x38] sm:$0xff]
        %v779 = vld [vmem:[%s3 + $0x40] sm:$0xff]
        %v780 = vld [vmem:[%s3 + $0x48] sm:$0xff]
        %v781 = vld [vmem:[%s3 + $0x50] sm:$0xff]
        %v782 = vld [vmem:[%s3 + $0x58] sm:$0xff]
        %v783 = vld [vmem:[%s3 + $0x60] sm:$0xff]
        %v784 = vld [vmem:[%s3 + $0x68] sm:$0xff]
        %v785 = vld [vmem:[%s3 + $0x70] sm:$0xff]
        %v786 = vld [vmem:[%s3 + $0x78] sm:$0xff]
        %v787 = vld [vmem:[%s3 + $0x80] sm:$0xff]
        %v788 = vld [vmem:[%s3 + $0x88] sm:$0xff]
        %v789 = vld [vmem:[%s3 + $0x90] sm:$0xff]
        %v790 = vld [vmem:[%s3 + $0x98] sm:$0xff]
        %v791 = vld [vmem:[%s3 + $0xa0] sm:$0xff]
        %v792 = vld [vmem:[%s3 + $0xa8] sm:$0xff]
        %v793 = vld [vmem:[%s3 + $0xb0] sm:$0xff]
        %v794 = vld [vmem:[%s3 + $0xb8] sm:$0xff]
        %v795 = vld [vmem:[%s3 + $0xc0] sm:$0xff]
        %v796 = vld [vmem:[%s3 + $0xc8] sm:$0xff]
        %v797 = vld [vmem:[%s3 + $0xd0] sm:$0xff]
        %v798 = vld [vmem:[%s3 + $0xd8] sm:$0xff]
        %v799 = vld [vmem:[%s3 + $0xe0] sm:$0xff]
        %v800 = vld [vmem:[%s3 + $0xe8] sm:$0xff]
        %v801 = vld [vmem:[%s3 + $0xf0] sm:$0xff]
        %v802 = vld [vmem:[%s3 + $0xf8] sm:$0xff]
        %v803 = vld [vmem:[%s3 + $0x100] sm:$0xff]
        %v804 = vld [vmem:[%s3 + $0x108] sm:$0xff]
        %v805 = vld [vmem:[%s3 + $0x110] sm:$0xff]
        %v806 = vld [vmem:[%s3 + $0x118] sm:$0xff]
        %v807 = vld [vmem:[%s3 + $0x120] sm:$0xff]
        %v808 = vld [vmem:[%s3 + $0x128] sm:$0xff]
        %v809 = vld [vmem:[%s3 + $0x130] sm:$0xff]
        %v810 = vld [vmem:[%s3 + $0x138] sm:$0xff]
        %v811 = vld [vmem:[%s3 + $0x140] sm:$0xff]
        %v812 = vld [vmem:[%s3 + $0x148] sm:$0xff]
        %v813 = vld [vmem:[%s3 + $0x150] sm:$0xff]
        %v814 = vld [vmem:[%s3 + $0x158] sm:$0xff]
        %v815 = vld [vmem:[%s3 + $0x160] sm:$0xff]
        %v816 = vld [vmem:[%s3 + $0x168] sm:$0xff]
        %v817 = vld [vmem:[%s3 + $0x170] sm:$0xff]
        %v818 = vld [vmem:[%s3 + $0x178] sm:$0xff]
        %v819 = vld [vmem:[%s3 + $0x180] sm:$0xff]
        %v820 = vld [vmem:[%s3 + $0x188] sm:$0xff]
        %v821 = vld [vmem:[%s3 + $0x190] sm:$0xff]
        %v822 = vld [vmem:[%s3 + $0x198] sm:$0xff]
        %v823 = vld [vmem:[%s3 + $0x1a0] sm:$0xff]
        %v824 = vld [vmem:[%s3 + $0x1a8] sm:$0xff]
        %v825 = vld [vmem:[%s3 + $0x1b0] sm:$0xff]
        %v826 = vld [vmem:[%s3 + $0x1b8] sm:$0xff]
        %v827 = vld [vmem:[%s3 + $0x1c0] sm:$0xff]
        %v828 = vld [vmem:[%s3 + $0x1c8] sm:$0xff]
        %v829 = vld [vmem:[%s3 + $0x1d0] sm:$0xff]
        %v830 = vld [vmem:[%s3 + $0x1d8] sm:$0xff]
        %v831 = vld [vmem:[%s3 + $0x1e0] sm:$0xff]
        %v832 = vld [vmem:[%s3 + $0x1e8] sm:$0xff]
        %v833 = vld [vmem:[%s3 + $0x1f0] sm:$0xff]
        %v834 = vld [vmem:[%s3 + $0x1f8] sm:$0xff]
        %v835 = vld [vmem:[%s3 + $0x200] sm:$0xff]
        %v836 = vld [vmem:[%s3 + $0x208] sm:$0xff]
        %v837 = vld [vmem:[%s3 + $0x210] sm:$0xff]
        %v838 = vld [vmem:[%s3 + $0x218] sm:$0xff]
        %v839 = vld [vmem:[%s3 + $0x220] sm:$0xff]
        %v840 = vld [vmem:[%s3 + $0x228] sm:$0xff]
        %v841 = vld [vmem:[%s3 + $0x230] sm:$0xff]
        %v842 = vld [vmem:[%s3 + $0x238] sm:$0xff]
        %v843 = vld [vmem:[%s3 + $0x240] sm:$0xff]
        %v844 = vld [vmem:[%s3 + $0x248] sm:$0xff]
        %v845 = vld [vmem:[%s3 + $0x250] sm:$0xff]
        %v846 = vld [vmem:[%s3 + $0x258] sm:$0xff]
        %v847 = vld [vmem:[%s3 + $0x260] sm:$0xff]
        %v848 = vld [vmem:[%s3 + $0x268] sm:$0xff]
        %v849 = vld [vmem:[%s3 + $0x270] sm:$0xff]
        %v850 = vld [vmem:[%s3 + $0x278] sm:$0xff]
        %v851 = vld [vmem:[%s3 + $0x280] sm:$0xff]
        %v852 = vld [vmem:[%s3 + $0x288] sm:$0xff]
        %v853 = vld [vmem:[%s3 + $0x290] sm:$0xff]
        %v854 = vld [vmem:[%s3 + $0x298] sm:$0xff]
        %v855 = vld [vmem:[%s3 + $0x2a0] sm:$0xff]
        %v856 = vld [vmem:[%s3 + $0x2a8] sm:$0xff]
        %v857 = vld [vmem:[%s3 + $0x2b0] sm:$0xff]
        %v858 = vld [vmem:[%s3 + $0x2b8] sm:$0xff]
        %v859 = vld [vmem:[%s3 + $0x2c0] sm:$0xff]
        %v860 = vld [vmem:[%s3 + $0x2c8] sm:$0xff]
        %v861 = vld [vmem:[%s3 + $0x2d0] sm:$0xff]
        %v862 = vld [vmem:[%s3 + $0x2d8] sm:$0xff]
        %v863 = vld [vmem:[%s3 + $0x2e0] sm:$0xff]
        %v864 = vld [vmem:[%s3 + $0x2e8] sm:$0xff]
        %v865 = vld [vmem:[%s3 + $0x2f0] sm:$0xff]
        %v866 = vld [vmem:[%s3 + $0x2f8] sm:$0xff]
        %v867 = vld [vmem:[%s3 + $0x300] sm:$0xff]
        %v868 = vld [vmem:[%s3 + $0x308] sm:$0xff]
        %v869 = vld [vmem:[%s3 + $0x310] sm:$0xff]
        %v870 = vld [vmem:[%s3 + $0x318] sm:$0xff]
        %v871 = vld [vmem:[%s3 + $0x320] sm:$0xff]
        %v872 = vld [vmem:[%s3 + $0x328] sm:$0xff]
        %v873 = vld [vmem:[%s3 + $0x330] sm:$0xff]
        %v874 = vld [vmem:[%s3 + $0x338] sm:$0xff]
        %v875 = vld [vmem:[%s3 + $0x340] sm:$0xff]
        %v876 = vld [vmem:[%s3 + $0x348] sm:$0xff]
        %v877 = vld [vmem:[%s3 + $0x350] sm:$0xff]
        %v878 = vld [vmem:[%s3 + $0x358] sm:$0xff]
        %v879 = vld [vmem:[%s3 + $0x360] sm:$0xff]
        %v880 = vld [vmem:[%s3 + $0x368] sm:$0xff]
        %v881 = vld [vmem:[%s3 + $0x370] sm:$0xff]
        %v882 = vld [vmem:[%s3 + $0x378] sm:$0xff]
        %v883 = vld [vmem:[%s3 + $0x380] sm:$0xff]
        %v884 = vld [vmem:[%s3 + $0x388] sm:$0xff]
        %v885 = vld [vmem:[%s3 + $0x390] sm:$0xff]
        %v886 = vld [vmem:[%s3 + $0x398] sm:$0xff]
        %v887 = vld [vmem:[%s3 + $0x3a0] sm:$0xff]
        %v888 = vld [vmem:[%s3 + $0x3a8] sm:$0xff]
        %v889 = vld [vmem:[%s3 + $0x3b0] sm:$0xff]
        %v890 = vld [vmem:[%s3 + $0x3b8] sm:$0xff]
        %v891 = vld [vmem:[%s3 + $0x3c0] sm:$0xff]
        %v892 = vld [vmem:[%s3 + $0x3c8] sm:$0xff]
        %v893 = vld [vmem:[%s3 + $0x3d0] sm:$0xff]
        %v894 = vld [vmem:[%s3 + $0x3d8] sm:$0xff]
        %v895 = vld [vmem:[%s3 + $0x3e0] sm:$0xff]
        %v896 = vld [vmem:[%s3 + $0x3e8] sm:$0xff]
        %v897 = vld [vmem:[%s3 + $0x3f0] sm:$0xff]
        %v898 = vld [vmem:[%s3 + $0x3f8] sm:$0xff]
        %v899 = vld [vmem:[%s3 + $0x400] sm:$0xff]
        %v900 = vld [vmem:[%s3 + $0x408] sm:$0xff]
        %v901 = vld [vmem:[%s3 + $0x410] sm:$0xff]
        %v902 = vld [vmem:[%s3 + $0x418] sm:$0xff]
        %v903 = vld [vmem:[%s3 + $0x420] sm:$0xff]
        %v904 = vld [vmem:[%s3 + $0x428] sm:$0xff]
        %v905 = vld [vmem:[%s3 + $0x430] sm:$0xff]
        %v906 = vld [vmem:[%s3 + $0x438] sm:$0xff]
        %v907 = vld [vmem:[%s3 + $0x440] sm:$0xff]
        %v908 = vld [vmem:[%s3 + $0x448] sm:$0xff]
        %v909 = vld [vmem:[%s3 + $0x450] sm:$0xff]
        %v910 = vld [vmem:[%s3 + $0x458] sm:$0xff]
        %v911 = vld [vmem:[%s3 + $0x460] sm:$0xff]
        %v912 = vld [vmem:[%s3 + $0x468] sm:$0xff]
        %v913 = vld [vmem:[%s3 + $0x470] sm:$0xff]
        %v914 = vld [vmem:[%s3 + $0x478] sm:$0xff]
        %v915 = vld [vmem:[%s3 + $0x480] sm:$0xff]
        %v916 = vld [vmem:[%s3 + $0x488] sm:$0xff]
        %v917 = vld [vmem:[%s3 + $0x490] sm:$0xff]
        %v918 = vld [vmem:[%s3 + $0x498] sm:$0xff]
        %v919 = vld [vmem:[%s3 + $0x4a0] sm:$0xff]
        %v920 = vld [vmem:[%s3 + $0x4a8] sm:$0xff]
        %v921 = vld [vmem:[%s3 + $0x4b0] sm:$0xff]
        %v922 = vld [vmem:[%s3 + $0x4b8] sm:$0xff]
        %v923 = vld [vmem:[%s3 + $0x4c0] sm:$0xff]
        %v924 = vld [vmem:[%s3 + $0x4c8] sm:$0xff]
        %v925 = vld [vmem:[%s3 + $0x4d0] sm:$0xff]
        %v926 = vld [vmem:[%s3 + $0x4d8] sm:$0xff]
        %v927 = vld [vmem:[%s3 + $0x4e0] sm:$0xff]
        %v928 = vld [vmem:[%s3 + $0x4e8] sm:$0xff]
        %v929 = vld [vmem:[%s3 + $0x4f0] sm:$0xff]
        %v930 = vld [vmem:[%s3 + $0x4f8] sm:$0xff]
        %v931 = vld [vmem:[%s3 + $0x500] sm:$0xff]
        %v932 = vld [vmem:[%s3 + $0x508] sm:$0xff]
        %v933 = vld [vmem:[%s3 + $0x510] sm:$0xff]
        %v934 = vld [vmem:[%s3 + $0x518] sm:$0xff]
        %v935 = vld [vmem:[%s3 + $0x520] sm:$0xff]
        %v936 = vld [vmem:[%s3 + $0x528] sm:$0xff]
        %v937 = vld [vmem:[%s3 + $0x530] sm:$0xff]
        %v938 = vld [vmem:[%s3 + $0x538] sm:$0xff]
        %v939 = vld [vmem:[%s3 + $0x540] sm:$0xff]
        %v940 = vld [vmem:[%s3 + $0x548] sm:$0xff]
        %v941 = vld [vmem:[%s3 + $0x550] sm:$0xff]
        %v942 = vld [vmem:[%s3 + $0x558] sm:$0xff]
        %v943 = vld [vmem:[%s3 + $0x560] sm:$0xff]
        %v944 = vld [vmem:[%s3 + $0x568] sm:$0xff]
        %v945 = vld [vmem:[%s3 + $0x570] sm:$0xff]
        %v946 = vld [vmem:[%s3 + $0x578] sm:$0xff]
        %v947 = vld [vmem:[%s3 + $0x580] sm:$0xff]
        %v948 = vld [vmem:[%s3 + $0x588] sm:$0xff]
        %v949 = vld [vmem:[%s3 + $0x590] sm:$0xff]
        %v950 = vld [vmem:[%s3 + $0x598] sm:$0xff]
        %v951 = vld [vmem:[%s3 + $0x5a0] sm:$0xff]
        %v952 = vld [vmem:[%s3 + $0x5a8] sm:$0xff]
        %v953 = vld [vmem:[%s3 + $0x5b0] sm:$0xff]
        %v954 = vld [vmem:[%s3 + $0x5b8] sm:$0xff]
        %v955 = vld [vmem:[%s3 + $0x5c0] sm:$0xff]
        %v956 = vld [vmem:[%s3 + $0x5c8] sm:$0xff]
        %v957 = vld [vmem:[%s3 + $0x5d0] sm:$0xff]
        %v958 = vld [vmem:[%s3 + $0x5d8] sm:$0xff]
        %v959 = vld [vmem:[%s3 + $0x5e0] sm:$0xff]
        %v960 = vld [vmem:[%s3 + $0x5e8] sm:$0xff]
        %v961 = vld [vmem:[%s3 + $0x5f0] sm:$0xff]
        %v962 = vld [vmem:[%s3 + $0x5f8] sm:$0xff]
        %v963 = vld [vmem:[%s1] sm:$0x1f]
        %964 = vmatprep.subr.mxu0 0.0
        %965 = vmatpush1.msra.mxu0 %v786
        %966 = vmatprep.subr.mxu0 0.0
        %967 = vmatpush1.msra.mxu0 %v785
        %968 = vmatprep.subr.mxu0 0.0
        %969 = vmatpush1.msra.mxu0 %v784
        %970 = vmatprep.subr.mxu0 0.0
        %971 = vmatpush1.msra.mxu0 %v783
        %972 = vmatprep.subr.mxu0 0.0
        %973 = vmatpush1.msra.mxu0 %v782
        %974 = vmatprep.subr.mxu0 0.0
        %975 = vmatpush1.msra.mxu0 %v781
        %976 = vmatprep.subr.mxu0 0.0
        %977 = vmatpush1.msra.mxu0 %v780
        %978 = vmatprep.subr.mxu0 0.0
        %979 = vmatpush1.msra.mxu0 %v779
        %980 = vmatprep.subr.mxu0 0.0
        %981 = vmatpush1.msra.mxu0 %v778
        %982 = vmatprep.subr.mxu0 0.0
        %983 = vmatpush1.msra.mxu0 %v777
        %984 = vmatprep.subr.mxu0 0.0
        %985 = vmatpush1.msra.mxu0 %v776
        %986 = vmatprep.subr.mxu0 0.0
        %987 = vmatpush1.msra.mxu0 %v775
        %988 = vmatprep.subr.mxu0 0.0
        %989 = vmatpush1.msra.mxu0 %v774
        %990 = vmatprep.subr.mxu0 0.0
        %991 = vmatpush1.msra.mxu0 %v773
        %992 = vmatprep.subr.mxu0 0.0
        %993 = vmatpush1.msra.mxu0 %v772
        %994 = vmatprep.subr.mxu0 0.0
        %995 = vmatpush1.msra.mxu0 %v771
        %996 = vmatprep.subr.mxu0 0.0
        %997 = vmatpush2.msra.mxu0 %v802
        %998 = vmatprep.subr.mxu0 0.0
        %999 = vmatpush2.msra.mxu0 %v801
        %1000 = vmatprep.subr.mxu0 0.0
        %1001 = vmatpush2.msra.mxu0 %v800
        %1002 = vmatprep.subr.mxu0 0.0
        %1003 = vmatpush2.msra.mxu0 %v799
        %1004 = vmatprep.subr.mxu0 0.0
        %1005 = vmatpush2.msra.mxu0 %v798
        %1006 = vmatprep.subr.mxu0 0.0
        %1007 = vmatpush2.msra.mxu0 %v797
        %1008 = vmatprep.subr.mxu0 0.0
        %1009 = vmatpush2.msra.mxu0 %v796
        %1010 = vmatprep.subr.mxu0 0.0
        %1011 = vmatpush2.msra.mxu0 %v795
        %1012 = vmatprep.subr.mxu0 0.0
        %1013 = vmatpush2.msra.mxu0 %v794
        %1014 = vmatprep.subr.mxu0 0.0
        %1015 = vmatpush2.msra.mxu0 %v793
        %1016 = vmatprep.subr.mxu0 0.0
        %1017 = vmatpush2.msra.mxu0 %v792
        %1018 = vmatprep.subr.mxu0 0.0
        %1019 = vmatpush2.msra.mxu0 %v791
        %1020 = vmatprep.subr.mxu0 0.0
        %1021 = vmatpush2.msra.mxu0 %v790
        %1022 = vmatprep.subr.mxu0 0.0
        %1023 = vmatpush2.msra.mxu0 %v789
        %1024 = vmatprep.subr.mxu0 0.0
        %1025 = vmatpush2.msra.mxu0 %v788
        %1026 = vmatprep.subr.mxu0 0.0
        %1027 = vmatpush2.msra.mxu0 %v787
        %1028 = vmatprep.mubr.f32.mxu0 %v760
        %1029 = vmatmul.mubr.f32.gmra.mxu0 %v759
        %v1030 = vpop.f32.mrf.mxu0
        %v1031 = vadd.f32 %v963, %v1030
        %v1032 = vpop.f32.mrf.mxu0
        %1033 = vdwg.mxu0
        %1034 = vmatprep.subr.mxu0 0.0
        %1035 = vmatpush1.msra.mxu0 %v818
        %1036 = vmatprep.subr.mxu0 0.0
        %1037 = vmatpush1.msra.mxu0 %v817
        %1038 = vmatprep.subr.mxu0 0.0
        %1039 = vmatpush1.msra.mxu0 %v816
        %1040 = vmatprep.subr.mxu0 0.0
        %1041 = vmatpush1.msra.mxu0 %v815
        %1042 = vmatprep.subr.mxu0 0.0
        %1043 = vmatpush1.msra.mxu0 %v814
        %1044 = vmatprep.subr.mxu0 0.0
        %1045 = vmatpush1.msra.mxu0 %v813
        %1046 = vmatprep.subr.mxu0 0.0
        %1047 = vmatpush1.msra.mxu0 %v812
        %1048 = vmatprep.subr.mxu0 0.0
        %1049 = vmatpush1.msra.mxu0 %v811
        %1050 = vmatprep.subr.mxu0 0.0
        %1051 = vmatpush1.msra.mxu0 %v810
        %1052 = vmatprep.subr.mxu0 0.0
        %1053 = vmatpush1.msra.mxu0 %v809
        %1054 = vmatprep.subr.mxu0 0.0
        %1055 = vmatpush1.msra.mxu0 %v808
        %1056 = vmatprep.subr.mxu0 0.0
        %1057 = vmatpush1.msra.mxu0 %v807
        %1058 = vmatprep.subr.mxu0 0.0
        %1059 = vmatpush1.msra.mxu0 %v806
        %1060 = vmatprep.subr.mxu0 0.0
        %1061 = vmatpush1.msra.mxu0 %v805
        %1062 = vmatprep.subr.mxu0 0.0
        %1063 = vmatpush1.msra.mxu0 %v804
        %1064 = vmatprep.subr.mxu0 0.0
        %1065 = vmatpush1.msra.mxu0 %v803
        %1066 = vmatprep.subr.mxu0 0.0
        %1067 = vmatpush2.msra.mxu0 %v834
        %1068 = vmatprep.subr.mxu0 0.0
        %1069 = vmatpush2.msra.mxu0 %v833
        %1070 = vmatprep.subr.mxu0 0.0
        %1071 = vmatpush2.msra.mxu0 %v832
        %1072 = vmatprep.subr.mxu0 0.0
        %1073 = vmatpush2.msra.mxu0 %v831
        %1074 = vmatprep.subr.mxu0 0.0
        %1075 = vmatpush2.msra.mxu0 %v830
        %1076 = vmatprep.subr.mxu0 0.0
        %1077 = vmatpush2.msra.mxu0 %v829
        %1078 = vmatprep.subr.mxu0 0.0
        %1079 = vmatpush2.msra.mxu0 %v828
        %1080 = vmatprep.subr.mxu0 0.0
        %1081 = vmatpush2.msra.mxu0 %v827
        %1082 = vmatprep.subr.mxu0 0.0
        %1083 = vmatpush2.msra.mxu0 %v826
        %1084 = vmatprep.subr.mxu0 0.0
        %1085 = vmatpush2.msra.mxu0 %v825
        %1086 = vmatprep.subr.mxu0 0.0
        %1087 = vmatpush2.msra.mxu0 %v824
        %1088 = vmatprep.subr.mxu0 0.0
        %1089 = vmatpush2.msra.mxu0 %v823
        %1090 = vmatprep.subr.mxu0 0.0
        %1091 = vmatpush2.msra.mxu0 %v822
        %1092 = vmatprep.subr.mxu0 0.0
        %1093 = vmatpush2.msra.mxu0 %v821
        %1094 = vmatprep.subr.mxu0 0.0
        %1095 = vmatpush2.msra.mxu0 %v820
        %1096 = vmatprep.subr.mxu0 0.0
        %1097 = vmatpush2.msra.mxu0 %v819
        %1098 = vmatprep.mubr.f32.mxu0 %v762
        %1099 = vmatmul.mubr.f32.gmra.mxu0 %v761
        %v1100 = vpop.f32.mrf.mxu0
        %v1101 = vadd.f32 %v1031, %v1100
        %v1102 = vpop.f32.mrf.mxu0
        %1103 = vdwg.mxu0
        %1104 = vmatprep.subr.mxu0 0.0
        %1105 = vmatpush1.msra.mxu0 %v850
        %1106 = vmatprep.subr.mxu0 0.0
        %1107 = vmatpush1.msra.mxu0 %v849
        %1108 = vmatprep.subr.mxu0 0.0
        %1109 = vmatpush1.msra.mxu0 %v848
        %1110 = vmatprep.subr.mxu0 0.0
        %1111 = vmatpush1.msra.mxu0 %v847
        %1112 = vmatprep.subr.mxu0 0.0
        %1113 = vmatpush1.msra.mxu0 %v846
        %1114 = vmatprep.subr.mxu0 0.0
        %1115 = vmatpush1.msra.mxu0 %v845
        %1116 = vmatprep.subr.mxu0 0.0
        %1117 = vmatpush1.msra.mxu0 %v844
        %1118 = vmatprep.subr.mxu0 0.0
        %1119 = vmatpush1.msra.mxu0 %v843
        %1120 = vmatprep.subr.mxu0 0.0
        %1121 = vmatpush1.msra.mxu0 %v842
        %1122 = vmatprep.subr.mxu0 0.0
        %1123 = vmatpush1.msra.mxu0 %v841
        %1124 = vmatprep.subr.mxu0 0.0
        %1125 = vmatpush1.msra.mxu0 %v840
        %1126 = vmatprep.subr.mxu0 0.0
        %1127 = vmatpush1.msra.mxu0 %v839
        %1128 = vmatprep.subr.mxu0 0.0
        %1129 = vmatpush1.msra.mxu0 %v838
        %1130 = vmatprep.subr.mxu0 0.0
        %1131 = vmatpush1.msra.mxu0 %v837
        %1132 = vmatprep.subr.mxu0 0.0
        %1133 = vmatpush1.msra.mxu0 %v836
        %1134 = vmatprep.subr.mxu0 0.0
        %1135 = vmatpush1.msra.mxu0 %v835
        %1136 = vmatprep.subr.mxu0 0.0
        %1137 = vmatpush2.msra.mxu0 %v866
        %1138 = vmatprep.subr.mxu0 0.0
        %1139 = vmatpush2.msra.mxu0 %v865
        %1140 = vmatprep.subr.mxu0 0.0
        %1141 = vmatpush2.msra.mxu0 %v864
        %1142 = vmatprep.subr.mxu0 0.0
        %1143 = vmatpush2.msra.mxu0 %v863
        %1144 = vmatprep.subr.mxu0 0.0
        %1145 = vmatpush2.msra.mxu0 %v862
        %1146 = vmatprep.subr.mxu0 0.0
        %1147 = vmatpush2.msra.mxu0 %v861
        %1148 = vmatprep.subr.mxu0 0.0
        %1149 = vmatpush2.msra.mxu0 %v860
        %1150 = vmatprep.subr.mxu0 0.0
        %1151 = vmatpush2.msra.mxu0 %v859
        %1152 = vmatprep.subr.mxu0 0.0
        %1153 = vmatpush2.msra.mxu0 %v858
        %1154 = vmatprep.subr.mxu0 0.0
        %1155 = vmatpush2.msra.mxu0 %v857
        %1156 = vmatprep.subr.mxu0 0.0
        %1157 = vmatpush2.msra.mxu0 %v856
        %1158 = vmatprep.subr.mxu0 0.0
        %1159 = vmatpush2.msra.mxu0 %v855
        %1160 = vmatprep.subr.mxu0 0.0
        %1161 = vmatpush2.msra.mxu0 %v854
        %1162 = vmatprep.subr.mxu0 0.0
        %1163 = vmatpush2.msra.mxu0 %v853
        %1164 = vmatprep.subr.mxu0 0.0
        %1165 = vmatpush2.msra.mxu0 %v852
        %1166 = vmatprep.subr.mxu0 0.0
        %1167 = vmatpush2.msra.mxu0 %v851
        %1168 = vmatprep.mubr.f32.mxu0 %v764
        %1169 = vmatmul.mubr.f32.gmra.mxu0 %v763
        %v1170 = vpop.f32.mrf.mxu0
        %v1171 = vadd.f32 %v1101, %v1170
        %v1172 = vpop.f32.mrf.mxu0
        %1173 = vdwg.mxu0
        %1174 = vmatprep.subr.mxu0 0.0
        %1175 = vmatpush1.msra.mxu0 %v882
        %1176 = vmatprep.subr.mxu0 0.0
        %1177 = vmatpush1.msra.mxu0 %v881
        %1178 = vmatprep.subr.mxu0 0.0
        %1179 = vmatpush1.msra.mxu0 %v880
        %1180 = vmatprep.subr.mxu0 0.0
        %1181 = vmatpush1.msra.mxu0 %v879
        %1182 = vmatprep.subr.mxu0 0.0
        %1183 = vmatpush1.msra.mxu0 %v878
        %1184 = vmatprep.subr.mxu0 0.0
        %1185 = vmatpush1.msra.mxu0 %v877
        %1186 = vmatprep.subr.mxu0 0.0
        %1187 = vmatpush1.msra.mxu0 %v876
        %1188 = vmatprep.subr.mxu0 0.0
        %1189 = vmatpush1.msra.mxu0 %v875
        %1190 = vmatprep.subr.mxu0 0.0
        %1191 = vmatpush1.msra.mxu0 %v874
        %1192 = vmatprep.subr.mxu0 0.0
        %1193 = vmatpush1.msra.mxu0 %v873
        %1194 = vmatprep.subr.mxu0 0.0
        %1195 = vmatpush1.msra.mxu0 %v872
        %1196 = vmatprep.subr.mxu0 0.0
        %1197 = vmatpush1.msra.mxu0 %v871
        %1198 = vmatprep.subr.mxu0 0.0
        %1199 = vmatpush1.msra.mxu0 %v870
        %1200 = vmatprep.subr.mxu0 0.0
        %1201 = vmatpush1.msra.mxu0 %v869
        %1202 = vmatprep.subr.mxu0 0.0
        %1203 = vmatpush1.msra.mxu0 %v868
        %1204 = vmatprep.subr.mxu0 0.0
        %1205 = vmatpush1.msra.mxu0 %v867
        %1206 = vmatprep.subr.mxu0 0.0
        %1207 = vmatpush2.msra.mxu0 %v898
        %1208 = vmatprep.subr.mxu0 0.0
        %1209 = vmatpush2.msra.mxu0 %v897
        %1210 = vmatprep.subr.mxu0 0.0
        %1211 = vmatpush2.msra.mxu0 %v896
        %1212 = vmatprep.subr.mxu0 0.0
        %1213 = vmatpush2.msra.mxu0 %v895
        %1214 = vmatprep.subr.mxu0 0.0
        %1215 = vmatpush2.msra.mxu0 %v894
        %1216 = vmatprep.subr.mxu0 0.0
        %1217 = vmatpush2.msra.mxu0 %v893
        %1218 = vmatprep.subr.mxu0 0.0
        %1219 = vmatpush2.msra.mxu0 %v892
        %1220 = vmatprep.subr.mxu0 0.0
        %1221 = vmatpush2.msra.mxu0 %v891
        %1222 = vmatprep.subr.mxu0 0.0
        %1223 = vmatpush2.msra.mxu0 %v890
        %1224 = vmatprep.subr.mxu0 0.0
        %1225 = vmatpush2.msra.mxu0 %v889
        %1226 = vmatprep.subr.mxu0 0.0
        %1227 = vmatpush2.msra.mxu0 %v888
        %1228 = vmatprep.subr.mxu0 0.0
        %1229 = vmatpush2.msra.mxu0 %v887
        %1230 = vmatprep.subr.mxu0 0.0
        %1231 = vmatpush2.msra.mxu0 %v886
        %1232 = vmatprep.subr.mxu0 0.0
        %1233 = vmatpush2.msra.mxu0 %v885
        %1234 = vmatprep.subr.mxu0 0.0
        %1235 = vmatpush2.msra.mxu0 %v884
        %1236 = vmatprep.subr.mxu0 0.0
        %1237 = vmatpush2.msra.mxu0 %v883
        %1238 = vmatprep.mubr.f32.mxu0 %v766
        %1239 = vmatmul.mubr.f32.gmra.mxu0 %v765
        %v1240 = vpop.f32.mrf.mxu0
        %v1241 = vadd.f32 %v1171, %v1240
        %v1242 = vpop.f32.mrf.mxu0
        %1243 = vdwg.mxu0
        %1244 = vmatprep.subr.mxu0 0.0
        %1245 = vmatpush1.msra.mxu0 %v914
        %1246 = vmatprep.subr.mxu0 0.0
        %1247 = vmatpush1.msra.mxu0 %v913
        %1248 = vmatprep.subr.mxu0 0.0
        %1249 = vmatpush1.msra.mxu0 %v912
        %1250 = vmatprep.subr.mxu0 0.0
        %1251 = vmatpush1.msra.mxu0 %v911
        %1252 = vmatprep.subr.mxu0 0.0
        %1253 = vmatpush1.msra.mxu0 %v910
        %1254 = vmatprep.subr.mxu0 0.0
        %1255 = vmatpush1.msra.mxu0 %v909
        %1256 = vmatprep.subr.mxu0 0.0
        %1257 = vmatpush1.msra.mxu0 %v908
        %1258 = vmatprep.subr.mxu0 0.0
        %1259 = vmatpush1.msra.mxu0 %v907
        %1260 = vmatprep.subr.mxu0 0.0
        %1261 = vmatpush1.msra.mxu0 %v906
        %1262 = vmatprep.subr.mxu0 0.0
        %1263 = vmatpush1.msra.mxu0 %v905
        %1264 = vmatprep.subr.mxu0 0.0
        %1265 = vmatpush1.msra.mxu0 %v904
        %1266 = vmatprep.subr.mxu0 0.0
        %1267 = vmatpush1.msra.mxu0 %v903
        %1268 = vmatprep.subr.mxu0 0.0
        %1269 = vmatpush1.msra.mxu0 %v902
        %1270 = vmatprep.subr.mxu0 0.0
        %1271 = vmatpush1.msra.mxu0 %v901
        %1272 = vmatprep.subr.mxu0 0.0
        %1273 = vmatpush1.msra.mxu0 %v900
        %1274 = vmatprep.subr.mxu0 0.0
        %1275 = vmatpush1.msra.mxu0 %v899
        %1276 = vmatprep.subr.mxu0 0.0
        %1277 = vmatpush2.msra.mxu0 %v930
        %1278 = vmatprep.subr.mxu0 0.0
        %1279 = vmatpush2.msra.mxu0 %v929
        %1280 = vmatprep.subr.mxu0 0.0
        %1281 = vmatpush2.msra.mxu0 %v928
        %1282 = vmatprep.subr.mxu0 0.0
        %1283 = vmatpush2.msra.mxu0 %v927
        %1284 = vmatprep.subr.mxu0 0.0
        %1285 = vmatpush2.msra.mxu0 %v926
        %1286 = vmatprep.subr.mxu0 0.0
        %1287 = vmatpush2.msra.mxu0 %v925
        %1288 = vmatprep.subr.mxu0 0.0
        %1289 = vmatpush2.msra.mxu0 %v924
        %1290 = vmatprep.subr.mxu0 0.0
        %1291 = vmatpush2.msra.mxu0 %v923
        %1292 = vmatprep.subr.mxu0 0.0
        %1293 = vmatpush2.msra.mxu0 %v922
        %1294 = vmatprep.subr.mxu0 0.0
        %1295 = vmatpush2.msra.mxu0 %v921
        %1296 = vmatprep.subr.mxu0 0.0
        %1297 = vmatpush2.msra.mxu0 %v920
        %1298 = vmatprep.subr.mxu0 0.0
        %1299 = vmatpush2.msra.mxu0 %v919
        %1300 = vmatprep.subr.mxu0 0.0
        %1301 = vmatpush2.msra.mxu0 %v918
        %1302 = vmatprep.subr.mxu0 0.0
        %1303 = vmatpush2.msra.mxu0 %v917
        %1304 = vmatprep.subr.mxu0 0.0
        %1305 = vmatpush2.msra.mxu0 %v916
        %1306 = vmatprep.subr.mxu0 0.0
        %1307 = vmatpush2.msra.mxu0 %v915
        %1308 = vmatprep.mubr.f32.mxu0 %v768
        %1309 = vmatmul.mubr.f32.gmra.mxu0 %v767
        %v1310 = vpop.f32.mrf.mxu0
        %v1311 = vadd.f32 %v1241, %v1310
        %v1312 = vpop.f32.mrf.mxu0
        %1313 = vdwg.mxu0
        %1314 = vmatprep.subr.mxu0 0.0
        %1315 = vmatpush1.msra.mxu0 %v946
        %1316 = vmatprep.subr.mxu0 0.0
        %1317 = vmatpush1.msra.mxu0 %v945
        %1318 = vmatprep.subr.mxu0 0.0
        %1319 = vmatpush1.msra.mxu0 %v944
        %1320 = vmatprep.subr.mxu0 0.0
        %1321 = vmatpush1.msra.mxu0 %v943
        %1322 = vmatprep.subr.mxu0 0.0
        %1323 = vmatpush1.msra.mxu0 %v942
        %1324 = vmatprep.subr.mxu0 0.0
        %1325 = vmatpush1.msra.mxu0 %v941
        %1326 = vmatprep.subr.mxu0 0.0
        %1327 = vmatpush1.msra.mxu0 %v940
        %1328 = vmatprep.subr.mxu0 0.0
        %1329 = vmatpush1.msra.mxu0 %v939
        %1330 = vmatprep.subr.mxu0 0.0
        %1331 = vmatpush1.msra.mxu0 %v938
        %1332 = vmatprep.subr.mxu0 0.0
        %1333 = vmatpush1.msra.mxu0 %v937
        %1334 = vmatprep.subr.mxu0 0.0
        %1335 = vmatpush1.msra.mxu0 %v936
        %1336 = vmatprep.subr.mxu0 0.0
        %1337 = vmatpush1.msra.mxu0 %v935
        %1338 = vmatprep.subr.mxu0 0.0
        %1339 = vmatpush1.msra.mxu0 %v934
        %1340 = vmatprep.subr.mxu0 0.0
        %1341 = vmatpush1.msra.mxu0 %v933
        %1342 = vmatprep.subr.mxu0 0.0
        %1343 = vmatpush1.msra.mxu0 %v932
        %1344 = vmatprep.subr.mxu0 0.0
        %1345 = vmatpush1.msra.mxu0 %v931
        %1346 = vmatprep.subr.mxu0 0.0
        %1347 = vmatpush2.msra.mxu0 %v962
        %1348 = vmatprep.subr.mxu0 0.0
        %1349 = vmatpush2.msra.mxu0 %v961
        %1350 = vmatprep.subr.mxu0 0.0
        %1351 = vmatpush2.msra.mxu0 %v960
        %1352 = vmatprep.subr.mxu0 0.0
        %1353 = vmatpush2.msra.mxu0 %v959
        %1354 = vmatprep.subr.mxu0 0.0
        %1355 = vmatpush2.msra.mxu0 %v958
        %1356 = vmatprep.subr.mxu0 0.0
        %1357 = vmatpush2.msra.mxu0 %v957
        %1358 = vmatprep.subr.mxu0 0.0
        %1359 = vmatpush2.msra.mxu0 %v956
        %1360 = vmatprep.subr.mxu0 0.0
        %1361 = vmatpush2.msra.mxu0 %v955
        %1362 = vmatprep.subr.mxu0 0.0
        %1363 = vmatpush2.msra.mxu0 %v954
        %1364 = vmatprep.subr.mxu0 0.0
        %1365 = vmatpush2.msra.mxu0 %v953
        %1366 = vmatprep.subr.mxu0 0.0
        %1367 = vmatpush2.msra.mxu0 %v952
        %1368 = vmatprep.subr.mxu0 0.0
        %1369 = vmatpush2.msra.mxu0 %v951
        %1370 = vmatprep.subr.mxu0 0.0
        %1371 = vmatpush2.msra.mxu0 %v950
        %1372 = vmatprep.subr.mxu0 0.0
        %1373 = vmatpush2.msra.mxu0 %v949
        %1374 = vmatprep.subr.mxu0 0.0
        %1375 = vmatpush2.msra.mxu0 %v948
        %1376 = vmatprep.subr.mxu0 0.0
        %1377 = vmatpush2.msra.mxu0 %v947
        %1378 = vmatprep.mubr.f32.mxu0 %v770
        %1379 = vmatmul.mubr.f32.gmra.mxu0 %v769
        %v1380 = vpop.f32.mrf.mxu0
        %v1381 = vadd.f32 %v1311, %v1380
        %v1382 = vpop.f32.mrf.mxu0
        %1383 = vdwg.mxu0
        %v1384 = vld [vmem:[%s4] sm:$0x1]
        %v1385 = vld [vmem:[%s5] sm:$0x1]
        %vm1386 = vcmask 258048
        %v1387 = vsel %vm1386, %v1381, 0.0
        %1388 = vadd.xlane.f32.xlu0 %v1387
        %v1389 = vpop.xlane.xlu0 %1388
        %v1390 = vrcp.pop 32.0
        %v1391 = vmul.f32 %v1389, %v1390
        %v1392 = vsub.f32 %v1381, %v1391
        %v1393 = vmul.f32 %v1392, %v1392
        %v1394 = vsel %vm1386, %v1393, 0.0
        %1395 = vadd.xlane.f32.xlu0 %v1394
        %v1396 = vpop.xlane.xlu0 %1395
        %v1397 = vmul.f32 %v1396, %v1390
        %v1398 = vadd.f32 %v1397, 1e-06
        %v1399 = vrsqrt.pop %v1398
        %v1400 = vmul.f32 %v1392, %v1399
        %v1402 = vlaneseq
        %v1403 = vshrl.u32 %v1402, 7
        %v1404 = vsub.s32 0, %v1403
        %v1405 = vrot.slane %v1384, %v1404
        %v1407 = vmul.f32 %v1400, %v1405
        %v1409 = vlaneseq
        %v1410 = vshrl.u32 %v1409, 7
        %v1411 = vsub.s32 0, %v1410
        %v1412 = vrot.slane %v1385, %v1411
        %v1414 = vadd.f32 %v1407, %v1412
        %v1415 = vld [vmem:[%s6] sm:$0xff]
        %v1416 = vld [vmem:[%s6 + $0x8] sm:$0xff]
        %v1417 = vld [vmem:[%s6 + $0x10] sm:$0xff]
        %v1418 = vld [vmem:[%s6 + $0x18] sm:$0xff]
        %v1419 = vld [vmem:[%s7] sm:$0x1]
        %v1421 = vlaneseq
        %v1422 = vshrl.u32 %v1421, 7
        %v1423 = vsub.s32 0, %v1422
        %v1424 = vrot.slane %v1419, %v1423
        %vm1426 = vcmask 261120
        %v1428 = vsel %vm1426, %v1414, 0
        %1430 = vmatprep.subr.mxu0 0.0
        %1431 = vmatpush1.msra.mxu0 0.0
        %1432 = vmatprep.subr.mxu0 0.0
        %1433 = vmatpush1.msra.mxu0 0.0
        %1434 = vmatprep.subr.mxu0 0.0
        %1435 = vmatpush1.msra.mxu0 0.0
        %1436 = vmatprep.subr.mxu0 0.0
        %1437 = vmatpush1.msra.mxu0 0.0
        %1438 = vmatprep.subr.mxu0 0.0
        %1439 = vmatpush1.msra.mxu0 0.0
        %1440 = vmatprep.subr.mxu0 0.0
        %1441 = vmatpush1.msra.mxu0 0.0
        %1442 = vmatprep.subr.mxu0 0.0
        %1443 = vmatpush1.msra.mxu0 0.0
        %1444 = vmatprep.subr.mxu0 0.0
        %1445 = vmatpush1.msra.mxu0 0.0
        %1446 = vmatprep.subr.mxu0 0.0
        %1447 = vmatpush1.msra.mxu0 0.0
        %1448 = vmatprep.subr.mxu0 0.0
        %1449 = vmatpush1.msra.mxu0 0.0
        %1450 = vmatprep.subr.mxu0 0.0
        %1451 = vmatpush1.msra.mxu0 0.0
        %1452 = vmatprep.subr.mxu0 0.0
        %1453 = vmatpush1.msra.mxu0 0.0
        %1454 = vmatprep.subr.mxu0 0.0
        %1455 = vmatpush1.msra.mxu0 %v1418
        %1456 = vmatprep.subr.mxu0 0.0
        %1457 = vmatpush1.msra.mxu0 %v1417
        %1458 = vmatprep.subr.mxu0 0.0
        %1459 = vmatpush1.msra.mxu0 %v1416
        %1460 = vmatprep.subr.mxu0 0.0
        %1461 = vmatpush1.msra.mxu0 %v1415
        %1462 = vmatprep.subr.mxu0 0.0
        %1463 = vmatpush2.msra.mxu0 0.0
        %1464 = vmatprep.subr.mxu0 0.0
        %1465 = vmatpush2.msra.mxu0 0.0
        %1466 = vmatprep.subr.mxu0 0.0
        %1467 = vmatpush2.msra.mxu0 0.0
        %1468 = vmatprep.subr.mxu0 0.0
        %1469 = vmatpush2.msra.mxu0 0.0
        %1470 = vmatprep.subr.mxu0 0.0
        %1471 = vmatpush2.msra.mxu0 0.0
        %1472 = vmatprep.subr.mxu0 0.0
        %1473 = vmatpush2.msra.mxu0 0.0
        %1474 = vmatprep.subr.mxu0 0.0
        %1475 = vmatpush2.msra.mxu0 0.0
        %1476 = vmatprep.subr.mxu0 0.0
        %1477 = vmatpush2.msra.mxu0 0.0
        %1478 = vmatprep.subr.mxu0 0.0
        %1479 = vmatpush2.msra.mxu0 0.0
        %1480 = vmatprep.subr.mxu0 0.0
        %1481 = vmatpush2.msra.mxu0 0.0
        %1482 = vmatprep.subr.mxu0 0.0
        %1483 = vmatpush2.msra.mxu0 0.0
        %1484 = vmatprep.subr.mxu0 0.0
        %1485 = vmatpush2.msra.mxu0 0.0
        %1486 = vmatprep.subr.mxu0 0.0
        %1487 = vmatpush2.msra.mxu0 0.0
        %1488 = vmatprep.subr.mxu0 0.0
        %1489 = vmatpush2.msra.mxu0 0.0
        %1490 = vmatprep.subr.mxu0 0.0
        %1491 = vmatpush2.msra.mxu0 0.0
        %1492 = vmatprep.subr.mxu0 0.0
        %1493 = vmatpush2.msra.mxu0 0.0
        %1494 = vmatprep.mubr.f32.mxu0 0.0
        %1495 = vmatmul.mubr.f32.gmra.mxu0 %v1428
        %v1496 = vpop.f32.mrf.mxu0
        %v1497 = vadd.f32 %v1424, %v1496
        %v1498 = vpop.f32.mrf.mxu0
        %1499 = vdwg.mxu0
        %v1500 = vmul.f32 %v1497, 0.35355338
        %1502 = vrot.lane.b32.xlu0 %v1497, 96
        %v1503 = vpop.permute.xlu0 %1502
        %vm1504 = vcmask 64512
        %v1506 = vsel %vm1504, %v1500, 0
        %v1508 = vsel %vm1504, %v1503, 0
        %1510 = vmatprep.subr.mxu0 0.0
        %1511 = vmatpush1.xpose.msra.mxu0 0.0
        %1512 = vmatprep.subr.mxu0 0.0
        %1513 = vmatpush1.xpose.msra.mxu0 0.0
        %1514 = vmatprep.subr.mxu0 0.0
        %1515 = vmatpush1.xpose.msra.mxu0 0.0
        %1516 = vmatprep.subr.mxu0 0.0
        %1517 = vmatpush1.xpose.msra.mxu0 0.0
        %1518 = vmatprep.subr.mxu0 0.0
        %1519 = vmatpush1.xpose.msra.mxu0 0.0
        %1520 = vmatprep.subr.mxu0 0.0
        %1521 = vmatpush1.xpose.msra.mxu0 0.0
        %1522 = vmatprep.subr.mxu0 0.0
        %1523 = vmatpush1.xpose.msra.mxu0 0.0
        %1524 = vmatprep.subr.mxu0 0.0
        %1525 = vmatpush1.xpose.msra.mxu0 0.0
        %1526 = vmatprep.subr.mxu0 0.0
        %1527 = vmatpush1.xpose.msra.mxu0 0.0
        %1528 = vmatprep.subr.mxu0 0.0
        %1529 = vmatpush1.xpose.msra.mxu0 0.0
        %1530 = vmatprep.subr.mxu0 0.0
        %1531 = vmatpush1.xpose.msra.mxu0 0.0
        %1532 = vmatprep.subr.mxu0 0.0
        %1533 = vmatpush1.xpose.msra.mxu0 0.0
        %1534 = vmatprep.subr.mxu0 0.0
        %1535 = vmatpush1.xpose.msra.mxu0 0.0
        %1536 = vmatprep.subr.mxu0 0.0
        %1537 = vmatpush1.xpose.msra.mxu0 0.0
        %1538 = vmatprep.subr.mxu0 0.0
        %1539 = vmatpush1.xpose.msra.mxu0 0.0
        %1540 = vmatprep.subr.mxu0 0.0
        %1541 = vmatpush1.xpose.msra.mxu0 %v1508
        %1542 = vmatprep.subr.mxu0 0.0
        %1543 = vmatpush2.xpose.msra.mxu0 0.0
        %1544 = vmatprep.subr.mxu0 0.0
        %1545 = vmatpush2.xpose.msra.mxu0 0.0
        %1546 = vmatprep.subr.mxu0 0.0
        %1547 = vmatpush2.xpose.msra.mxu0 0.0
        %1548 = vmatprep.subr.mxu0 0.0
        %1549 = vmatpush2.xpose.msra.mxu0 0.0
        %1550 = vmatprep.subr.mxu0 0.0
        %1551 = vmatpush2.xpose.msra.mxu0 0.0
        %1552 = vmatprep.subr.mxu0 0.0
        %1553 = vmatpush2.xpose.msra.mxu0 0.0
        %1554 = vmatprep.subr.mxu0 0.0
        %1555 = vmatpush2.xpose.msra.mxu0 0.0
        %1556 = vmatprep.subr.mxu0 0.0
        %1557 = vmatpush2.xpose.msra.mxu0 0.0
        %1558 = vmatprep.subr.mxu0 0.0
        %1559 = vmatpush2.xpose.msra.mxu0 0.0
        %1560 = vmatprep.subr.mxu0 0.0
        %1561 = vmatpush2.xpose.msra.mxu0 0.0
        %1562 = vmatprep.subr.mxu0 0.0
        %1563 = vmatpush2.xpose.msra.mxu0 0.0
        %1564 = vmatprep.subr.mxu0 0.0
        %1565 = vmatpush2.xpose.msra.mxu0 0.0
        %1566 = vmatprep.subr.mxu0 0.0
        %1567 = vmatpush2.xpose.msra.mxu0 0.0
        %1568 = vmatprep.subr.mxu0 0.0
        %1569 = vmatpush2.xpose.msra.mxu0 0.0
        %1570 = vmatprep.subr.mxu0 0.0
        %1571 = vmatpush2.xpose.msra.mxu0 0.0
        %1572 = vmatprep.subr.mxu0 0.0
        %1573 = vmatpush2.xpose.msra.mxu0 0.0
        %1574 = vmatprep.mubr.f32.mxu0 0.0
        %1575 = vmatmul.mubr.f32.gmra.mxu0 %v1506
        %v1576 = vpop.f32.mrf.mxu0
        %v1577 = vadd.f32 0.0, %v1576
        %v1578 = vpop.f32.mrf.mxu0
        %1579 = vdwg.mxu0
        %vm1580 = vcmask 36864
        %v1581 = vsel %vm1580, %v1577, -inf
        %1582 = vmax.xlane.f32.xlu0 %v1581
        %v1583 = vpop.xlane.xlu0 %1582
        %v1584 = vsub.f32 %v1577, %v1583
        %v1585 = vmul.f32 %v1584, 1.442695
        %v1586 = vpow.pop %v1585
        %v1587 = vsel %vm1580, %v1586, 0.0
        %1588 = vadd.xlane.f32.xlu0 %v1587
        %v1589 = vpop.xlane.xlu0 %1588
        %v1590 = vrcp.pop %v1589
        %v1591 = vmul.f32 %v1586, %v1590
        %1592 = vrot.lane.b32.xlu0 %v1497, 64
        %v1593 = vpop.permute.xlu0 %1592
        %vm1594 = vcmask 39936
        %v1596 = vsel %vm1594, %v1591, 0
        %vm1598 = vcmask 1044480
        %v1599 = vsel %vm1598, %v1593, 0
        %1601 = vmatprep.subr.mxu0 0.0
        %1602 = vmatpush1.msra.mxu0 0.0
        %1603 = vmatprep.subr.mxu0 0.0
        %1604 = vmatpush1.msra.mxu0 0.0
        %1605 = vmatprep.subr.mxu0 0.0
        %1606 = vmatpush1.msra.mxu0 0.0
        %1607 = vmatprep.subr.mxu0 0.0
        %1608 = vmatpush1.msra.mxu0 0.0
        %1609 = vmatprep.subr.mxu0 0.0
        %1610 = vmatpush1.msra.mxu0 0.0
        %1611 = vmatprep.subr.mxu0 0.0
        %1612 = vmatpush1.msra.mxu0 0.0
        %1613 = vmatprep.subr.mxu0 0.0
        %1614 = vmatpush1.msra.mxu0 0.0
        %1615 = vmatprep.subr.mxu0 0.0
        %1616 = vmatpush1.msra.mxu0 0.0
        %1617 = vmatprep.subr.mxu0 0.0
        %1618 = vmatpush1.msra.mxu0 0.0
        %1619 = vmatprep.subr.mxu0 0.0
        %1620 = vmatpush1.msra.mxu0 0.0
        %1621 = vmatprep.subr.mxu0 0.0
        %1622 = vmatpush1.msra.mxu0 0.0
        %1623 = vmatprep.subr.mxu0 0.0
        %1624 = vmatpush1.msra.mxu0 0.0
        %1625 = vmatprep.subr.mxu0 0.0
        %1626 = vmatpush1.msra.mxu0 0.0
        %1627 = vmatprep.subr.mxu0 0.0
        %1628 = vmatpush1.msra.mxu0 0.0
        %1629 = vmatprep.subr.mxu0 0.0
        %1630 = vmatpush1.msra.mxu0 0.0
        %1631 = vmatprep.subr.mxu0 0.0
        %1632 = vmatpush1.msra.mxu0 %v1599
        %1633 = vmatprep.subr.mxu0 0.0
        %1634 = vmatpush2.msra.mxu0 0.0
        %1635 = vmatprep.subr.mxu0 0.0
        %1636 = vmatpush2.msra.mxu0 0.0
        %1637 = vmatprep.subr.mxu0 0.0
        %1638 = vmatpush2.msra.mxu0 0.0
        %1639 = vmatprep.subr.mxu0 0.0
        %1640 = vmatpush2.msra.mxu0 0.0
        %1641 = vmatprep.subr.mxu0 0.0
        %1642 = vmatpush2.msra.mxu0 0.0
        %1643 = vmatprep.subr.mxu0 0.0
        %1644 = vmatpush2.msra.mxu0 0.0
        %1645 = vmatprep.subr.mxu0 0.0
        %1646 = vmatpush2.msra.mxu0 0.0
        %1647 = vmatprep.subr.mxu0 0.0
        %1648 = vmatpush2.msra.mxu0 0.0
        %1649 = vmatprep.subr.mxu0 0.0
        %1650 = vmatpush2.msra.mxu0 0.0
        %1651 = vmatprep.subr.mxu0 0.0
        %1652 = vmatpush2.msra.mxu0 0.0
        %1653 = vmatprep.subr.mxu0 0.0
        %1654 = vmatpush2.msra.mxu0 0.0
        %1655 = vmatprep.subr.mxu0 0.0
        %1656 = vmatpush2.msra.mxu0 0.0
        %1657 = vmatprep.subr.mxu0 0.0
        %1658 = vmatpush2.msra.mxu0 0.0
        %1659 = vmatprep.subr.mxu0 0.0
        %1660 = vmatpush2.msra.mxu0 0.0
        %1661 = vmatprep.subr.mxu0 0.0
        %1662 = vmatpush2.msra.mxu0 0.0
        %1663 = vmatprep.subr.mxu0 0.0
        %1664 = vmatpush2.msra.mxu0 0.0
        %1665 = vmatprep.mubr.f32.mxu0 0.0
        %1666 = vmatmul.mubr.f32.gmra.mxu0 %v1596
        %v1667 = vpop.f32.mrf.mxu0
        %v1668 = vadd.f32 0.0, %v1667
        %v1669 = vpop.f32.mrf.mxu0
        %1670 = vdwg.mxu0
        %v1671 = vld [vmem:[%s8] sm:$0xff]
        %1672 = vrot.lane.b32.xlu0 %v1500, 120
        %v1673 = vpop.permute.xlu0 %1672
        %1674 = vrot.lane.b32.xlu0 %v1497, 88
        %v1675 = vpop.permute.xlu0 %1674
        %v1676 = vsel %vm1504, %v1673, 0
        %v1678 = vsel %vm1504, %v1675, 0
        %1680 = vmatprep.subr.mxu0 0.0
        %1681 = vmatpush1.xpose.msra.mxu0 0.0
        %1682 = vmatprep.subr.mxu0 0.0
        %1683 = vmatpush1.xpose.msra.mxu0 0.0
        %1684 = vmatprep.subr.mxu0 0.0
        %1685 = vmatpush1.xpose.msra.mxu0 0.0
        %1686 = vmatprep.subr.mxu0 0.0
        %1687 = vmatpush1.xpose.msra.mxu0 0.0
        %1688 = vmatprep.subr.mxu0 0.0
        %1689 = vmatpush1.xpose.msra.mxu0 0.0
        %1690 = vmatprep.subr.mxu0 0.0
        %1691 = vmatpush1.xpose.msra.mxu0 0.0
        %1692 = vmatprep.subr.mxu0 0.0
        %1693 = vmatpush1.xpose.msra.mxu0 0.0
        %1694 = vmatprep.subr.mxu0 0.0
        %1695 = vmatpush1.xpose.msra.mxu0 0.0
        %1696 = vmatprep.subr.mxu0 0.0
        %1697 = vmatpush1.xpose.msra.mxu0 0.0
        %1698 = vmatprep.subr.mxu0 0.0
        %1699 = vmatpush1.xpose.msra.mxu0 0.0
        %1700 = vmatprep.subr.mxu0 0.0
        %1701 = vmatpush1.xpose.msra.mxu0 0.0
        %1702 = vmatprep.subr.mxu0 0.0
        %1703 = vmatpush1.xpose.msra.mxu0 0.0
        %1704 = vmatprep.subr.mxu0 0.0
        %1705 = vmatpush1.xpose.msra.mxu0 0.0
        %1706 = vmatprep.subr.mxu0 0.0
        %1707 = vmatpush1.xpose.msra.mxu0 0.0
        %1708 = vmatprep.subr.mxu0 0.0
        %1709 = vmatpush1.xpose.msra.mxu0 0.0
        %1710 = vmatprep.subr.mxu0 0.0
        %1711 = vmatpush1.xpose.msra.mxu0 %v1678
        %1712 = vmatprep.subr.mxu0 0.0
        %1713 = vmatpush2.xpose.msra.mxu0 0.0
        %1714 = vmatprep.subr.mxu0 0.0
        %1715 = vmatpush2.xpose.msra.mxu0 0.0
        %1716 = vmatprep.subr.mxu0 0.0
        %1717 = vmatpush2.xpose.msra.mxu0 0.0
        %1718 = vmatprep.subr.mxu0 0.0
        %1719 = vmatpush2.xpose.msra.mxu0 0.0
        %1720 = vmatprep.subr.mxu0 0.0
        %1721 = vmatpush2.xpose.msra.mxu0 0.0
        %1722 = vmatprep.subr.mxu0 0.0
        %1723 = vmatpush2.xpose.msra.mxu0 0.0
        %1724 = vmatprep.subr.mxu0 0.0
        %1725 = vmatpush2.xpose.msra.mxu0 0.0
        %1726 = vmatprep.subr.mxu0 0.0
        %1727 = vmatpush2.xpose.msra.mxu0 0.0
        %1728 = vmatprep.subr.mxu0 0.0
        %1729 = vmatpush2.xpose.msra.mxu0 0.0
        %1730 = vmatprep.subr.mxu0 0.0
        %1731 = vmatpush2.xpose.msra.mxu0 0.0
        %1732 = vmatprep.subr.mxu0 0.0
        %1733 = vmatpush2.xpose.msra.mxu0 0.0
        %1734 = vmatprep.subr.mxu0 0.0
        %1735 = vmatpush2.xpose.msra.mxu0 0.0
        %1736 = vmatprep.subr.mxu0 0.0
        %1737 = vmatpush2.xpose.msra.mxu0 0.0
        %1738 = vmatprep.subr.mxu0 0.0
        %1739 = vmatpush2.xpose.msra.mxu0 0.0
        %1740 = vmatprep.subr.mxu0 0.0
        %1741 = vmatpush2.xpose.msra.mxu0 0.0
        %1742 = vmatprep.subr.mxu0 0.0
        %1743 = vmatpush2.xpose.msra.mxu0 0.0
        %1744 = vmatprep.mubr.f32.mxu0 0.0
        %1745 = vmatmul.mubr.f32.gmra.mxu0 %v1676
        %v1746 = vpop.f32.mrf.mxu0
        %v1747 = vadd.f32 0.0, %v1746
        %v1748 = vpop.f32.mrf.mxu0
        %1749 = vdwg.mxu0
        %v1750 = vsel %vm1580, %v1747, -inf
        %1751 = vmax.xlane.f32.xlu0 %v1750
        %v1752 = vpop.xlane.xlu0 %1751
        %v1753 = vsub.f32 %v1747, %v1752
        %v1754 = vmul.f32 %v1753, 1.442695
        %v1755 = vpow.pop %v1754
        %v1756 = vsel %vm1580, %v1755, 0.0
        %1757 = vadd.xlane.f32.xlu0 %v1756
        %v1758 = vpop.xlane.xlu0 %1757
        %v1759 = vrcp.pop %v1758
        %v1760 = vmul.f32 %v1755, %v1759
        %1761 = vrot.lane.b32.xlu0 %v1497, 56
        %v1762 = vpop.permute.xlu0 %1761
        %v1764 = vsel %vm1594, %v1760, 0
        %v1766 = vsel %vm1598, %v1762, 0
        %1768 = vmatprep.subr.mxu0 0.0
        %1769 = vmatpush1.msra.mxu0 0.0
        %1770 = vmatprep.subr.mxu0 0.0
        %1771 = vmatpush1.msra.mxu0 0.0
        %1772 = vmatprep.subr.mxu0 0.0
        %1773 = vmatpush1.msra.mxu0 0.0
        %1774 = vmatprep.subr.mxu0 0.0
        %1775 = vmatpush1.msra.mxu0 0.0
        %1776 = vmatprep.subr.mxu0 0.0
        %1777 = vmatpush1.msra.mxu0 0.0
        %1778 = vmatprep.subr.mxu0 0.0
        %1779 = vmatpush1.msra.mxu0 0.0
        %1780 = vmatprep.subr.mxu0 0.0
        %1781 = vmatpush1.msra.mxu0 0.0
        %1782 = vmatprep.subr.mxu0 0.0
        %1783 = vmatpush1.msra.mxu0 0.0
        %1784 = vmatprep.subr.mxu0 0.0
        %1785 = vmatpush1.msra.mxu0 0.0
        %1786 = vmatprep.subr.mxu0 0.0
        %1787 = vmatpush1.msra.mxu0 0.0
        %1788 = vmatprep.subr.mxu0 0.0
        %1789 = vmatpush1.msra.mxu0 0.0
        %1790 = vmatprep.subr.mxu0 0.0
        %1791 = vmatpush1.msra.mxu0 0.0
        %1792 = vmatprep.subr.mxu0 0.0
        %1793 = vmatpush1.msra.mxu0 0.0
        %1794 = vmatprep.subr.mxu0 0.0
        %1795 = vmatpush1.msra.mxu0 0.0
        %1796 = vmatprep.subr.mxu0 0.0
        %1797 = vmatpush1.msra.mxu0 0.0
        %1798 = vmatprep.subr.mxu0 0.0
        %1799 = vmatpush1.msra.mxu0 %v1766
        %1800 = vmatprep.subr.mxu0 0.0
        %1801 = vmatpush2.msra.mxu0 0.0
        %1802 = vmatprep.subr.mxu0 0.0
        %1803 = vmatpush2.msra.mxu0 0.0
        %1804 = vmatprep.subr.mxu0 0.0
        %1805 = vmatpush2.msra.mxu0 0.0
        %1806 = vmatprep.subr.mxu0 0.0
        %1807 = vmatpush2.msra.mxu0 0.0
        %1808 = vmatprep.subr.mxu0 0.0
        %1809 = vmatpush2.msra.mxu0 0.0
        %1810 = vmatprep.subr.mxu0 0.0
        %1811 = vmatpush2.msra.mxu0 0.0
        %1812 = vmatprep.subr.mxu0 0.0
        %1813 = vmatpush2.msra.mxu0 0.0
        %1814 = vmatprep.subr.mxu0 0.0
        %1815 = vmatpush2.msra.mxu0 0.0
        %1816 = vmatprep.subr.mxu0 0.0
        %1817 = vmatpush2.msra.mxu0 0.0
        %1818 = vmatprep.subr.mxu0 0.0
        %1819 = vmatpush2.msra.mxu0 0.0
        %1820 = vmatprep.subr.mxu0 0.0
        %1821 = vmatpush2.msra.mxu0 0.0
        %1822 = vmatprep.subr.mxu0 0.0
        %1823 = vmatpush2.msra.mxu0 0.0
        %1824 = vmatprep.subr.mxu0 0.0
        %1825 = vmatpush2.msra.mxu0 0.0
        %1826 = vmatprep.subr.mxu0 0.0
        %1827 = vmatpush2.msra.mxu0 0.0
        %1828 = vmatprep.subr.mxu0 0.0
        %1829 = vmatpush2.msra.mxu0 0.0
        %1830 = vmatprep.subr.mxu0 0.0
        %1831 = vmatpush2.msra.mxu0 0.0
        %1832 = vmatprep.mubr.f32.mxu0 0.0
        %1833 = vmatmul.mubr.f32.gmra.mxu0 %v1764
        %v1834 = vpop.f32.mrf.mxu0
        %v1835 = vadd.f32 0.0, %v1834
        %v1836 = vpop.f32.mrf.mxu0
        %1837 = vdwg.mxu0
        %s1838 = scalar_lea.vmem %s8, 8
        %v1839 = vld [vmem:[%s1838] sm:$0xff]
        %v1841 = vsel %vm1504, %v1835, 0
        %1843 = vmatprep.subr.mxu0 0.0
        %1844 = vmatpush1.msra.mxu0 0.0
        %1845 = vmatprep.subr.mxu0 0.0
        %1846 = vmatpush1.msra.mxu0 0.0
        %1847 = vmatprep.subr.mxu0 0.0
        %1848 = vmatpush1.msra.mxu0 0.0
        %1849 = vmatprep.subr.mxu0 0.0
        %1850 = vmatpush1.msra.mxu0 0.0
        %1851 = vmatprep.subr.mxu0 0.0
        %1852 = vmatpush1.msra.mxu0 0.0
        %1853 = vmatprep.subr.mxu0 0.0
        %1854 = vmatpush1.msra.mxu0 0.0
        %1855 = vmatprep.subr.mxu0 0.0
        %1856 = vmatpush1.msra.mxu0 0.0
        %1857 = vmatprep.subr.mxu0 0.0
        %1858 = vmatpush1.msra.mxu0 0.0
        %1859 = vmatprep.subr.mxu0 0.0
        %1860 = vmatpush1.msra.mxu0 0.0
        %1861 = vmatprep.subr.mxu0 0.0
        %1862 = vmatpush1.msra.mxu0 0.0
        %1863 = vmatprep.subr.mxu0 0.0
        %1864 = vmatpush1.msra.mxu0 0.0
        %1865 = vmatprep.subr.mxu0 0.0
        %1866 = vmatpush1.msra.mxu0 0.0
        %1867 = vmatprep.subr.mxu0 0.0
        %1868 = vmatpush1.msra.mxu0 0.0
        %1869 = vmatprep.subr.mxu0 0.0
        %1870 = vmatpush1.msra.mxu0 0.0
        %1871 = vmatprep.subr.mxu0 0.0
        %1872 = vmatpush1.msra.mxu0 0.0
        %1873 = vmatprep.subr.mxu0 0.0
        %1874 = vmatpush1.msra.mxu0 %v1839
        %1875 = vmatprep.subr.mxu0 0.0
        %1876 = vmatpush2.msra.mxu0 0.0
        %1877 = vmatprep.subr.mxu0 0.0
        %1878 = vmatpush2.msra.mxu0 0.0
        %1879 = vmatprep.subr.mxu0 0.0
        %1880 = vmatpush2.msra.mxu0 0.0
        %1881 = vmatprep.subr.mxu0 0.0
        %1882 = vmatpush2.msra.mxu0 0.0
        %1883 = vmatprep.subr.mxu0 0.0
        %1884 = vmatpush2.msra.mxu0 0.0
        %1885 = vmatprep.subr.mxu0 0.0
        %1886 = vmatpush2.msra.mxu0 0.0
        %1887 = vmatprep.subr.mxu0 0.0
        %1888 = vmatpush2.msra.mxu0 0.0
        %1889 = vmatprep.subr.mxu0 0.0
        %1890 = vmatpush2.msra.mxu0 0.0
        %1891 = vmatprep.subr.mxu0 0.0
        %1892 = vmatpush2.msra.mxu0 0.0
        %1893 = vmatprep.subr.mxu0 0.0
        %1894 = vmatpush2.msra.mxu0 0.0
        %1895 = vmatprep.subr.mxu0 0.0
        %1896 = vmatpush2.msra.mxu0 0.0
        %1897 = vmatprep.subr.mxu0 0.0
        %1898 = vmatpush2.msra.mxu0 0.0
        %1899 = vmatprep.subr.mxu0 0.0
        %1900 = vmatpush2.msra.mxu0 0.0
        %1901 = vmatprep.subr.mxu0 0.0
        %1902 = vmatpush2.msra.mxu0 0.0
        %1903 = vmatprep.subr.mxu0 0.0
        %1904 = vmatpush2.msra.mxu0 0.0
        %1905 = vmatprep.subr.mxu0 0.0
        %1906 = vmatpush2.msra.mxu0 0.0
        %1907 = vmatprep.mubr.f32.mxu0 0.0
        %1908 = vmatmul.mubr.f32.gmra.mxu0 %v1841
        %v1909 = vpop.f32.mrf.mxu0
        %v1910 = vadd.f32 0.0, %v1909
        %v1911 = vpop.f32.mrf.mxu0
        %1912 = vdwg.mxu0
        %v1914 = vsel %vm1504, %v1668, 0
        %1916 = vmatprep.subr.mxu0 0.0
        %1917 = vmatpush1.msra.mxu0 0.0
        %1918 = vmatprep.subr.mxu0 0.0
        %1919 = vmatpush1.msra.mxu0 0.0
        %1920 = vmatprep.subr.mxu0 0.0
        %1921 = vmatpush1.msra.mxu0 0.0
        %1922 = vmatprep.subr.mxu0 0.0
        %1923 = vmatpush1.msra.mxu0 0.0
        %1924 = vmatprep.subr.mxu0 0.0
        %1925 = vmatpush1.msra.mxu0 0.0
        %1926 = vmatprep.subr.mxu0 0.0
        %1927 = vmatpush1.msra.mxu0 0.0
        %1928 = vmatprep.subr.mxu0 0.0
        %1929 = vmatpush1.msra.mxu0 0.0
        %1930 = vmatprep.subr.mxu0 0.0
        %1931 = vmatpush1.msra.mxu0 0.0
        %1932 = vmatprep.subr.mxu0 0.0
        %1933 = vmatpush1.msra.mxu0 0.0
        %1934 = vmatprep.subr.mxu0 0.0
        %1935 = vmatpush1.msra.mxu0 0.0
        %1936 = vmatprep.subr.mxu0 0.0
        %1937 = vmatpush1.msra.mxu0 0.0
        %1938 = vmatprep.subr.mxu0 0.0
        %1939 = vmatpush1.msra.mxu0 0.0
        %1940 = vmatprep.subr.mxu0 0.0
        %1941 = vmatpush1.msra.mxu0 0.0
        %1942 = vmatprep.subr.mxu0 0.0
        %1943 = vmatpush1.msra.mxu0 0.0
        %1944 = vmatprep.subr.mxu0 0.0
        %1945 = vmatpush1.msra.mxu0 0.0
        %1946 = vmatprep.subr.mxu0 0.0
        %1947 = vmatpush1.msra.mxu0 %v1671
        %1948 = vmatprep.subr.mxu0 0.0
        %1949 = vmatpush2.msra.mxu0 0.0
        %1950 = vmatprep.subr.mxu0 0.0
        %1951 = vmatpush2.msra.mxu0 0.0
        %1952 = vmatprep.subr.mxu0 0.0
        %1953 = vmatpush2.msra.mxu0 0.0
        %1954 = vmatprep.subr.mxu0 0.0
        %1955 = vmatpush2.msra.mxu0 0.0
        %1956 = vmatprep.subr.mxu0 0.0
        %1957 = vmatpush2.msra.mxu0 0.0
        %1958 = vmatprep.subr.mxu0 0.0
        %1959 = vmatpush2.msra.mxu0 0.0
        %1960 = vmatprep.subr.mxu0 0.0
        %1961 = vmatpush2.msra.mxu0 0.0
        %1962 = vmatprep.subr.mxu0 0.0
        %1963 = vmatpush2.msra.mxu0 0.0
        %1964 = vmatprep.subr.mxu0 0.0
        %1965 = vmatpush2.msra.mxu0 0.0
        %1966 = vmatprep.subr.mxu0 0.0
        %1967 = vmatpush2.msra.mxu0 0.0
        %1968 = vmatprep.subr.mxu0 0.0
        %1969 = vmatpush2.msra.mxu0 0.0
        %1970 = vmatprep.subr.mxu0 0.0
        %1971 = vmatpush2.msra.mxu0 0.0
        %1972 = vmatprep.subr.mxu0 0.0
        %1973 = vmatpush2.msra.mxu0 0.0
        %1974 = vmatprep.subr.mxu0 0.0
        %1975 = vmatpush2.msra.mxu0 0.0
        %1976 = vmatprep.subr.mxu0 0.0
        %1977 = vmatpush2.msra.mxu0 0.0
        %1978 = vmatprep.subr.mxu0 0.0
        %1979 = vmatpush2.msra.mxu0 0.0
        %1980 = vmatprep.mubr.f32.mxu0 0.0
        %1981 = vmatmul.mubr.f32.gmra.mxu0 %v1914
        %v1982 = vpop.f32.mrf.mxu0
        %v1983 = vadd.f32 %v1910, %v1982
        %v1984 = vpop.f32.mrf.mxu0
        %1985 = vdwg.mxu0
        %1986 = vrot.lane.b32.xlu0 %v1500, 112
        %v1987 = vpop.permute.xlu0 %1986
        %1988 = vrot.lane.b32.xlu0 %v1497, 80
        %v1989 = vpop.permute.xlu0 %1988
        %v1990 = vsel %vm1504, %v1987, 0
        %v1992 = vsel %vm1504, %v1989, 0
        %1994 = vmatprep.subr.mxu0 0.0
        %1995 = vmatpush1.xpose.msra.mxu0 0.0
        %1996 = vmatprep.subr.mxu0 0.0
        %1997 = vmatpush1.xpose.msra.mxu0 0.0
        %1998 = vmatprep.subr.mxu0 0.0
        %1999 = vmatpush1.xpose.msra.mxu0 0.0
        %2000 = vmatprep.subr.mxu0 0.0
        %2001 = vmatpush1.xpose.msra.mxu0 0.0
        %2002 = vmatprep.subr.mxu0 0.0
        %2003 = vmatpush1.xpose.msra.mxu0 0.0
        %2004 = vmatprep.subr.mxu0 0.0
        %2005 = vmatpush1.xpose.msra.mxu0 0.0
        %2006 = vmatprep.subr.mxu0 0.0
        %2007 = vmatpush1.xpose.msra.mxu0 0.0
        %2008 = vmatprep.subr.mxu0 0.0
        %2009 = vmatpush1.xpose.msra.mxu0 0.0
        %2010 = vmatprep.subr.mxu0 0.0
        %2011 = vmatpush1.xpose.msra.mxu0 0.0
        %2012 = vmatprep.subr.mxu0 0.0
        %2013 = vmatpush1.xpose.msra.mxu0 0.0
        %2014 = vmatprep.subr.mxu0 0.0
        %2015 = vmatpush1.xpose.msra.mxu0 0.0
        %2016 = vmatprep.subr.mxu0 0.0
        %2017 = vmatpush1.xpose.msra.mxu0 0.0
        %2018 = vmatprep.subr.mxu0 0.0
        %2019 = vmatpush1.xpose.msra.mxu0 0.0
        %2020 = vmatprep.subr.mxu0 0.0
        %2021 = vmatpush1.xpose.msra.mxu0 0.0
        %2022 = vmatprep.subr.mxu0 0.0
        %2023 = vmatpush1.xpose.msra.mxu0 0.0
        %2024 = vmatprep.subr.mxu0 0.0
        %2025 = vmatpush1.xpose.msra.mxu0 %v1992
        %2026 = vmatprep.subr.mxu0 0.0
        %2027 = vmatpush2.xpose.msra.mxu0 0.0
        %2028 = vmatprep.subr.mxu0 0.0
        %2029 = vmatpush2.xpose.msra.mxu0 0.0
        %2030 = vmatprep.subr.mxu0 0.0
        %2031 = vmatpush2.xpose.msra.mxu0 0.0
        %2032 = vmatprep.subr.mxu0 0.0
        %2033 = vmatpush2.xpose.msra.mxu0 0.0
        %2034 = vmatprep.subr.mxu0 0.0
        %2035 = vmatpush2.xpose.msra.mxu0 0.0
        %2036 = vmatprep.subr.mxu0 0.0
        %2037 = vmatpush2.xpose.msra.mxu0 0.0
        %2038 = vmatprep.subr.mxu0 0.0
        %2039 = vmatpush2.xpose.msra.mxu0 0.0
        %2040 = vmatprep.subr.mxu0 0.0
        %2041 = vmatpush2.xpose.msra.mxu0 0.0
        %2042 = vmatprep.subr.mxu0 0.0
        %2043 = vmatpush2.xpose.msra.mxu0 0.0
        %2044 = vmatprep.subr.mxu0 0.0
        %2045 = vmatpush2.xpose.msra.mxu0 0.0
        %2046 = vmatprep.subr.mxu0 0.0
        %2047 = vmatpush2.xpose.msra.mxu0 0.0
        %2048 = vmatprep.subr.mxu0 0.0
        %2049 = vmatpush2.xpose.msra.mxu0 0.0
        %2050 = vmatprep.subr.mxu0 0.0
        %2051 = vmatpush2.xpose.msra.mxu0 0.0
        %2052 = vmatprep.subr.mxu0 0.0
        %2053 = vmatpush2.xpose.msra.mxu0 0.0
        %2054 = vmatprep.subr.mxu0 0.0
        %2055 = vmatpush2.xpose.msra.mxu0 0.0
        %2056 = vmatprep.subr.mxu0 0.0
        %2057 = vmatpush2.xpose.msra.mxu0 0.0
        %2058 = vmatprep.mubr.f32.mxu0 0.0
        %2059 = vmatmul.mubr.f32.gmra.mxu0 %v1990
        %v2060 = vpop.f32.mrf.mxu0
        %v2061 = vadd.f32 0.0, %v2060
        %v2062 = vpop.f32.mrf.mxu0
        %2063 = vdwg.mxu0
        %v2064 = vsel %vm1580, %v2061, -inf
        %2065 = vmax.xlane.f32.xlu0 %v2064
        %v2066 = vpop.xlane.xlu0 %2065
        %v2067 = vsub.f32 %v2061, %v2066
        %v2068 = vmul.f32 %v2067, 1.442695
        %v2069 = vpow.pop %v2068
        %v2070 = vsel %vm1580, %v2069, 0.0
        %2071 = vadd.xlane.f32.xlu0 %v2070
        %v2072 = vpop.xlane.xlu0 %2071
        %v2073 = vrcp.pop %v2072
        %v2074 = vmul.f32 %v2069, %v2073
        %2075 = vrot.lane.b32.xlu0 %v1497, 48
        %v2076 = vpop.permute.xlu0 %2075
        %v2078 = vsel %vm1594, %v2074, 0
        %v2080 = vsel %vm1598, %v2076, 0
        %2082 = vmatprep.subr.mxu0 0.0
        %2083 = vmatpush1.msra.mxu0 0.0
        %2084 = vmatprep.subr.mxu0 0.0
        %2085 = vmatpush1.msra.mxu0 0.0
        %2086 = vmatprep.subr.mxu0 0.0
        %2087 = vmatpush1.msra.mxu0 0.0
        %2088 = vmatprep.subr.mxu0 0.0
        %2089 = vmatpush1.msra.mxu0 0.0
        %2090 = vmatprep.subr.mxu0 0.0
        %2091 = vmatpush1.msra.mxu0 0.0
        %2092 = vmatprep.subr.mxu0 0.0
        %2093 = vmatpush1.msra.mxu0 0.0
        %2094 = vmatprep.subr.mxu0 0.0
        %2095 = vmatpush1.msra.mxu0 0.0
        %2096 = vmatprep.subr.mxu0 0.0
        %2097 = vmatpush1.msra.mxu0 0.0
        %2098 = vmatprep.subr.mxu0 0.0
        %2099 = vmatpush1.msra.mxu0 0.0
        %2100 = vmatprep.subr.mxu0 0.0
        %2101 = vmatpush1.msra.mxu0 0.0
        %2102 = vmatprep.subr.mxu0 0.0
        %2103 = vmatpush1.msra.mxu0 0.0
        %2104 = vmatprep.subr.mxu0 0.0
        %2105 = vmatpush1.msra.mxu0 0.0
        %2106 = vmatprep.subr.mxu0 0.0
        %2107 = vmatpush1.msra.mxu0 0.0
        %2108 = vmatprep.subr.mxu0 0.0
        %2109 = vmatpush1.msra.mxu0 0.0
        %2110 = vmatprep.subr.mxu0 0.0
        %2111 = vmatpush1.msra.mxu0 0.0
        %2112 = vmatprep.subr.mxu0 0.0
        %2113 = vmatpush1.msra.mxu0 %v2080
        %2114 = vmatprep.subr.mxu0 0.0
        %2115 = vmatpush2.msra.mxu0 0.0
        %2116 = vmatprep.subr.mxu0 0.0
        %2117 = vmatpush2.msra.mxu0 0.0
        %2118 = vmatprep.subr.mxu0 0.0
        %2119 = vmatpush2.msra.mxu0 0.0
        %2120 = vmatprep.subr.mxu0 0.0
        %2121 = vmatpush2.msra.mxu0 0.0
        %2122 = vmatprep.subr.mxu0 0.0
        %2123 = vmatpush2.msra.mxu0 0.0
        %2124 = vmatprep.subr.mxu0 0.0
        %2125 = vmatpush2.msra.mxu0 0.0
        %2126 = vmatprep.subr.mxu0 0.0
        %2127 = vmatpush2.msra.mxu0 0.0
        %2128 = vmatprep.subr.mxu0 0.0
        %2129 = vmatpush2.msra.mxu0 0.0
        %2130 = vmatprep.subr.mxu0 0.0
        %2131 = vmatpush2.msra.mxu0 0.0
        %2132 = vmatprep.subr.mxu0 0.0
        %2133 = vmatpush2.msra.mxu0 0.0
        %2134 = vmatprep.subr.mxu0 0.0
        %2135 = vmatpush2.msra.mxu0 0.0
        %2136 = vmatprep.subr.mxu0 0.0
        %2137 = vmatpush2.msra.mxu0 0.0
        %2138 = vmatprep.subr.mxu0 0.0
        %2139 = vmatpush2.msra.mxu0 0.0
        %2140 = vmatprep.subr.mxu0 0.0
        %2141 = vmatpush2.msra.mxu0 0.0
        %2142 = vmatprep.subr.mxu0 0.0
        %2143 = vmatpush2.msra.mxu0 0.0
        %2144 = vmatprep.subr.mxu0 0.0
        %2145 = vmatpush2.msra.mxu0 0.0
        %2146 = vmatprep.mubr.f32.mxu0 0.0
        %2147 = vmatmul.mubr.f32.gmra.mxu0 %v2078
        %v2148 = vpop.f32.mrf.mxu0
        %v2149 = vadd.f32 0.0, %v2148
        %v2150 = vpop.f32.mrf.mxu0
        %2151 = vdwg.mxu0
        %s2152 = scalar_lea.vmem %s8, 16
        %v2153 = vld [vmem:[%s2152] sm:$0xff]
        %v2155 = vsel %vm1504, %v2149, 0
        %2157 = vmatprep.subr.mxu0 0.0
        %2158 = vmatpush1.msra.mxu0 0.0
        %2159 = vmatprep.subr.mxu0 0.0
        %2160 = vmatpush1.msra.mxu0 0.0
        %2161 = vmatprep.subr.mxu0 0.0
        %2162 = vmatpush1.msra.mxu0 0.0
        %2163 = vmatprep.subr.mxu0 0.0
        %2164 = vmatpush1.msra.mxu0 0.0
        %2165 = vmatprep.subr.mxu0 0.0
        %2166 = vmatpush1.msra.mxu0 0.0
        %2167 = vmatprep.subr.mxu0 0.0
        %2168 = vmatpush1.msra.mxu0 0.0
        %2169 = vmatprep.subr.mxu0 0.0
        %2170 = vmatpush1.msra.mxu0 0.0
        %2171 = vmatprep.subr.mxu0 0.0
        %2172 = vmatpush1.msra.mxu0 0.0
        %2173 = vmatprep.subr.mxu0 0.0
        %2174 = vmatpush1.msra.mxu0 0.0
        %2175 = vmatprep.subr.mxu0 0.0
        %2176 = vmatpush1.msra.mxu0 0.0
        %2177 = vmatprep.subr.mxu0 0.0
        %2178 = vmatpush1.msra.mxu0 0.0
        %2179 = vmatprep.subr.mxu0 0.0
        %2180 = vmatpush1.msra.mxu0 0.0
        %2181 = vmatprep.subr.mxu0 0.0
        %2182 = vmatpush1.msra.mxu0 0.0
        %2183 = vmatprep.subr.mxu0 0.0
        %2184 = vmatpush1.msra.mxu0 0.0
        %2185 = vmatprep.subr.mxu0 0.0
        %2186 = vmatpush1.msra.mxu0 0.0
        %2187 = vmatprep.subr.mxu0 0.0
        %2188 = vmatpush1.msra.mxu0 %v2153
        %2189 = vmatprep.subr.mxu0 0.0
        %2190 = vmatpush2.msra.mxu0 0.0
        %2191 = vmatprep.subr.mxu0 0.0
        %2192 = vmatpush2.msra.mxu0 0.0
        %2193 = vmatprep.subr.mxu0 0.0
        %2194 = vmatpush2.msra.mxu0 0.0
        %2195 = vmatprep.subr.mxu0 0.0
        %2196 = vmatpush2.msra.mxu0 0.0
        %2197 = vmatprep.subr.mxu0 0.0
        %2198 = vmatpush2.msra.mxu0 0.0
        %2199 = vmatprep.subr.mxu0 0.0
        %2200 = vmatpush2.msra.mxu0 0.0
        %2201 = vmatprep.subr.mxu0 0.0
        %2202 = vmatpush2.msra.mxu0 0.0
        %2203 = vmatprep.subr.mxu0 0.0
        %2204 = vmatpush2.msra.mxu0 0.0
        %2205 = vmatprep.subr.mxu0 0.0
        %2206 = vmatpush2.msra.mxu0 0.0
        %2207 = vmatprep.subr.mxu0 0.0
        %2208 = vmatpush2.msra.mxu0 0.0
        %2209 = vmatprep.subr.mxu0 0.0
        %2210 = vmatpush2.msra.mxu0 0.0
        %2211 = vmatprep.subr.mxu0 0.0
        %2212 = vmatpush2.msra.mxu0 0.0
        %2213 = vmatprep.subr.mxu0 0.0
        %2214 = vmatpush2.msra.mxu0 0.0
        %2215 = vmatprep.subr.mxu0 0.0
        %2216 = vmatpush2.msra.mxu0 0.0
        %2217 = vmatprep.subr.mxu0 0.0
        %2218 = vmatpush2.msra.mxu0 0.0
        %2219 = vmatprep.subr.mxu0 0.0
        %2220 = vmatpush2.msra.mxu0 0.0
        %2221 = vmatprep.mubr.f32.mxu0 0.0
        %2222 = vmatmul.mubr.f32.gmra.mxu0 %v2155
        %v2223 = vpop.f32.mrf.mxu0
        %v2224 = vadd.f32 0.0, %v2223
        %v2225 = vpop.f32.mrf.mxu0
        %2226 = vdwg.mxu0
        %v2227 = vadd.f32 %v1983, %v2224
        %2228 = vrot.lane.b32.xlu0 %v1500, 104
        %v2229 = vpop.permute.xlu0 %2228
        %2230 = vrot.lane.b32.xlu0 %v1497, 72
        %v2231 = vpop.permute.xlu0 %2230
        %v2232 = vsel %vm1504, %v2229, 0
        %v2234 = vsel %vm1504, %v2231, 0
        %2236 = vmatprep.subr.mxu0 0.0
        %2237 = vmatpush1.xpose.msra.mxu0 0.0
        %2238 = vmatprep.subr.mxu0 0.0
        %2239 = vmatpush1.xpose.msra.mxu0 0.0
        %2240 = vmatprep.subr.mxu0 0.0
        %2241 = vmatpush1.xpose.msra.mxu0 0.0
        %2242 = vmatprep.subr.mxu0 0.0
        %2243 = vmatpush1.xpose.msra.mxu0 0.0
        %2244 = vmatprep.subr.mxu0 0.0
        %2245 = vmatpush1.xpose.msra.mxu0 0.0
        %2246 = vmatprep.subr.mxu0 0.0
        %2247 = vmatpush1.xpose.msra.mxu0 0.0
        %2248 = vmatprep.subr.mxu0 0.0
        %2249 = vmatpush1.xpose.msra.mxu0 0.0
        %2250 = vmatprep.subr.mxu0 0.0
        %2251 = vmatpush1.xpose.msra.mxu0 0.0
        %2252 = vmatprep.subr.mxu0 0.0
        %2253 = vmatpush1.xpose.msra.mxu0 0.0
        %2254 = vmatprep.subr.mxu0 0.0
        %2255 = vmatpush1.xpose.msra.mxu0 0.0
        %2256 = vmatprep.subr.mxu0 0.0
        %2257 = vmatpush1.xpose.msra.mxu0 0.0
        %2258 = vmatprep.subr.mxu0 0.0
        %2259 = vmatpush1.xpose.msra.mxu0 0.0
        %2260 = vmatprep.subr.mxu0 0.0
        %2261 = vmatpush1.xpose.msra.mxu0 0.0
        %2262 = vmatprep.subr.mxu0 0.0
        %2263 = vmatpush1.xpose.msra.mxu0 0.0
        %2264 = vmatprep.subr.mxu0 0.0
        %2265 = vmatpush1.xpose.msra.mxu0 0.0
        %2266 = vmatprep.subr.mxu0 0.0
        %2267 = vmatpush1.xpose.msra.mxu0 %v2234
        %2268 = vmatprep.subr.mxu0 0.0
        %2269 = vmatpush2.xpose.msra.mxu0 0.0
        %2270 = vmatprep.subr.mxu0 0.0
        %2271 = vmatpush2.xpose.msra.mxu0 0.0
        %2272 = vmatprep.subr.mxu0 0.0
        %2273 = vmatpush2.xpose.msra.mxu0 0.0
        %2274 = vmatprep.subr.mxu0 0.0
        %2275 = vmatpush2.xpose.msra.mxu0 0.0
        %2276 = vmatprep.subr.mxu0 0.0
        %2277 = vmatpush2.xpose.msra.mxu0 0.0
        %2278 = vmatprep.subr.mxu0 0.0
        %2279 = vmatpush2.xpose.msra.mxu0 0.0
        %2280 = vmatprep.subr.mxu0 0.0
        %2281 = vmatpush2.xpose.msra.mxu0 0.0
        %2282 = vmatprep.subr.mxu0 0.0
        %2283 = vmatpush2.xpose.msra.mxu0 0.0
        %2284 = vmatprep.subr.mxu0 0.0
        %2285 = vmatpush2.xpose.msra.mxu0 0.0
        %2286 = vmatprep.subr.mxu0 0.0
        %2287 = vmatpush2.xpose.msra.mxu0 0.0
        %2288 = vmatprep.subr.mxu0 0.0
        %2289 = vmatpush2.xpose.msra.mxu0 0.0
        %2290 = vmatprep.subr.mxu0 0.0
        %2291 = vmatpush2.xpose.msra.mxu0 0.0
        %2292 = vmatprep.subr.mxu0 0.0
        %2293 = vmatpush2.xpose.msra.mxu0 0.0
        %2294 = vmatprep.subr.mxu0 0.0
        %2295 = vmatpush2.xpose.msra.mxu0 0.0
        %2296 = vmatprep.subr.mxu0 0.0
        %2297 = vmatpush2.xpose.msra.mxu0 0.0
        %2298 = vmatprep.subr.mxu0 0.0
        %2299 = vmatpush2.xpose.msra.mxu0 0.0
        %2300 = vmatprep.mubr.f32.mxu0 0.0
        %2301 = vmatmul.mubr.f32.gmra.mxu0 %v2232
        %v2302 = vpop.f32.mrf.mxu0
        %v2303 = vadd.f32 0.0, %v2302
        %v2304 = vpop.f32.mrf.mxu0
        %2305 = vdwg.mxu0
        %v2306 = vsel %vm1580, %v2303, -inf
        %2307 = vmax.xlane.f32.xlu0 %v2306
        %v2308 = vpop.xlane.xlu0 %2307
        %v2309 = vsub.f32 %v2303, %v2308
        %v2310 = vmul.f32 %v2309, 1.442695
        %v2311 = vpow.pop %v2310
        %v2312 = vsel %vm1580, %v2311, 0.0
        %2313 = vadd.xlane.f32.xlu0 %v2312
        %v2314 = vpop.xlane.xlu0 %2313
        %v2315 = vrcp.pop %v2314
        %v2316 = vmul.f32 %v2311, %v2315
        %2317 = vrot.lane.b32.xlu0 %v1497, 40
        %v2318 = vpop.permute.xlu0 %2317
        %v2320 = vsel %vm1594, %v2316, 0
        %v2322 = vsel %vm1598, %v2318, 0
        %2324 = vmatprep.subr.mxu0 0.0
        %2325 = vmatpush1.msra.mxu0 0.0
        %2326 = vmatprep.subr.mxu0 0.0
        %2327 = vmatpush1.msra.mxu0 0.0
        %2328 = vmatprep.subr.mxu0 0.0
        %2329 = vmatpush1.msra.mxu0 0.0
        %2330 = vmatprep.subr.mxu0 0.0
        %2331 = vmatpush1.msra.mxu0 0.0
        %2332 = vmatprep.subr.mxu0 0.0
        %2333 = vmatpush1.msra.mxu0 0.0
        %2334 = vmatprep.subr.mxu0 0.0
        %2335 = vmatpush1.msra.mxu0 0.0
        %2336 = vmatprep.subr.mxu0 0.0
        %2337 = vmatpush1.msra.mxu0 0.0
        %2338 = vmatprep.subr.mxu0 0.0
        %2339 = vmatpush1.msra.mxu0 0.0
        %2340 = vmatprep.subr.mxu0 0.0
        %2341 = vmatpush1.msra.mxu0 0.0
        %2342 = vmatprep.subr.mxu0 0.0
        %2343 = vmatpush1.msra.mxu0 0.0
        %2344 = vmatprep.subr.mxu0 0.0
        %2345 = vmatpush1.msra.mxu0 0.0
        %2346 = vmatprep.subr.mxu0 0.0
        %2347 = vmatpush1.msra.mxu0 0.0
        %2348 = vmatprep.subr.mxu0 0.0
        %2349 = vmatpush1.msra.mxu0 0.0
        %2350 = vmatprep.subr.mxu0 0.0
        %2351 = vmatpush1.msra.mxu0 0.0
        %2352 = vmatprep.subr.mxu0 0.0
        %2353 = vmatpush1.msra.mxu0 0.0
        %2354 = vmatprep.subr.mxu0 0.0
        %2355 = vmatpush1.msra.mxu0 %v2322
        %2356 = vmatprep.subr.mxu0 0.0
        %2357 = vmatpush2.msra.mxu0 0.0
        %2358 = vmatprep.subr.mxu0 0.0
        %2359 = vmatpush2.msra.mxu0 0.0
        %2360 = vmatprep.subr.mxu0 0.0
        %2361 = vmatpush2.msra.mxu0 0.0
        %2362 = vmatprep.subr.mxu0 0.0
        %2363 = vmatpush2.msra.mxu0 0.0
        %2364 = vmatprep.subr.mxu0 0.0
        %2365 = vmatpush2.msra.mxu0 0.0
        %2366 = vmatprep.subr.mxu0 0.0
        %2367 = vmatpush2.msra.mxu0 0.0
        %2368 = vmatprep.subr.mxu0 0.0
        %2369 = vmatpush2.msra.mxu0 0.0
        %2370 = vmatprep.subr.mxu0 0.0
        %2371 = vmatpush2.msra.mxu0 0.0
        %2372 = vmatprep.subr.mxu0 0.0
        %2373 = vmatpush2.msra.mxu0 0.0
        %2374 = vmatprep.subr.mxu0 0.0
        %2375 = vmatpush2.msra.mxu0 0.0
        %2376 = vmatprep.subr.mxu0 0.0
        %2377 = vmatpush2.msra.mxu0 0.0
        %2378 = vmatprep.subr.mxu0 0.0
        %2379 = vmatpush2.msra.mxu0 0.0
        %2380 = vmatprep.subr.mxu0 0.0
        %2381 = vmatpush2.msra.mxu0 0.0
        %2382 = vmatprep.subr.mxu0 0.0
        %2383 = vmatpush2.msra.mxu0 0.0
        %2384 = vmatprep.subr.mxu0 0.0
        %2385 = vmatpush2.msra.mxu0 0.0
        %2386 = vmatprep.subr.mxu0 0.0
        %2387 = vmatpush2.msra.mxu0 0.0
        %2388 = vmatprep.mubr.f32.mxu0 0.0
        %2389 = vmatmul.mubr.f32.gmra.mxu0 %v2320
        %v2390 = vpop.f32.mrf.mxu0
        %v2391 = vadd.f32 0.0, %v2390
        %v2392 = vpop.f32.mrf.mxu0
        %2393 = vdwg.mxu0
        %s2394 = scalar_lea.vmem %s8, 24
        %v2395 = vld [vmem:[%s2394] sm:$0xff]
        %v2397 = vsel %vm1504, %v2391, 0
        %2399 = vmatprep.subr.mxu0 0.0
        %2400 = vmatpush1.msra.mxu0 0.0
        %2401 = vmatprep.subr.mxu0 0.0
        %2402 = vmatpush1.msra.mxu0 0.0
        %2403 = vmatprep.subr.mxu0 0.0
        %2404 = vmatpush1.msra.mxu0 0.0
        %2405 = vmatprep.subr.mxu0 0.0
        %2406 = vmatpush1.msra.mxu0 0.0
        %2407 = vmatprep.subr.mxu0 0.0
        %2408 = vmatpush1.msra.mxu0 0.0
        %2409 = vmatprep.subr.mxu0 0.0
        %2410 = vmatpush1.msra.mxu0 0.0
        %2411 = vmatprep.subr.mxu0 0.0
        %2412 = vmatpush1.msra.mxu0 0.0
        %2413 = vmatprep.subr.mxu0 0.0
        %2414 = vmatpush1.msra.mxu0 0.0
        %2415 = vmatprep.subr.mxu0 0.0
        %2416 = vmatpush1.msra.mxu0 0.0
        %2417 = vmatprep.subr.mxu0 0.0
        %2418 = vmatpush1.msra.mxu0 0.0
        %2419 = vmatprep.subr.mxu0 0.0
        %2420 = vmatpush1.msra.mxu0 0.0
        %2421 = vmatprep.subr.mxu0 0.0
        %2422 = vmatpush1.msra.mxu0 0.0
        %2423 = vmatprep.subr.mxu0 0.0
        %2424 = vmatpush1.msra.mxu0 0.0
        %2425 = vmatprep.subr.mxu0 0.0
        %2426 = vmatpush1.msra.mxu0 0.0
        %2427 = vmatprep.subr.mxu0 0.0
        %2428 = vmatpush1.msra.mxu0 0.0
        %2429 = vmatprep.subr.mxu0 0.0
        %2430 = vmatpush1.msra.mxu0 %v2395
        %2431 = vmatprep.subr.mxu0 0.0
        %2432 = vmatpush2.msra.mxu0 0.0
        %2433 = vmatprep.subr.mxu0 0.0
        %2434 = vmatpush2.msra.mxu0 0.0
        %2435 = vmatprep.subr.mxu0 0.0
        %2436 = vmatpush2.msra.mxu0 0.0
        %2437 = vmatprep.subr.mxu0 0.0
        %2438 = vmatpush2.msra.mxu0 0.0
        %2439 = vmatprep.subr.mxu0 0.0
        %2440 = vmatpush2.msra.mxu0 0.0
        %2441 = vmatprep.subr.mxu0 0.0
        %2442 = vmatpush2.msra.mxu0 0.0
        %2443 = vmatprep.subr.mxu0 0.0
        %2444 = vmatpush2.msra.mxu0 0.0
        %2445 = vmatprep.subr.mxu0 0.0
        %2446 = vmatpush2.msra.mxu0 0.0
        %2447 = vmatprep.subr.mxu0 0.0
        %2448 = vmatpush2.msra.mxu0 0.0
        %2449 = vmatprep.subr.mxu0 0.0
        %2450 = vmatpush2.msra.mxu0 0.0
        %2451 = vmatprep.subr.mxu0 0.0
        %2452 = vmatpush2.msra.mxu0 0.0
        %2453 = vmatprep.subr.mxu0 0.0
        %2454 = vmatpush2.msra.mxu0 0.0
        %2455 = vmatprep.subr.mxu0 0.0
        %2456 = vmatpush2.msra.mxu0 0.0
        %2457 = vmatprep.subr.mxu0 0.0
        %2458 = vmatpush2.msra.mxu0 0.0
        %2459 = vmatprep.subr.mxu0 0.0
        %2460 = vmatpush2.msra.mxu0 0.0
        %2461 = vmatprep.subr.mxu0 0.0
        %2462 = vmatpush2.msra.mxu0 0.0
        %2463 = vmatprep.mubr.f32.mxu0 0.0
        %2464 = vmatmul.mubr.f32.gmra.mxu0 %v2397
        %v2465 = vpop.f32.mrf.mxu0
        %v2466 = vadd.f32 0.0, %v2465
        %v2467 = vpop.f32.mrf.mxu0
        %2468 = vdwg.mxu0
        %v2469 = vadd.f32 %v2227, %v2466
        %v2470 = vadd.f32 %v1381, %v2469
        %v2471 = vld [vmem:[%s9] sm:$0x1]
        %v2473 = vlaneseq
        %v2474 = vshrl.u32 %v2473, 7
        %v2475 = vsub.s32 0, %v2474
        %v2476 = vrot.slane %v2471, %v2475
        %v2478 = vadd.f32 %v2470, %v2476
        %v2479 = vld [vmem:[%s10] sm:$0x1]
        %v2480 = vld [vmem:[%s11] sm:$0x1]
        %v2481 = vsel %vm1386, %v2478, 0.0
        %2482 = vadd.xlane.f32.xlu0 %v2481
        %v2483 = vpop.xlane.xlu0 %2482
        %v2484 = vmul.f32 %v2483, %v1390
        %v2485 = vsub.f32 %v2478, %v2484
        %v2486 = vmul.f32 %v2485, %v2485
        %v2487 = vsel %vm1386, %v2486, 0.0
        %2488 = vadd.xlane.f32.xlu0 %v2487
        %v2489 = vpop.xlane.xlu0 %2488
        %v2490 = vmul.f32 %v2489, %v1390
        %v2491 = vadd.f32 %v2490, 1e-06
        %v2492 = vrsqrt.pop %v2491
        %v2493 = vmul.f32 %v2485, %v2492
        %v2495 = vlaneseq
        %v2496 = vshrl.u32 %v2495, 7
        %v2497 = vsub.s32 0, %v2496
        %v2498 = vrot.slane %v2479, %v2497
        %v2500 = vmul.f32 %v2493, %v2498
        %v2502 = vlaneseq
        %v2503 = vshrl.u32 %v2502, 7
        %v2504 = vsub.s32 0, %v2503
        %v2505 = vrot.slane %v2480, %v2504
        %v2507 = vadd.f32 %v2500, %v2505
        %v2508 = vld [vmem:[%s12] sm:$0xff]
        %v2509 = vld [vmem:[%s12 + $0x8] sm:$0xff]
        %v2510 = vld [vmem:[%s12 + $0x10] sm:$0xff]
        %v2511 = vld [vmem:[%s12 + $0x18] sm:$0xff]
        %v2512 = vld [vmem:[%s13] sm:$0x1]
        %v2514 = vlaneseq
        %v2515 = vshrl.u32 %v2514, 7
        %v2516 = vsub.s32 0, %v2515
        %v2517 = vrot.slane %v2512, %v2516
        %v2520 = vsel %vm1426, %v2507, 0
        %2522 = vmatprep.subr.mxu0 0.0
        %2523 = vmatpush1.msra.mxu0 0.0
        %2524 = vmatprep.subr.mxu0 0.0
        %2525 = vmatpush1.msra.mxu0 0.0
        %2526 = vmatprep.subr.mxu0 0.0
        %2527 = vmatpush1.msra.mxu0 0.0
        %2528 = vmatprep.subr.mxu0 0.0
        %2529 = vmatpush1.msra.mxu0 0.0
        %2530 = vmatprep.subr.mxu0 0.0
        %2531 = vmatpush1.msra.mxu0 0.0
        %2532 = vmatprep.subr.mxu0 0.0
        %2533 = vmatpush1.msra.mxu0 0.0
        %2534 = vmatprep.subr.mxu0 0.0
        %2535 = vmatpush1.msra.mxu0 0.0
        %2536 = vmatprep.subr.mxu0 0.0
        %2537 = vmatpush1.msra.mxu0 0.0
        %2538 = vmatprep.subr.mxu0 0.0
        %2539 = vmatpush1.msra.mxu0 0.0
        %2540 = vmatprep.subr.mxu0 0.0
        %2541 = vmatpush1.msra.mxu0 0.0
        %2542 = vmatprep.subr.mxu0 0.0
        %2543 = vmatpush1.msra.mxu0 0.0
        %2544 = vmatprep.subr.mxu0 0.0
        %2545 = vmatpush1.msra.mxu0 0.0
        %2546 = vmatprep.subr.mxu0 0.0
        %2547 = vmatpush1.msra.mxu0 %v2511
        %2548 = vmatprep.subr.mxu0 0.0
        %2549 = vmatpush1.msra.mxu0 %v2510
        %2550 = vmatprep.subr.mxu0 0.0
        %2551 = vmatpush1.msra.mxu0 %v2509
        %2552 = vmatprep.subr.mxu0 0.0
        %2553 = vmatpush1.msra.mxu0 %v2508
        %2554 = vmatprep.subr.mxu0 0.0
        %2555 = vmatpush2.msra.mxu0 0.0
        %2556 = vmatprep.subr.mxu0 0.0
        %2557 = vmatpush2.msra.mxu0 0.0
        %2558 = vmatprep.subr.mxu0 0.0
        %2559 = vmatpush2.msra.mxu0 0.0
        %2560 = vmatprep.subr.mxu0 0.0
        %2561 = vmatpush2.msra.mxu0 0.0
        %2562 = vmatprep.subr.mxu0 0.0
        %2563 = vmatpush2.msra.mxu0 0.0
        %2564 = vmatprep.subr.mxu0 0.0
        %2565 = vmatpush2.msra.mxu0 0.0
        %2566 = vmatprep.subr.mxu0 0.0
        %2567 = vmatpush2.msra.mxu0 0.0
        %2568 = vmatprep.subr.mxu0 0.0
        %2569 = vmatpush2.msra.mxu0 0.0
        %2570 = vmatprep.subr.mxu0 0.0
        %2571 = vmatpush2.msra.mxu0 0.0
        %2572 = vmatprep.subr.mxu0 0.0
        %2573 = vmatpush2.msra.mxu0 0.0
        %2574 = vmatprep.subr.mxu0 0.0
        %2575 = vmatpush2.msra.mxu0 0.0
        %2576 = vmatprep.subr.mxu0 0.0
        %2577 = vmatpush2.msra.mxu0 0.0
        %2578 = vmatprep.subr.mxu0 0.0
        %2579 = vmatpush2.msra.mxu0 0.0
        %2580 = vmatprep.subr.mxu0 0.0
        %2581 = vmatpush2.msra.mxu0 0.0
        %2582 = vmatprep.subr.mxu0 0.0
        %2583 = vmatpush2.msra.mxu0 0.0
        %2584 = vmatprep.subr.mxu0 0.0
        %2585 = vmatpush2.msra.mxu0 0.0
        %2586 = vmatprep.mubr.f32.mxu0 0.0
        %2587 = vmatmul.mubr.f32.gmra.mxu0 %v2520
        %v2588 = vpop.f32.mrf.mxu0
        %v2589 = vadd.f32 %v2517, %v2588
        %v2590 = vpop.f32.mrf.mxu0
        %2591 = vdwg.mxu0
        %v2592 = vmul.f32 %v2589, 0.5
        %v2593 = vmul.f32 %v2589, 0.70710677
        %v2594 = vand.u32 2147483647, %v2593
        %v2595 = vmul.f32 %v2594, 0.3275911
        %v2596 = vadd.f32 %v2595, 1.0
        %v2597 = vrcp.pop %v2596
        %v2598 = vmul.f32 1.0, %v2597
        %v2599 = vmul.f32 %v2598, 1.0614054
        %v2600 = vadd.f32 %v2599, -1.4531521
        %v2601 = vmul.f32 %v2600, %v2598
        %v2602 = vadd.f32 %v2601, 1.4214138
        %v2603 = vmul.f32 %v2602, %v2598
        %v2604 = vadd.f32 %v2603, -0.28449672
        %v2605 = vmul.f32 %v2604, %v2598
        %v2606 = vadd.f32 %v2605, 0.2548296
        %v2607 = vmul.f32 %v2606, %v2598
        %v2608 = vsub.f32 0.0, %v2594
        %v2609 = vmul.f32 %v2608, %v2594
        %v2610 = vmul.f32 %v2609, 1.442695
        %v2611 = vpow.pop %v2610
        %v2612 = vmul.f32 %v2607, %v2611
        %v2613 = vsub.f32 1.0, %v2612
        %vm2614 = vcmp.ge.f32.partialorder %v2593, 0.0
        %v2615 = vsub.f32 0.0, %v2613
        %v2616 = vsel %vm2614, %v2613, %v2615
        %v2617 = vadd.f32 %v2616, 1.0
        %v2618 = vmul.f32 %v2592, %v2617
        %v2619 = vld [vmem:[%s14] sm:$0xff]
        %v2620 = vld [vmem:[%s14 + $0x8] sm:$0xff]
        %v2621 = vld [vmem:[%s14 + $0x10] sm:$0xff]
        %v2622 = vld [vmem:[%s14 + $0x18] sm:$0xff]
        %v2623 = vld [vmem:[%s14 + $0x20] sm:$0xff]
        %v2624 = vld [vmem:[%s14 + $0x28] sm:$0xff]
        %v2625 = vld [vmem:[%s14 + $0x30] sm:$0xff]
        %v2626 = vld [vmem:[%s14 + $0x38] sm:$0xff]
        %vm2627 = vcmask 523264
        %v2629 = vsel %vm2627, %v2618, 0
        %2631 = vmatprep.subr.mxu0 0.0
        %2632 = vmatpush1.msra.mxu0 0.0
        %2633 = vmatprep.subr.mxu0 0.0
        %2634 = vmatpush1.msra.mxu0 0.0
        %2635 = vmatprep.subr.mxu0 0.0
        %2636 = vmatpush1.msra.mxu0 0.0
        %2637 = vmatprep.subr.mxu0 0.0
        %2638 = vmatpush1.msra.mxu0 0.0
        %2639 = vmatprep.subr.mxu0 0.0
        %2640 = vmatpush1.msra.mxu0 0.0
        %2641 = vmatprep.subr.mxu0 0.0
        %2642 = vmatpush1.msra.mxu0 0.0
        %2643 = vmatprep.subr.mxu0 0.0
        %2644 = vmatpush1.msra.mxu0 0.0
        %2645 = vmatprep.subr.mxu0 0.0
        %2646 = vmatpush1.msra.mxu0 0.0
        %2647 = vmatprep.subr.mxu0 0.0
        %2648 = vmatpush1.msra.mxu0 %v2626
        %2649 = vmatprep.subr.mxu0 0.0
        %2650 = vmatpush1.msra.mxu0 %v2625
        %2651 = vmatprep.subr.mxu0 0.0
        %2652 = vmatpush1.msra.mxu0 %v2624
        %2653 = vmatprep.subr.mxu0 0.0
        %2654 = vmatpush1.msra.mxu0 %v2623
        %2655 = vmatprep.subr.mxu0 0.0
        %2656 = vmatpush1.msra.mxu0 %v2622
        %2657 = vmatprep.subr.mxu0 0.0
        %2658 = vmatpush1.msra.mxu0 %v2621
        %2659 = vmatprep.subr.mxu0 0.0
        %2660 = vmatpush1.msra.mxu0 %v2620
        %2661 = vmatprep.subr.mxu0 0.0
        %2662 = vmatpush1.msra.mxu0 %v2619
        %2663 = vmatprep.subr.mxu0 0.0
        %2664 = vmatpush2.msra.mxu0 0.0
        %2665 = vmatprep.subr.mxu0 0.0
        %2666 = vmatpush2.msra.mxu0 0.0
        %2667 = vmatprep.subr.mxu0 0.0
        %2668 = vmatpush2.msra.mxu0 0.0
        %2669 = vmatprep.subr.mxu0 0.0
        %2670 = vmatpush2.msra.mxu0 0.0
        %2671 = vmatprep.subr.mxu0 0.0
        %2672 = vmatpush2.msra.mxu0 0.0
        %2673 = vmatprep.subr.mxu0 0.0
        %2674 = vmatpush2.msra.mxu0 0.0
        %2675 = vmatprep.subr.mxu0 0.0
        %2676 = vmatpush2.msra.mxu0 0.0
        %2677 = vmatprep.subr.mxu0 0.0
        %2678 = vmatpush2.msra.mxu0 0.0
        %2679 = vmatprep.subr.mxu0 0.0
        %2680 = vmatpush2.msra.mxu0 0.0
        %2681 = vmatprep.subr.mxu0 0.0
        %2682 = vmatpush2.msra.mxu0 0.0
        %2683 = vmatprep.subr.mxu0 0.0
        %2684 = vmatpush2.msra.mxu0 0.0
        %2685 = vmatprep.subr.mxu0 0.0
        %2686 = vmatpush2.msra.mxu0 0.0
        %2687 = vmatprep.subr.mxu0 0.0
        %2688 = vmatpush2.msra.mxu0 0.0
        %2689 = vmatprep.subr.mxu0 0.0
        %2690 = vmatpush2.msra.mxu0 0.0
        %2691 = vmatprep.subr.mxu0 0.0
        %2692 = vmatpush2.msra.mxu0 0.0
        %2693 = vmatprep.subr.mxu0 0.0
        %2694 = vmatpush2.msra.mxu0 0.0
        %2695 = vmatprep.mubr.f32.mxu0 0.0
        %2696 = vmatmul.mubr.f32.gmra.mxu0 %v2629
        %v2697 = vpop.f32.mrf.mxu0
        %v2698 = vadd.f32 0.0, %v2697
        %v2699 = vpop.f32.mrf.mxu0
        %2700 = vdwg.mxu0
        %v2701 = vadd.f32 %v2478, %v2698
        %v2702 = vld [vmem:[%s15] sm:$0x1]
        %v2704 = vlaneseq
        %v2705 = vshrl.u32 %v2704, 7
        %v2706 = vsub.s32 0, %v2705
        %v2707 = vrot.slane %v2702, %v2706
        %v2709 = vadd.f32 %v2701, %v2707
        %s2710 = scalar_lea.vmem %s4, 1
        %v2711 = vld [vmem:[%s2710] sm:$0x1]
        %s2712 = scalar_lea.vmem %s5, 1
        %v2713 = vld [vmem:[%s2712] sm:$0x1]
        %v2714 = vsel %vm1386, %v2709, 0.0
        %2715 = vadd.xlane.f32.xlu0 %v2714
        %v2716 = vpop.xlane.xlu0 %2715
        %v2717 = vmul.f32 %v2716, %v1390
        %v2718 = vsub.f32 %v2709, %v2717
        %v2719 = vmul.f32 %v2718, %v2718
        %v2720 = vsel %vm1386, %v2719, 0.0
        %2721 = vadd.xlane.f32.xlu0 %v2720
        %v2722 = vpop.xlane.xlu0 %2721
        %v2723 = vmul.f32 %v2722, %v1390
        %v2724 = vadd.f32 %v2723, 1e-06
        %v2725 = vrsqrt.pop %v2724
        %v2726 = vmul.f32 %v2718, %v2725
        %v2728 = vlaneseq
        %v2729 = vshrl.u32 %v2728, 7
        %v2730 = vsub.s32 0, %v2729
        %v2731 = vrot.slane %v2711, %v2730
        %v2733 = vmul.f32 %v2726, %v2731
        %v2735 = vlaneseq
        %v2736 = vshrl.u32 %v2735, 7
        %v2737 = vsub.s32 0, %v2736
        %v2738 = vrot.slane %v2713, %v2737
        %v2740 = vadd.f32 %v2733, %v2738
        %s2741 = scalar_lea.vmem %s6, 32
        %v2742 = vld [vmem:[%s2741] sm:$0xff]
        %v2743 = vld [vmem:[%s2741 + $0x8] sm:$0xff]
        %v2744 = vld [vmem:[%s2741 + $0x10] sm:$0xff]
        %v2745 = vld [vmem:[%s2741 + $0x18] sm:$0xff]
        %s2746 = scalar_lea.vmem %s7, 1
        %v2747 = vld [vmem:[%s2746] sm:$0x1]
        %v2749 = vlaneseq
        %v2750 = vshrl.u32 %v2749, 7
        %v2751 = vsub.s32 0, %v2750
        %v2752 = vrot.slane %v2747, %v2751
        %v2755 = vsel %vm1426, %v2740, 0
        %2757 = vmatprep.subr.mxu0 0.0
        %2758 = vmatpush1.msra.mxu0 0.0
        %2759 = vmatprep.subr.mxu0 0.0
        %2760 = vmatpush1.msra.mxu0 0.0
        %2761 = vmatprep.subr.mxu0 0.0
        %2762 = vmatpush1.msra.mxu0 0.0
        %2763 = vmatprep.subr.mxu0 0.0
        %2764 = vmatpush1.msra.mxu0 0.0
        %2765 = vmatprep.subr.mxu0 0.0
        %2766 = vmatpush1.msra.mxu0 0.0
        %2767 = vmatprep.subr.mxu0 0.0
        %2768 = vmatpush1.msra.mxu0 0.0
        %2769 = vmatprep.subr.mxu0 0.0
        %2770 = vmatpush1.msra.mxu0 0.0
        %2771 = vmatprep.subr.mxu0 0.0
        %2772 = vmatpush1.msra.mxu0 0.0
        %2773 = vmatprep.subr.mxu0 0.0
        %2774 = vmatpush1.msra.mxu0 0.0
        %2775 = vmatprep.subr.mxu0 0.0
        %2776 = vmatpush1.msra.mxu0 0.0
        %2777 = vmatprep.subr.mxu0 0.0
        %2778 = vmatpush1.msra.mxu0 0.0
        %2779 = vmatprep.subr.mxu0 0.0
        %2780 = vmatpush1.msra.mxu0 0.0
        %2781 = vmatprep.subr.mxu0 0.0
        %2782 = vmatpush1.msra.mxu0 %v2745
        %2783 = vmatprep.subr.mxu0 0.0
        %2784 = vmatpush1.msra.mxu0 %v2744
        %2785 = vmatprep.subr.mxu0 0.0
        %2786 = vmatpush1.msra.mxu0 %v2743
        %2787 = vmatprep.subr.mxu0 0.0
        %2788 = vmatpush1.msra.mxu0 %v2742
        %2789 = vmatprep.subr.mxu0 0.0
        %2790 = vmatpush2.msra.mxu0 0.0
        %2791 = vmatprep.subr.mxu0 0.0
        %2792 = vmatpush2.msra.mxu0 0.0
        %2793 = vmatprep.subr.mxu0 0.0
        %2794 = vmatpush2.msra.mxu0 0.0
        %2795 = vmatprep.subr.mxu0 0.0
        %2796 = vmatpush2.msra.mxu0 0.0
        %2797 = vmatprep.subr.mxu0 0.0
        %2798 = vmatpush2.msra.mxu0 0.0
        %2799 = vmatprep.subr.mxu0 0.0
        %2800 = vmatpush2.msra.mxu0 0.0
        %2801 = vmatprep.subr.mxu0 0.0
        %2802 = vmatpush2.msra.mxu0 0.0
        %2803 = vmatprep.subr.mxu0 0.0
        %2804 = vmatpush2.msra.mxu0 0.0
        %2805 = vmatprep.subr.mxu0 0.0
        %2806 = vmatpush2.msra.mxu0 0.0
        %2807 = vmatprep.subr.mxu0 0.0
        %2808 = vmatpush2.msra.mxu0 0.0
        %2809 = vmatprep.subr.mxu0 0.0
        %2810 = vmatpush2.msra.mxu0 0.0
        %2811 = vmatprep.subr.mxu0 0.0
        %2812 = vmatpush2.msra.mxu0 0.0
        %2813 = vmatprep.subr.mxu0 0.0
        %2814 = vmatpush2.msra.mxu0 0.0
        %2815 = vmatprep.subr.mxu0 0.0
        %2816 = vmatpush2.msra.mxu0 0.0
        %2817 = vmatprep.subr.mxu0 0.0
        %2818 = vmatpush2.msra.mxu0 0.0
        %2819 = vmatprep.subr.mxu0 0.0
        %2820 = vmatpush2.msra.mxu0 0.0
        %2821 = vmatprep.mubr.f32.mxu0 0.0
        %2822 = vmatmul.mubr.f32.gmra.mxu0 %v2755
        %v2823 = vpop.f32.mrf.mxu0
        %v2824 = vadd.f32 %v2752, %v2823
        %v2825 = vpop.f32.mrf.mxu0
        %2826 = vdwg.mxu0
        %v2827 = vmul.f32 %v2824, 0.35355338
        %2829 = vrot.lane.b32.xlu0 %v2824, 96
        %v2830 = vpop.permute.xlu0 %2829
        %v2832 = vsel %vm1504, %v2827, 0
        %v2834 = vsel %vm1504, %v2830, 0
        %2836 = vmatprep.subr.mxu0 0.0
        %2837 = vmatpush1.xpose.msra.mxu0 0.0
        %2838 = vmatprep.subr.mxu0 0.0
        %2839 = vmatpush1.xpose.msra.mxu0 0.0
        %2840 = vmatprep.subr.mxu0 0.0
        %2841 = vmatpush1.xpose.msra.mxu0 0.0
        %2842 = vmatprep.subr.mxu0 0.0
        %2843 = vmatpush1.xpose.msra.mxu0 0.0
        %2844 = vmatprep.subr.mxu0 0.0
        %2845 = vmatpush1.xpose.msra.mxu0 0.0
        %2846 = vmatprep.subr.mxu0 0.0
        %2847 = vmatpush1.xpose.msra.mxu0 0.0
        %2848 = vmatprep.subr.mxu0 0.0
        %2849 = vmatpush1.xpose.msra.mxu0 0.0
        %2850 = vmatprep.subr.mxu0 0.0
        %2851 = vmatpush1.xpose.msra.mxu0 0.0
        %2852 = vmatprep.subr.mxu0 0.0
        %2853 = vmatpush1.xpose.msra.mxu0 0.0
        %2854 = vmatprep.subr.mxu0 0.0
        %2855 = vmatpush1.xpose.msra.mxu0 0.0
        %2856 = vmatprep.subr.mxu0 0.0
        %2857 = vmatpush1.xpose.msra.mxu0 0.0
        %2858 = vmatprep.subr.mxu0 0.0
        %2859 = vmatpush1.xpose.msra.mxu0 0.0
        %2860 = vmatprep.subr.mxu0 0.0
        %2861 = vmatpush1.xpose.msra.mxu0 0.0
        %2862 = vmatprep.subr.mxu0 0.0
        %2863 = vmatpush1.xpose.msra.mxu0 0.0
        %2864 = vmatprep.subr.mxu0 0.0
        %2865 = vmatpush1.xpose.msra.mxu0 0.0
        %2866 = vmatprep.subr.mxu0 0.0
        %2867 = vmatpush1.xpose.msra.mxu0 %v2834
        %2868 = vmatprep.subr.mxu0 0.0
        %2869 = vmatpush2.xpose.msra.mxu0 0.0
        %2870 = vmatprep.subr.mxu0 0.0
        %2871 = vmatpush2.xpose.msra.mxu0 0.0
        %2872 = vmatprep.subr.mxu0 0.0
        %2873 = vmatpush2.xpose.msra.mxu0 0.0
        %2874 = vmatprep.subr.mxu0 0.0
        %2875 = vmatpush2.xpose.msra.mxu0 0.0
        %2876 = vmatprep.subr.mxu0 0.0
        %2877 = vmatpush2.xpose.msra.mxu0 0.0
        %2878 = vmatprep.subr.mxu0 0.0
        %2879 = vmatpush2.xpose.msra.mxu0 0.0
        %2880 = vmatprep.subr.mxu0 0.0
        %2881 = vmatpush2.xpose.msra.mxu0 0.0
        %2882 = vmatprep.subr.mxu0 0.0
        %2883 = vmatpush2.xpose.msra.mxu0 0.0
        %2884 = vmatprep.subr.mxu0 0.0
        %2885 = vmatpush2.xpose.msra.mxu0 0.0
        %2886 = vmatprep.subr.mxu0 0.0
        %2887 = vmatpush2.xpose.msra.mxu0 0.0
        %2888 = vmatprep.subr.mxu0 0.0
        %2889 = vmatpush2.xpose.msra.mxu0 0.0
        %2890 = vmatprep.subr.mxu0 0.0
        %2891 = vmatpush2.xpose.msra.mxu0 0.0
        %2892 = vmatprep.subr.mxu0 0.0
        %2893 = vmatpush2.xpose.msra.mxu0 0.0
        %2894 = vmatprep.subr.mxu0 0.0
        %2895 = vmatpush2.xpose.msra.mxu0 0.0
        %2896 = vmatprep.subr.mxu0 0.0
        %2897 = vmatpush2.xpose.msra.mxu0 0.0
        %2898 = vmatprep.subr.mxu0 0.0
        %2899 = vmatpush2.xpose.msra.mxu0 0.0
        %2900 = vmatprep.mubr.f32.mxu0 0.0
        %2901 = vmatmul.mubr.f32.gmra.mxu0 %v2832
        %v2902 = vpop.f32.mrf.mxu0
        %v2903 = vadd.f32 0.0, %v2902
        %v2904 = vpop.f32.mrf.mxu0
        %2905 = vdwg.mxu0
        %v2906 = vsel %vm1580, %v2903, -inf
        %2907 = vmax.xlane.f32.xlu0 %v2906
        %v2908 = vpop.xlane.xlu0 %2907
        %v2909 = vsub.f32 %v2903, %v2908
        %v2910 = vmul.f32 %v2909, 1.442695
        %v2911 = vpow.pop %v2910
        %v2912 = vsel %vm1580, %v2911, 0.0
        %2913 = vadd.xlane.f32.xlu0 %v2912
        %v2914 = vpop.xlane.xlu0 %2913
        %v2915 = vrcp.pop %v2914
        %v2916 = vmul.f32 %v2911, %v2915
        %2917 = vrot.lane.b32.xlu0 %v2824, 64
        %v2918 = vpop.permute.xlu0 %2917
        %v2920 = vsel %vm1594, %v2916, 0
        %v2922 = vsel %vm1598, %v2918, 0
        %2924 = vmatprep.subr.mxu0 0.0
        %2925 = vmatpush1.msra.mxu0 0.0
        %2926 = vmatprep.subr.mxu0 0.0
        %2927 = vmatpush1.msra.mxu0 0.0
        %2928 = vmatprep.subr.mxu0 0.0
        %2929 = vmatpush1.msra.mxu0 0.0
        %2930 = vmatprep.subr.mxu0 0.0
        %2931 = vmatpush1.msra.mxu0 0.0
        %2932 = vmatprep.subr.mxu0 0.0
        %2933 = vmatpush1.msra.mxu0 0.0
        %2934 = vmatprep.subr.mxu0 0.0
        %2935 = vmatpush1.msra.mxu0 0.0
        %2936 = vmatprep.subr.mxu0 0.0
        %2937 = vmatpush1.msra.mxu0 0.0
        %2938 = vmatprep.subr.mxu0 0.0
        %2939 = vmatpush1.msra.mxu0 0.0
        %2940 = vmatprep.subr.mxu0 0.0
        %2941 = vmatpush1.msra.mxu0 0.0
        %2942 = vmatprep.subr.mxu0 0.0
        %2943 = vmatpush1.msra.mxu0 0.0
        %2944 = vmatprep.subr.mxu0 0.0
        %2945 = vmatpush1.msra.mxu0 0.0
        %2946 = vmatprep.subr.mxu0 0.0
        %2947 = vmatpush1.msra.mxu0 0.0
        %2948 = vmatprep.subr.mxu0 0.0
        %2949 = vmatpush1.msra.mxu0 0.0
        %2950 = vmatprep.subr.mxu0 0.0
        %2951 = vmatpush1.msra.mxu0 0.0
        %2952 = vmatprep.subr.mxu0 0.0
        %2953 = vmatpush1.msra.mxu0 0.0
        %2954 = vmatprep.subr.mxu0 0.0
        %2955 = vmatpush1.msra.mxu0 %v2922
        %2956 = vmatprep.subr.mxu0 0.0
        %2957 = vmatpush2.msra.mxu0 0.0
        %2958 = vmatprep.subr.mxu0 0.0
        %2959 = vmatpush2.msra.mxu0 0.0
        %2960 = vmatprep.subr.mxu0 0.0
        %2961 = vmatpush2.msra.mxu0 0.0
        %2962 = vmatprep.subr.mxu0 0.0
        %2963 = vmatpush2.msra.mxu0 0.0
        %2964 = vmatprep.subr.mxu0 0.0
        %2965 = vmatpush2.msra.mxu0 0.0
        %2966 = vmatprep.subr.mxu0 0.0
        %2967 = vmatpush2.msra.mxu0 0.0
        %2968 = vmatprep.subr.mxu0 0.0
        %2969 = vmatpush2.msra.mxu0 0.0
        %2970 = vmatprep.subr.mxu0 0.0
        %2971 = vmatpush2.msra.mxu0 0.0
        %2972 = vmatprep.subr.mxu0 0.0
        %2973 = vmatpush2.msra.mxu0 0.0
        %2974 = vmatprep.subr.mxu0 0.0
        %2975 = vmatpush2.msra.mxu0 0.0
        %2976 = vmatprep.subr.mxu0 0.0
        %2977 = vmatpush2.msra.mxu0 0.0
        %2978 = vmatprep.subr.mxu0 0.0
        %2979 = vmatpush2.msra.mxu0 0.0
        %2980 = vmatprep.subr.mxu0 0.0
        %2981 = vmatpush2.msra.mxu0 0.0
        %2982 = vmatprep.subr.mxu0 0.0
        %2983 = vmatpush2.msra.mxu0 0.0
        %2984 = vmatprep.subr.mxu0 0.0
        %2985 = vmatpush2.msra.mxu0 0.0
        %2986 = vmatprep.subr.mxu0 0.0
        %2987 = vmatpush2.msra.mxu0 0.0
        %2988 = vmatprep.mubr.f32.mxu0 0.0
        %2989 = vmatmul.mubr.f32.gmra.mxu0 %v2920
        %v2990 = vpop.f32.mrf.mxu0
        %v2991 = vadd.f32 0.0, %v2990
        %v2992 = vpop.f32.mrf.mxu0
        %2993 = vdwg.mxu0
        %s2994 = scalar_lea.vmem %s8, 32
        %v2995 = vld [vmem:[%s2994] sm:$0xff]
        %2996 = vrot.lane.b32.xlu0 %v2827, 120
        %v2997 = vpop.permute.xlu0 %2996
        %2998 = vrot.lane.b32.xlu0 %v2824, 88
        %v2999 = vpop.permute.xlu0 %2998
        %v3000 = vsel %vm1504, %v2997, 0
        %v3002 = vsel %vm1504, %v2999, 0
        %3004 = vmatprep.subr.mxu0 0.0
        %3005 = vmatpush1.xpose.msra.mxu0 0.0
        %3006 = vmatprep.subr.mxu0 0.0
        %3007 = vmatpush1.xpose.msra.mxu0 0.0
        %3008 = vmatprep.subr.mxu0 0.0
        %3009 = vmatpush1.xpose.msra.mxu0 0.0
        %3010 = vmatprep.subr.mxu0 0.0
        %3011 = vmatpush1.xpose.msra.mxu0 0.0
        %3012 = vmatprep.subr.mxu0 0.0
        %3013 = vmatpush1.xpose.msra.mxu0 0.0
        %3014 = vmatprep.subr.mxu0 0.0
        %3015 = vmatpush1.xpose.msra.mxu0 0.0
        %3016 = vmatprep.subr.mxu0 0.0
        %3017 = vmatpush1.xpose.msra.mxu0 0.0
        %3018 = vmatprep.subr.mxu0 0.0
        %3019 = vmatpush1.xpose.msra.mxu0 0.0
        %3020 = vmatprep.subr.mxu0 0.0
        %3021 = vmatpush1.xpose.msra.mxu0 0.0
        %3022 = vmatprep.subr.mxu0 0.0
        %3023 = vmatpush1.xpose.msra.mxu0 0.0
        %3024 = vmatprep.subr.mxu0 0.0
        %3025 = vmatpush1.xpose.msra.mxu0 0.0
        %3026 = vmatprep.subr.mxu0 0.0
        %3027 = vmatpush1.xpose.msra.mxu0 0.0
        %3028 = vmatprep.subr.mxu0 0.0
        %3029 = vmatpush1.xpose.msra.mxu0 0.0
        %3030 = vmatprep.subr.mxu0 0.0
        %3031 = vmatpush1.xpose.msra.mxu0 0.0
        %3032 = vmatprep.subr.mxu0 0.0
        %3033 = vmatpush1.xpose.msra.mxu0 0.0
        %3034 = vmatprep.subr.mxu0 0.0
        %3035 = vmatpush1.xpose.msra.mxu0 %v3002
        %3036 = vmatprep.subr.mxu0 0.0
        %3037 = vmatpush2.xpose.msra.mxu0 0.0
        %3038 = vmatprep.subr.mxu0 0.0
        %3039 = vmatpush2.xpose.msra.mxu0 0.0
        %3040 = vmatprep.subr.mxu0 0.0
        %3041 = vmatpush2.xpose.msra.mxu0 0.0
        %3042 = vmatprep.subr.mxu0 0.0
        %3043 = vmatpush2.xpose.msra.mxu0 0.0
        %3044 = vmatprep.subr.mxu0 0.0
        %3045 = vmatpush2.xpose.msra.mxu0 0.0
        %3046 = vmatprep.subr.mxu0 0.0
        %3047 = vmatpush2.xpose.msra.mxu0 0.0
        %3048 = vmatprep.subr.mxu0 0.0
        %3049 = vmatpush2.xpose.msra.mxu0 0.0
        %3050 = vmatprep.subr.mxu0 0.0
        %3051 = vmatpush2.xpose.msra.mxu0 0.0
        %3052 = vmatprep.subr.mxu0 0.0
        %3053 = vmatpush2.xpose.msra.mxu0 0.0
        %3054 = vmatprep.subr.mxu0 0.0
        %3055 = vmatpush2.xpose.msra.mxu0 0.0
        %3056 = vmatprep.subr.mxu0 0.0
        %3057 = vmatpush2.xpose.msra.mxu0 0.0
        %3058 = vmatprep.subr.mxu0 0.0
        %3059 = vmatpush2.xpose.msra.mxu0 0.0
        %3060 = vmatprep.subr.mxu0 0.0
        %3061 = vmatpush2.xpose.msra.mxu0 0.0
        %3062 = vmatprep.subr.mxu0 0.0
        %3063 = vmatpush2.xpose.msra.mxu0 0.0
        %3064 = vmatprep.subr.mxu0 0.0
        %3065 = vmatpush2.xpose.msra.mxu0 0.0
        %3066 = vmatprep.subr.mxu0 0.0
        %3067 = vmatpush2.xpose.msra.mxu0 0.0
        %3068 = vmatprep.mubr.f32.mxu0 0.0
        %3069 = vmatmul.mubr.f32.gmra.mxu0 %v3000
        %v3070 = vpop.f32.mrf.mxu0
        %v3071 = vadd.f32 0.0, %v3070
        %v3072 = vpop.f32.mrf.mxu0
        %3073 = vdwg.mxu0
        %v3074 = vsel %vm1580, %v3071, -inf
        %3075 = vmax.xlane.f32.xlu0 %v3074
        %v3076 = vpop.xlane.xlu0 %3075
        %v3077 = vsub.f32 %v3071, %v3076
        %v3078 = vmul.f32 %v3077, 1.442695
        %v3079 = vpow.pop %v3078
        %v3080 = vsel %vm1580, %v3079, 0.0
        %3081 = vadd.xlane.f32.xlu0 %v3080
        %v3082 = vpop.xlane.xlu0 %3081
        %v3083 = vrcp.pop %v3082
        %v3084 = vmul.f32 %v3079, %v3083
        %3085 = vrot.lane.b32.xlu0 %v2824, 56
        %v3086 = vpop.permute.xlu0 %3085
        %v3088 = vsel %vm1594, %v3084, 0
        %v3090 = vsel %vm1598, %v3086, 0
        %3092 = vmatprep.subr.mxu0 0.0
        %3093 = vmatpush1.msra.mxu0 0.0
        %3094 = vmatprep.subr.mxu0 0.0
        %3095 = vmatpush1.msra.mxu0 0.0
        %3096 = vmatprep.subr.mxu0 0.0
        %3097 = vmatpush1.msra.mxu0 0.0
        %3098 = vmatprep.subr.mxu0 0.0
        %3099 = vmatpush1.msra.mxu0 0.0
        %3100 = vmatprep.subr.mxu0 0.0
        %3101 = vmatpush1.msra.mxu0 0.0
        %3102 = vmatprep.subr.mxu0 0.0
        %3103 = vmatpush1.msra.mxu0 0.0
        %3104 = vmatprep.subr.mxu0 0.0
        %3105 = vmatpush1.msra.mxu0 0.0
        %3106 = vmatprep.subr.mxu0 0.0
        %3107 = vmatpush1.msra.mxu0 0.0
        %3108 = vmatprep.subr.mxu0 0.0
        %3109 = vmatpush1.msra.mxu0 0.0
        %3110 = vmatprep.subr.mxu0 0.0
        %3111 = vmatpush1.msra.mxu0 0.0
        %3112 = vmatprep.subr.mxu0 0.0
        %3113 = vmatpush1.msra.mxu0 0.0
        %3114 = vmatprep.subr.mxu0 0.0
        %3115 = vmatpush1.msra.mxu0 0.0
        %3116 = vmatprep.subr.mxu0 0.0
        %3117 = vmatpush1.msra.mxu0 0.0
        %3118 = vmatprep.subr.mxu0 0.0
        %3119 = vmatpush1.msra.mxu0 0.0
        %3120 = vmatprep.subr.mxu0 0.0
        %3121 = vmatpush1.msra.mxu0 0.0
        %3122 = vmatprep.subr.mxu0 0.0
        %3123 = vmatpush1.msra.mxu0 %v3090
        %3124 = vmatprep.subr.mxu0 0.0
        %3125 = vmatpush2.msra.mxu0 0.0
        %3126 = vmatprep.subr.mxu0 0.0
        %3127 = vmatpush2.msra.mxu0 0.0
        %3128 = vmatprep.subr.mxu0 0.0
        %3129 = vmatpush2.msra.mxu0 0.0
        %3130 = vmatprep.subr.mxu0 0.0
        %3131 = vmatpush2.msra.mxu0 0.0
        %3132 = vmatprep.subr.mxu0 0.0
        %3133 = vmatpush2.msra.mxu0 0.0
        %3134 = vmatprep.subr.mxu0 0.0
        %3135 = vmatpush2.msra.mxu0 0.0
        %3136 = vmatprep.subr.mxu0 0.0
        %3137 = vmatpush2.msra.mxu0 0.0
        %3138 = vmatprep.subr.mxu0 0.0
        %3139 = vmatpush2.msra.mxu0 0.0
        %3140 = vmatprep.subr.mxu0 0.0
        %3141 = vmatpush2.msra.mxu0 0.0
        %3142 = vmatprep.subr.mxu0 0.0
        %3143 = vmatpush2.msra.mxu0 0.0
        %3144 = vmatprep.subr.mxu0 0.0
        %3145 = vmatpush2.msra.mxu0 0.0
        %3146 = vmatprep.subr.mxu0 0.0
        %3147 = vmatpush2.msra.mxu0 0.0
        %3148 = vmatprep.subr.mxu0 0.0
        %3149 = vmatpush2.msra.mxu0 0.0
        %3150 = vmatprep.subr.mxu0 0.0
        %3151 = vmatpush2.msra.mxu0 0.0
        %3152 = vmatprep.subr.mxu0 0.0
        %3153 = vmatpush2.msra.mxu0 0.0
        %3154 = vmatprep.subr.mxu0 0.0
        %3155 = vmatpush2.msra.mxu0 0.0
        %3156 = vmatprep.mubr.f32.mxu0 0.0
        %3157 = vmatmul.mubr.f32.gmra.mxu0 %v3088
        %v3158 = vpop.f32.mrf.mxu0
        %v3159 = vadd.f32 0.0, %v3158
        %v3160 = vpop.f32.mrf.mxu0
        %3161 = vdwg.mxu0
        %s3162 = scalar_lea.vmem %s8, 40
        %v3163 = vld [vmem:[%s3162] sm:$0xff]
        %v3165 = vsel %vm1504, %v3159, 0
        %3167 = vmatprep.subr.mxu0 0.0
        %3168 = vmatpush1.msra.mxu0 0.0
        %3169 = vmatprep.subr.mxu0 0.0
        %3170 = vmatpush1.msra.mxu0 0.0
        %3171 = vmatprep.subr.mxu0 0.0
        %3172 = vmatpush1.msra.mxu0 0.0
        %3173 = vmatprep.subr.mxu0 0.0
        %3174 = vmatpush1.msra.mxu0 0.0
        %3175 = vmatprep.subr.mxu0 0.0
        %3176 = vmatpush1.msra.mxu0 0.0
        %3177 = vmatprep.subr.mxu0 0.0
        %3178 = vmatpush1.msra.mxu0 0.0
        %3179 = vmatprep.subr.mxu0 0.0
        %3180 = vmatpush1.msra.mxu0 0.0
        %3181 = vmatprep.subr.mxu0 0.0
        %3182 = vmatpush1.msra.mxu0 0.0
        %3183 = vmatprep.subr.mxu0 0.0
        %3184 = vmatpush1.msra.mxu0 0.0
        %3185 = vmatprep.subr.mxu0 0.0
        %3186 = vmatpush1.msra.mxu0 0.0
        %3187 = vmatprep.subr.mxu0 0.0
        %3188 = vmatpush1.msra.mxu0 0.0
        %3189 = vmatprep.subr.mxu0 0.0
        %3190 = vmatpush1.msra.mxu0 0.0
        %3191 = vmatprep.subr.mxu0 0.0
        %3192 = vmatpush1.msra.mxu0 0.0
        %3193 = vmatprep.subr.mxu0 0.0
        %3194 = vmatpush1.msra.mxu0 0.0
        %3195 = vmatprep.subr.mxu0 0.0
        %3196 = vmatpush1.msra.mxu0 0.0
        %3197 = vmatprep.subr.mxu0 0.0
        %3198 = vmatpush1.msra.mxu0 %v3163
        %3199 = vmatprep.subr.mxu0 0.0
        %3200 = vmatpush2.msra.mxu0 0.0
        %3201 = vmatprep.subr.mxu0 0.0
        %3202 = vmatpush2.msra.mxu0 0.0
        %3203 = vmatprep.subr.mxu0 0.0
        %3204 = vmatpush2.msra.mxu0 0.0
        %3205 = vmatprep.subr.mxu0 0.0
        %3206 = vmatpush2.msra.mxu0 0.0
        %3207 = vmatprep.subr.mxu0 0.0
        %3208 = vmatpush2.msra.mxu0 0.0
        %3209 = vmatprep.subr.mxu0 0.0
        %3210 = vmatpush2.msra.mxu0 0.0
        %3211 = vmatprep.subr.mxu0 0.0
        %3212 = vmatpush2.msra.mxu0 0.0
        %3213 = vmatprep.subr.mxu0 0.0
        %3214 = vmatpush2.msra.mxu0 0.0
        %3215 = vmatprep.subr.mxu0 0.0
        %3216 = vmatpush2.msra.mxu0 0.0
        %3217 = vmatprep.subr.mxu0 0.0
        %3218 = vmatpush2.msra.mxu0 0.0
        %3219 = vmatprep.subr.mxu0 0.0
        %3220 = vmatpush2.msra.mxu0 0.0
        %3221 = vmatprep.subr.mxu0 0.0
        %3222 = vmatpush2.msra.mxu0 0.0
        %3223 = vmatprep.subr.mxu0 0.0
        %3224 = vmatpush2.msra.mxu0 0.0
        %3225 = vmatprep.subr.mxu0 0.0
        %3226 = vmatpush2.msra.mxu0 0.0
        %3227 = vmatprep.subr.mxu0 0.0
        %3228 = vmatpush2.msra.mxu0 0.0
        %3229 = vmatprep.subr.mxu0 0.0
        %3230 = vmatpush2.msra.mxu0 0.0
        %3231 = vmatprep.mubr.f32.mxu0 0.0
        %3232 = vmatmul.mubr.f32.gmra.mxu0 %v3165
        %v3233 = vpop.f32.mrf.mxu0
        %v3234 = vadd.f32 0.0, %v3233
        %v3235 = vpop.f32.mrf.mxu0
        %3236 = vdwg.mxu0
        %v3238 = vsel %vm1504, %v2991, 0
        %3240 = vmatprep.subr.mxu0 0.0
        %3241 = vmatpush1.msra.mxu0 0.0
        %3242 = vmatprep.subr.mxu0 0.0
        %3243 = vmatpush1.msra.mxu0 0.0
        %3244 = vmatprep.subr.mxu0 0.0
        %3245 = vmatpush1.msra.mxu0 0.0
        %3246 = vmatprep.subr.mxu0 0.0
        %3247 = vmatpush1.msra.mxu0 0.0
        %3248 = vmatprep.subr.mxu0 0.0
        %3249 = vmatpush1.msra.mxu0 0.0
        %3250 = vmatprep.subr.mxu0 0.0
        %3251 = vmatpush1.msra.mxu0 0.0
        %3252 = vmatprep.subr.mxu0 0.0
        %3253 = vmatpush1.msra.mxu0 0.0
        %3254 = vmatprep.subr.mxu0 0.0
        %3255 = vmatpush1.msra.mxu0 0.0
        %3256 = vmatprep.subr.mxu0 0.0
        %3257 = vmatpush1.msra.mxu0 0.0
        %3258 = vmatprep.subr.mxu0 0.0
        %3259 = vmatpush1.msra.mxu0 0.0
        %3260 = vmatprep.subr.mxu0 0.0
        %3261 = vmatpush1.msra.mxu0 0.0
        %3262 = vmatprep.subr.mxu0 0.0
        %3263 = vmatpush1.msra.mxu0 0.0
        %3264 = vmatprep.subr.mxu0 0.0
        %3265 = vmatpush1.msra.mxu0 0.0
        %3266 = vmatprep.subr.mxu0 0.0
        %3267 = vmatpush1.msra.mxu0 0.0
        %3268 = vmatprep.subr.mxu0 0.0
        %3269 = vmatpush1.msra.mxu0 0.0
        %3270 = vmatprep.subr.mxu0 0.0
        %3271 = vmatpush1.msra.mxu0 %v2995
        %3272 = vmatprep.subr.mxu0 0.0
        %3273 = vmatpush2.msra.mxu0 0.0
        %3274 = vmatprep.subr.mxu0 0.0
        %3275 = vmatpush2.msra.mxu0 0.0
        %3276 = vmatprep.subr.mxu0 0.0
        %3277 = vmatpush2.msra.mxu0 0.0
        %3278 = vmatprep.subr.mxu0 0.0
        %3279 = vmatpush2.msra.mxu0 0.0
        %3280 = vmatprep.subr.mxu0 0.0
        %3281 = vmatpush2.msra.mxu0 0.0
        %3282 = vmatprep.subr.mxu0 0.0
        %3283 = vmatpush2.msra.mxu0 0.0
        %3284 = vmatprep.subr.mxu0 0.0
        %3285 = vmatpush2.msra.mxu0 0.0
        %3286 = vmatprep.subr.mxu0 0.0
        %3287 = vmatpush2.msra.mxu0 0.0
        %3288 = vmatprep.subr.mxu0 0.0
        %3289 = vmatpush2.msra.mxu0 0.0
        %3290 = vmatprep.subr.mxu0 0.0
        %3291 = vmatpush2.msra.mxu0 0.0
        %3292 = vmatprep.subr.mxu0 0.0
        %3293 = vmatpush2.msra.mxu0 0.0
        %3294 = vmatprep.subr.mxu0 0.0
        %3295 = vmatpush2.msra.mxu0 0.0
        %3296 = vmatprep.subr.mxu0 0.0
        %3297 = vmatpush2.msra.mxu0 0.0
        %3298 = vmatprep.subr.mxu0 0.0
        %3299 = vmatpush2.msra.mxu0 0.0
        %3300 = vmatprep.subr.mxu0 0.0
        %3301 = vmatpush2.msra.mxu0 0.0
        %3302 = vmatprep.subr.mxu0 0.0
        %3303 = vmatpush2.msra.mxu0 0.0
        %3304 = vmatprep.mubr.f32.mxu0 0.0
        %3305 = vmatmul.mubr.f32.gmra.mxu0 %v3238
        %v3306 = vpop.f32.mrf.mxu0
        %v3307 = vadd.f32 %v3234, %v3306
        %v3308 = vpop.f32.mrf.mxu0
        %3309 = vdwg.mxu0
        %3310 = vrot.lane.b32.xlu0 %v2827, 112
        %v3311 = vpop.permute.xlu0 %3310
        %3312 = vrot.lane.b32.xlu0 %v2824, 80
        %v3313 = vpop.permute.xlu0 %3312
        %v3314 = vsel %vm1504, %v3311, 0
        %v3316 = vsel %vm1504, %v3313, 0
        %3318 = vmatprep.subr.mxu0 0.0
        %3319 = vmatpush1.xpose.msra.mxu0 0.0
        %3320 = vmatprep.subr.mxu0 0.0
        %3321 = vmatpush1.xpose.msra.mxu0 0.0
        %3322 = vmatprep.subr.mxu0 0.0
        %3323 = vmatpush1.xpose.msra.mxu0 0.0
        %3324 = vmatprep.subr.mxu0 0.0
        %3325 = vmatpush1.xpose.msra.mxu0 0.0
        %3326 = vmatprep.subr.mxu0 0.0
        %3327 = vmatpush1.xpose.msra.mxu0 0.0
        %3328 = vmatprep.subr.mxu0 0.0
        %3329 = vmatpush1.xpose.msra.mxu0 0.0
        %3330 = vmatprep.subr.mxu0 0.0
        %3331 = vmatpush1.xpose.msra.mxu0 0.0
        %3332 = vmatprep.subr.mxu0 0.0
        %3333 = vmatpush1.xpose.msra.mxu0 0.0
        %3334 = vmatprep.subr.mxu0 0.0
        %3335 = vmatpush1.xpose.msra.mxu0 0.0
        %3336 = vmatprep.subr.mxu0 0.0
        %3337 = vmatpush1.xpose.msra.mxu0 0.0
        %3338 = vmatprep.subr.mxu0 0.0
        %3339 = vmatpush1.xpose.msra.mxu0 0.0
        %3340 = vmatprep.subr.mxu0 0.0
        %3341 = vmatpush1.xpose.msra.mxu0 0.0
        %3342 = vmatprep.subr.mxu0 0.0
        %3343 = vmatpush1.xpose.msra.mxu0 0.0
        %3344 = vmatprep.subr.mxu0 0.0
        %3345 = vmatpush1.xpose.msra.mxu0 0.0
        %3346 = vmatprep.subr.mxu0 0.0
        %3347 = vmatpush1.xpose.msra.mxu0 0.0
        %3348 = vmatprep.subr.mxu0 0.0
        %3349 = vmatpush1.xpose.msra.mxu0 %v3316
        %3350 = vmatprep.subr.mxu0 0.0
        %3351 = vmatpush2.xpose.msra.mxu0 0.0
        %3352 = vmatprep.subr.mxu0 0.0
        %3353 = vmatpush2.xpose.msra.mxu0 0.0
        %3354 = vmatprep.subr.mxu0 0.0
        %3355 = vmatpush2.xpose.msra.mxu0 0.0
        %3356 = vmatprep.subr.mxu0 0.0
        %3357 = vmatpush2.xpose.msra.mxu0 0.0
        %3358 = vmatprep.subr.mxu0 0.0
        %3359 = vmatpush2.xpose.msra.mxu0 0.0
        %3360 = vmatprep.subr.mxu0 0.0
        %3361 = vmatpush2.xpose.msra.mxu0 0.0
        %3362 = vmatprep.subr.mxu0 0.0
        %3363 = vmatpush2.xpose.msra.mxu0 0.0
        %3364 = vmatprep.subr.mxu0 0.0
        %3365 = vmatpush2.xpose.msra.mxu0 0.0
        %3366 = vmatprep.subr.mxu0 0.0
        %3367 = vmatpush2.xpose.msra.mxu0 0.0
        %3368 = vmatprep.subr.mxu0 0.0
        %3369 = vmatpush2.xpose.msra.mxu0 0.0
        %3370 = vmatprep.subr.mxu0 0.0
        %3371 = vmatpush2.xpose.msra.mxu0 0.0
        %3372 = vmatprep.subr.mxu0 0.0
        %3373 = vmatpush2.xpose.msra.mxu0 0.0
        %3374 = vmatprep.subr.mxu0 0.0
        %3375 = vmatpush2.xpose.msra.mxu0 0.0
        %3376 = vmatprep.subr.mxu0 0.0
        %3377 = vmatpush2.xpose.msra.mxu0 0.0
        %3378 = vmatprep.subr.mxu0 0.0
        %3379 = vmatpush2.xpose.msra.mxu0 0.0
        %3380 = vmatprep.subr.mxu0 0.0
        %3381 = vmatpush2.xpose.msra.mxu0 0.0
        %3382 = vmatprep.mubr.f32.mxu0 0.0
        %3383 = vmatmul.mubr.f32.gmra.mxu0 %v3314
        %v3384 = vpop.f32.mrf.mxu0
        %v3385 = vadd.f32 0.0, %v3384
        %v3386 = vpop.f32.mrf.mxu0
        %3387 = vdwg.mxu0
        %v3388 = vsel %vm1580, %v3385, -inf
        %3389 = vmax.xlane.f32.xlu0 %v3388
        %v3390 = vpop.xlane.xlu0 %3389
        %v3391 = vsub.f32 %v3385, %v3390
        %v3392 = vmul.f32 %v3391, 1.442695
        %v3393 = vpow.pop %v3392
        %v3394 = vsel %vm1580, %v3393, 0.0
        %3395 = vadd.xlane.f32.xlu0 %v3394
        %v3396 = vpop.xlane.xlu0 %3395
        %v3397 = vrcp.pop %v3396
        %v3398 = vmul.f32 %v3393, %v3397
        %3399 = vrot.lane.b32.xlu0 %v2824, 48
        %v3400 = vpop.permute.xlu0 %3399
        %v3402 = vsel %vm1594, %v3398, 0
        %v3404 = vsel %vm1598, %v3400, 0
        %3406 = vmatprep.subr.mxu0 0.0
        %3407 = vmatpush1.msra.mxu0 0.0
        %3408 = vmatprep.subr.mxu0 0.0
        %3409 = vmatpush1.msra.mxu0 0.0
        %3410 = vmatprep.subr.mxu0 0.0
        %3411 = vmatpush1.msra.mxu0 0.0
        %3412 = vmatprep.subr.mxu0 0.0
        %3413 = vmatpush1.msra.mxu0 0.0
        %3414 = vmatprep.subr.mxu0 0.0
        %3415 = vmatpush1.msra.mxu0 0.0
        %3416 = vmatprep.subr.mxu0 0.0
        %3417 = vmatpush1.msra.mxu0 0.0
        %3418 = vmatprep.subr.mxu0 0.0
        %3419 = vmatpush1.msra.mxu0 0.0
        %3420 = vmatprep.subr.mxu0 0.0
        %3421 = vmatpush1.msra.mxu0 0.0
        %3422 = vmatprep.subr.mxu0 0.0
        %3423 = vmatpush1.msra.mxu0 0.0
        %3424 = vmatprep.subr.mxu0 0.0
        %3425 = vmatpush1.msra.mxu0 0.0
        %3426 = vmatprep.subr.mxu0 0.0
        %3427 = vmatpush1.msra.mxu0 0.0
        %3428 = vmatprep.subr.mxu0 0.0
        %3429 = vmatpush1.msra.mxu0 0.0
        %3430 = vmatprep.subr.mxu0 0.0
        %3431 = vmatpush1.msra.mxu0 0.0
        %3432 = vmatprep.subr.mxu0 0.0
        %3433 = vmatpush1.msra.mxu0 0.0
        %3434 = vmatprep.subr.mxu0 0.0
        %3435 = vmatpush1.msra.mxu0 0.0
        %3436 = vmatprep.subr.mxu0 0.0
        %3437 = vmatpush1.msra.mxu0 %v3404
        %3438 = vmatprep.subr.mxu0 0.0
        %3439 = vmatpush2.msra.mxu0 0.0
        %3440 = vmatprep.subr.mxu0 0.0
        %3441 = vmatpush2.msra.mxu0 0.0
        %3442 = vmatprep.subr.mxu0 0.0
        %3443 = vmatpush2.msra.mxu0 0.0
        %3444 = vmatprep.subr.mxu0 0.0
        %3445 = vmatpush2.msra.mxu0 0.0
        %3446 = vmatprep.subr.mxu0 0.0
        %3447 = vmatpush2.msra.mxu0 0.0
        %3448 = vmatprep.subr.mxu0 0.0
        %3449 = vmatpush2.msra.mxu0 0.0
        %3450 = vmatprep.subr.mxu0 0.0
        %3451 = vmatpush2.msra.mxu0 0.0
        %3452 = vmatprep.subr.mxu0 0.0
        %3453 = vmatpush2.msra.mxu0 0.0
        %3454 = vmatprep.subr.mxu0 0.0
        %3455 = vmatpush2.msra.mxu0 0.0
        %3456 = vmatprep.subr.mxu0 0.0
        %3457 = vmatpush2.msra.mxu0 0.0
        %3458 = vmatprep.subr.mxu0 0.0
        %3459 = vmatpush2.msra.mxu0 0.0
        %3460 = vmatprep.subr.mxu0 0.0
        %3461 = vmatpush2.msra.mxu0 0.0
        %3462 = vmatprep.subr.mxu0 0.0
        %3463 = vmatpush2.msra.mxu0 0.0
        %3464 = vmatprep.subr.mxu0 0.0
        %3465 = vmatpush2.msra.mxu0 0.0
        %3466 = vmatprep.subr.mxu0 0.0
        %3467 = vmatpush2.msra.mxu0 0.0
        %3468 = vmatprep.subr.mxu0 0.0
        %3469 = vmatpush2.msra.mxu0 0.0
        %3470 = vmatprep.mubr.f32.mxu0 0.0
        %3471 = vmatmul.mubr.f32.gmra.mxu0 %v3402
        %v3472 = vpop.f32.mrf.mxu0
        %v3473 = vadd.f32 0.0, %v3472
        %v3474 = vpop.f32.mrf.mxu0
        %3475 = vdwg.mxu0
        %s3476 = scalar_lea.vmem %s8, 48
        %v3477 = vld [vmem:[%s3476] sm:$0xff]
        %v3479 = vsel %vm1504, %v3473, 0
        %3481 = vmatprep.subr.mxu0 0.0
        %3482 = vmatpush1.msra.mxu0 0.0
        %3483 = vmatprep.subr.mxu0 0.0
        %3484 = vmatpush1.msra.mxu0 0.0
        %3485 = vmatprep.subr.mxu0 0.0
        %3486 = vmatpush1.msra.mxu0 0.0
        %3487 = vmatprep.subr.mxu0 0.0
        %3488 = vmatpush1.msra.mxu0 0.0
        %3489 = vmatprep.subr.mxu0 0.0
        %3490 = vmatpush1.msra.mxu0 0.0
        %3491 = vmatprep.subr.mxu0 0.0
        %3492 = vmatpush1.msra.mxu0 0.0
        %3493 = vmatprep.subr.mxu0 0.0
        %3494 = vmatpush1.msra.mxu0 0.0
        %3495 = vmatprep.subr.mxu0 0.0
        %3496 = vmatpush1.msra.mxu0 0.0
        %3497 = vmatprep.subr.mxu0 0.0
        %3498 = vmatpush1.msra.mxu0 0.0
        %3499 = vmatprep.subr.mxu0 0.0
        %3500 = vmatpush1.msra.mxu0 0.0
        %3501 = vmatprep.subr.mxu0 0.0
        %3502 = vmatpush1.msra.mxu0 0.0
        %3503 = vmatprep.subr.mxu0 0.0
        %3504 = vmatpush1.msra.mxu0 0.0
        %3505 = vmatprep.subr.mxu0 0.0
        %3506 = vmatpush1.msra.mxu0 0.0
        %3507 = vmatprep.subr.mxu0 0.0
        %3508 = vmatpush1.msra.mxu0 0.0
        %3509 = vmatprep.subr.mxu0 0.0
        %3510 = vmatpush1.msra.mxu0 0.0
        %3511 = vmatprep.subr.mxu0 0.0
        %3512 = vmatpush1.msra.mxu0 %v3477
        %3513 = vmatprep.subr.mxu0 0.0
        %3514 = vmatpush2.msra.mxu0 0.0
        %3515 = vmatprep.subr.mxu0 0.0
        %3516 = vmatpush2.msra.mxu0 0.0
        %3517 = vmatprep.subr.mxu0 0.0
        %3518 = vmatpush2.msra.mxu0 0.0
        %3519 = vmatprep.subr.mxu0 0.0
        %3520 = vmatpush2.msra.mxu0 0.0
        %3521 = vmatprep.subr.mxu0 0.0
        %3522 = vmatpush2.msra.mxu0 0.0
        %3523 = vmatprep.subr.mxu0 0.0
        %3524 = vmatpush2.msra.mxu0 0.0
        %3525 = vmatprep.subr.mxu0 0.0
        %3526 = vmatpush2.msra.mxu0 0.0
        %3527 = vmatprep.subr.mxu0 0.0
        %3528 = vmatpush2.msra.mxu0 0.0
        %3529 = vmatprep.subr.mxu0 0.0
        %3530 = vmatpush2.msra.mxu0 0.0
        %3531 = vmatprep.subr.mxu0 0.0
        %3532 = vmatpush2.msra.mxu0 0.0
        %3533 = vmatprep.subr.mxu0 0.0
        %3534 = vmatpush2.msra.mxu0 0.0
        %3535 = vmatprep.subr.mxu0 0.0
        %3536 = vmatpush2.msra.mxu0 0.0
        %3537 = vmatprep.subr.mxu0 0.0
        %3538 = vmatpush2.msra.mxu0 0.0
        %3539 = vmatprep.subr.mxu0 0.0
        %3540 = vmatpush2.msra.mxu0 0.0
        %3541 = vmatprep.subr.mxu0 0.0
        %3542 = vmatpush2.msra.mxu0 0.0
        %3543 = vmatprep.subr.mxu0 0.0
        %3544 = vmatpush2.msra.mxu0 0.0
        %3545 = vmatprep.mubr.f32.mxu0 0.0
        %3546 = vmatmul.mubr.f32.gmra.mxu0 %v3479
        %v3547 = vpop.f32.mrf.mxu0
        %v3548 = vadd.f32 0.0, %v3547
        %v3549 = vpop.f32.mrf.mxu0
        %3550 = vdwg.mxu0
        %v3551 = vadd.f32 %v3307, %v3548
        %3552 = vrot.lane.b32.xlu0 %v2827, 104
        %v3553 = vpop.permute.xlu0 %3552
        %3554 = vrot.lane.b32.xlu0 %v2824, 72
        %v3555 = vpop.permute.xlu0 %3554
        %v3556 = vsel %vm1504, %v3553, 0
        %v3558 = vsel %vm1504, %v3555, 0
        %3560 = vmatprep.subr.mxu0 0.0
        %3561 = vmatpush1.xpose.msra.mxu0 0.0
        %3562 = vmatprep.subr.mxu0 0.0
        %3563 = vmatpush1.xpose.msra.mxu0 0.0
        %3564 = vmatprep.subr.mxu0 0.0
        %3565 = vmatpush1.xpose.msra.mxu0 0.0
        %3566 = vmatprep.subr.mxu0 0.0
        %3567 = vmatpush1.xpose.msra.mxu0 0.0
        %3568 = vmatprep.subr.mxu0 0.0
        %3569 = vmatpush1.xpose.msra.mxu0 0.0
        %3570 = vmatprep.subr.mxu0 0.0
        %3571 = vmatpush1.xpose.msra.mxu0 0.0
        %3572 = vmatprep.subr.mxu0 0.0
        %3573 = vmatpush1.xpose.msra.mxu0 0.0
        %3574 = vmatprep.subr.mxu0 0.0
        %3575 = vmatpush1.xpose.msra.mxu0 0.0
        %3576 = vmatprep.subr.mxu0 0.0
        %3577 = vmatpush1.xpose.msra.mxu0 0.0
        %3578 = vmatprep.subr.mxu0 0.0
        %3579 = vmatpush1.xpose.msra.mxu0 0.0
        %3580 = vmatprep.subr.mxu0 0.0
        %3581 = vmatpush1.xpose.msra.mxu0 0.0
        %3582 = vmatprep.subr.mxu0 0.0
        %3583 = vmatpush1.xpose.msra.mxu0 0.0
        %3584 = vmatprep.subr.mxu0 0.0
        %3585 = vmatpush1.xpose.msra.mxu0 0.0
        %3586 = vmatprep.subr.mxu0 0.0
        %3587 = vmatpush1.xpose.msra.mxu0 0.0
        %3588 = vmatprep.subr.mxu0 0.0
        %3589 = vmatpush1.xpose.msra.mxu0 0.0
        %3590 = vmatprep.subr.mxu0 0.0
        %3591 = vmatpush1.xpose.msra.mxu0 %v3558
        %3592 = vmatprep.subr.mxu0 0.0
        %3593 = vmatpush2.xpose.msra.mxu0 0.0
        %3594 = vmatprep.subr.mxu0 0.0
        %3595 = vmatpush2.xpose.msra.mxu0 0.0
        %3596 = vmatprep.subr.mxu0 0.0
        %3597 = vmatpush2.xpose.msra.mxu0 0.0
        %3598 = vmatprep.subr.mxu0 0.0
        %3599 = vmatpush2.xpose.msra.mxu0 0.0
        %3600 = vmatprep.subr.mxu0 0.0
        %3601 = vmatpush2.xpose.msra.mxu0 0.0
        %3602 = vmatprep.subr.mxu0 0.0
        %3603 = vmatpush2.xpose.msra.mxu0 0.0
        %3604 = vmatprep.subr.mxu0 0.0
        %3605 = vmatpush2.xpose.msra.mxu0 0.0
        %3606 = vmatprep.subr.mxu0 0.0
        %3607 = vmatpush2.xpose.msra.mxu0 0.0
        %3608 = vmatprep.subr.mxu0 0.0
        %3609 = vmatpush2.xpose.msra.mxu0 0.0
        %3610 = vmatprep.subr.mxu0 0.0
        %3611 = vmatpush2.xpose.msra.mxu0 0.0
        %3612 = vmatprep.subr.mxu0 0.0
        %3613 = vmatpush2.xpose.msra.mxu0 0.0
        %3614 = vmatprep.subr.mxu0 0.0
        %3615 = vmatpush2.xpose.msra.mxu0 0.0
        %3616 = vmatprep.subr.mxu0 0.0
        %3617 = vmatpush2.xpose.msra.mxu0 0.0
        %3618 = vmatprep.subr.mxu0 0.0
        %3619 = vmatpush2.xpose.msra.mxu0 0.0
        %3620 = vmatprep.subr.mxu0 0.0
        %3621 = vmatpush2.xpose.msra.mxu0 0.0
        %3622 = vmatprep.subr.mxu0 0.0
        %3623 = vmatpush2.xpose.msra.mxu0 0.0
        %3624 = vmatprep.mubr.f32.mxu0 0.0
        %3625 = vmatmul.mubr.f32.gmra.mxu0 %v3556
        %v3626 = vpop.f32.mrf.mxu0
        %v3627 = vadd.f32 0.0, %v3626
        %v3628 = vpop.f32.mrf.mxu0
        %3629 = vdwg.mxu0
        %v3630 = vsel %vm1580, %v3627, -inf
        %3631 = vmax.xlane.f32.xlu0 %v3630
        %v3632 = vpop.xlane.xlu0 %3631
        %v3633 = vsub.f32 %v3627, %v3632
        %v3634 = vmul.f32 %v3633, 1.442695
        %v3635 = vpow.pop %v3634
        %v3636 = vsel %vm1580, %v3635, 0.0
        %3637 = vadd.xlane.f32.xlu0 %v3636
        %v3638 = vpop.xlane.xlu0 %3637
        %v3639 = vrcp.pop %v3638
        %v3640 = vmul.f32 %v3635, %v3639
        %3641 = vrot.lane.b32.xlu0 %v2824, 40
        %v3642 = vpop.permute.xlu0 %3641
        %v3644 = vsel %vm1594, %v3640, 0
        %v3646 = vsel %vm1598, %v3642, 0
        %3648 = vmatprep.subr.mxu0 0.0
        %3649 = vmatpush1.msra.mxu0 0.0
        %3650 = vmatprep.subr.mxu0 0.0
        %3651 = vmatpush1.msra.mxu0 0.0
        %3652 = vmatprep.subr.mxu0 0.0
        %3653 = vmatpush1.msra.mxu0 0.0
        %3654 = vmatprep.subr.mxu0 0.0
        %3655 = vmatpush1.msra.mxu0 0.0
        %3656 = vmatprep.subr.mxu0 0.0
        %3657 = vmatpush1.msra.mxu0 0.0
        %3658 = vmatprep.subr.mxu0 0.0
        %3659 = vmatpush1.msra.mxu0 0.0
        %3660 = vmatprep.subr.mxu0 0.0
        %3661 = vmatpush1.msra.mxu0 0.0
        %3662 = vmatprep.subr.mxu0 0.0
        %3663 = vmatpush1.msra.mxu0 0.0
        %3664 = vmatprep.subr.mxu0 0.0
        %3665 = vmatpush1.msra.mxu0 0.0
        %3666 = vmatprep.subr.mxu0 0.0
        %3667 = vmatpush1.msra.mxu0 0.0
        %3668 = vmatprep.subr.mxu0 0.0
        %3669 = vmatpush1.msra.mxu0 0.0
        %3670 = vmatprep.subr.mxu0 0.0
        %3671 = vmatpush1.msra.mxu0 0.0
        %3672 = vmatprep.subr.mxu0 0.0
        %3673 = vmatpush1.msra.mxu0 0.0
        %3674 = vmatprep.subr.mxu0 0.0
        %3675 = vmatpush1.msra.mxu0 0.0
        %3676 = vmatprep.subr.mxu0 0.0
        %3677 = vmatpush1.msra.mxu0 0.0
        %3678 = vmatprep.subr.mxu0 0.0
        %3679 = vmatpush1.msra.mxu0 %v3646
        %3680 = vmatprep.subr.mxu0 0.0
        %3681 = vmatpush2.msra.mxu0 0.0
        %3682 = vmatprep.subr.mxu0 0.0
        %3683 = vmatpush2.msra.mxu0 0.0
        %3684 = vmatprep.subr.mxu0 0.0
        %3685 = vmatpush2.msra.mxu0 0.0
        %3686 = vmatprep.subr.mxu0 0.0
        %3687 = vmatpush2.msra.mxu0 0.0
        %3688 = vmatprep.subr.mxu0 0.0
        %3689 = vmatpush2.msra.mxu0 0.0
        %3690 = vmatprep.subr.mxu0 0.0
        %3691 = vmatpush2.msra.mxu0 0.0
        %3692 = vmatprep.subr.mxu0 0.0
        %3693 = vmatpush2.msra.mxu0 0.0
        %3694 = vmatprep.subr.mxu0 0.0
        %3695 = vmatpush2.msra.mxu0 0.0
        %3696 = vmatprep.subr.mxu0 0.0
        %3697 = vmatpush2.msra.mxu0 0.0
        %3698 = vmatprep.subr.mxu0 0.0
        %3699 = vmatpush2.msra.mxu0 0.0
        %3700 = vmatprep.subr.mxu0 0.0
        %3701 = vmatpush2.msra.mxu0 0.0
        %3702 = vmatprep.subr.mxu0 0.0
        %3703 = vmatpush2.msra.mxu0 0.0
        %3704 = vmatprep.subr.mxu0 0.0
        %3705 = vmatpush2.msra.mxu0 0.0
        %3706 = vmatprep.subr.mxu0 0.0
        %3707 = vmatpush2.msra.mxu0 0.0
        %3708 = vmatprep.subr.mxu0 0.0
        %3709 = vmatpush2.msra.mxu0 0.0
        %3710 = vmatprep.subr.mxu0 0.0
        %3711 = vmatpush2.msra.mxu0 0.0
        %3712 = vmatprep.mubr.f32.mxu0 0.0
        %3713 = vmatmul.mubr.f32.gmra.mxu0 %v3644
        %v3714 = vpop.f32.mrf.mxu0
        %v3715 = vadd.f32 0.0, %v3714
        %v3716 = vpop.f32.mrf.mxu0
        %3717 = vdwg.mxu0
        %s3718 = scalar_lea.vmem %s8, 56
        %v3719 = vld [vmem:[%s3718] sm:$0xff]
        %v3721 = vsel %vm1504, %v3715, 0
        %3723 = vmatprep.subr.mxu0 0.0
        %3724 = vmatpush1.msra.mxu0 0.0
        %3725 = vmatprep.subr.mxu0 0.0
        %3726 = vmatpush1.msra.mxu0 0.0
        %3727 = vmatprep.subr.mxu0 0.0
        %3728 = vmatpush1.msra.mxu0 0.0
        %3729 = vmatprep.subr.mxu0 0.0
        %3730 = vmatpush1.msra.mxu0 0.0
        %3731 = vmatprep.subr.mxu0 0.0
        %3732 = vmatpush1.msra.mxu0 0.0
        %3733 = vmatprep.subr.mxu0 0.0
        %3734 = vmatpush1.msra.mxu0 0.0
        %3735 = vmatprep.subr.mxu0 0.0
        %3736 = vmatpush1.msra.mxu0 0.0
        %3737 = vmatprep.subr.mxu0 0.0
        %3738 = vmatpush1.msra.mxu0 0.0
        %3739 = vmatprep.subr.mxu0 0.0
        %3740 = vmatpush1.msra.mxu0 0.0
        %3741 = vmatprep.subr.mxu0 0.0
        %3742 = vmatpush1.msra.mxu0 0.0
        %3743 = vmatprep.subr.mxu0 0.0
        %3744 = vmatpush1.msra.mxu0 0.0
        %3745 = vmatprep.subr.mxu0 0.0
        %3746 = vmatpush1.msra.mxu0 0.0
        %3747 = vmatprep.subr.mxu0 0.0
        %3748 = vmatpush1.msra.mxu0 0.0
        %3749 = vmatprep.subr.mxu0 0.0
        %3750 = vmatpush1.msra.mxu0 0.0
        %3751 = vmatprep.subr.mxu0 0.0
        %3752 = vmatpush1.msra.mxu0 0.0
        %3753 = vmatprep.subr.mxu0 0.0
        %3754 = vmatpush1.msra.mxu0 %v3719
        %3755 = vmatprep.subr.mxu0 0.0
        %3756 = vmatpush2.msra.mxu0 0.0
        %3757 = vmatprep.subr.mxu0 0.0
        %3758 = vmatpush2.msra.mxu0 0.0
        %3759 = vmatprep.subr.mxu0 0.0
        %3760 = vmatpush2.msra.mxu0 0.0
        %3761 = vmatprep.subr.mxu0 0.0
        %3762 = vmatpush2.msra.mxu0 0.0
        %3763 = vmatprep.subr.mxu0 0.0
        %3764 = vmatpush2.msra.mxu0 0.0
        %3765 = vmatprep.subr.mxu0 0.0
        %3766 = vmatpush2.msra.mxu0 0.0
        %3767 = vmatprep.subr.mxu0 0.0
        %3768 = vmatpush2.msra.mxu0 0.0
        %3769 = vmatprep.subr.mxu0 0.0
        %3770 = vmatpush2.msra.mxu0 0.0
        %3771 = vmatprep.subr.mxu0 0.0
        %3772 = vmatpush2.msra.mxu0 0.0
        %3773 = vmatprep.subr.mxu0 0.0
        %3774 = vmatpush2.msra.mxu0 0.0
        %3775 = vmatprep.subr.mxu0 0.0
        %3776 = vmatpush2.msra.mxu0 0.0
        %3777 = vmatprep.subr.mxu0 0.0
        %3778 = vmatpush2.msra.mxu0 0.0
        %3779 = vmatprep.subr.mxu0 0.0
        %3780 = vmatpush2.msra.mxu0 0.0
        %3781 = vmatprep.subr.mxu0 0.0
        %3782 = vmatpush2.msra.mxu0 0.0
        %3783 = vmatprep.subr.mxu0 0.0
        %3784 = vmatpush2.msra.mxu0 0.0
        %3785 = vmatprep.subr.mxu0 0.0
        %3786 = vmatpush2.msra.mxu0 0.0
        %3787 = vmatprep.mubr.f32.mxu0 0.0
        %3788 = vmatmul.mubr.f32.gmra.mxu0 %v3721
        %v3789 = vpop.f32.mrf.mxu0
        %v3790 = vadd.f32 0.0, %v3789
        %v3791 = vpop.f32.mrf.mxu0
        %3792 = vdwg.mxu0
        %v3793 = vadd.f32 %v3551, %v3790
        %v3794 = vadd.f32 %v2709, %v3793
        %s3795 = scalar_lea.vmem %s9, 1
        %v3796 = vld [vmem:[%s3795] sm:$0x1]
        %v3798 = vlaneseq
        %v3799 = vshrl.u32 %v3798, 7
        %v3800 = vsub.s32 0, %v3799
        %v3801 = vrot.slane %v3796, %v3800
        %v3803 = vadd.f32 %v3794, %v3801
        %s3804 = scalar_lea.vmem %s10, 1
        %v3805 = vld [vmem:[%s3804] sm:$0x1]
        %s3806 = scalar_lea.vmem %s11, 1
        %v3807 = vld [vmem:[%s3806] sm:$0x1]
        %v3808 = vsel %vm1386, %v3803, 0.0
        %3809 = vadd.xlane.f32.xlu0 %v3808
        %v3810 = vpop.xlane.xlu0 %3809
        %v3811 = vmul.f32 %v3810, %v1390
        %v3812 = vsub.f32 %v3803, %v3811
        %v3813 = vmul.f32 %v3812, %v3812
        %v3814 = vsel %vm1386, %v3813, 0.0
        %3815 = vadd.xlane.f32.xlu0 %v3814
        %v3816 = vpop.xlane.xlu0 %3815
        %v3817 = vmul.f32 %v3816, %v1390
        %v3818 = vadd.f32 %v3817, 1e-06
        %v3819 = vrsqrt.pop %v3818
        %v3820 = vmul.f32 %v3812, %v3819
        %v3822 = vlaneseq
        %v3823 = vshrl.u32 %v3822, 7
        %v3824 = vsub.s32 0, %v3823
        %v3825 = vrot.slane %v3805, %v3824
        %v3827 = vmul.f32 %v3820, %v3825
        %v3829 = vlaneseq
        %v3830 = vshrl.u32 %v3829, 7
        %v3831 = vsub.s32 0, %v3830
        %v3832 = vrot.slane %v3807, %v3831
        %v3834 = vadd.f32 %v3827, %v3832
        %s3835 = scalar_lea.vmem %s12, 32
        %v3836 = vld [vmem:[%s3835] sm:$0xff]
        %v3837 = vld [vmem:[%s3835 + $0x8] sm:$0xff]
        %v3838 = vld [vmem:[%s3835 + $0x10] sm:$0xff]
        %v3839 = vld [vmem:[%s3835 + $0x18] sm:$0xff]
        %s3840 = scalar_lea.vmem %s13, 1
        %v3841 = vld [vmem:[%s3840] sm:$0x1]
        %v3843 = vlaneseq
        %v3844 = vshrl.u32 %v3843, 7
        %v3845 = vsub.s32 0, %v3844
        %v3846 = vrot.slane %v3841, %v3845
        %v3849 = vsel %vm1426, %v3834, 0
        %3851 = vmatprep.subr.mxu0 0.0
        %3852 = vmatpush1.msra.mxu0 0.0
        %3853 = vmatprep.subr.mxu0 0.0
        %3854 = vmatpush1.msra.mxu0 0.0
        %3855 = vmatprep.subr.mxu0 0.0
        %3856 = vmatpush1.msra.mxu0 0.0
        %3857 = vmatprep.subr.mxu0 0.0
        %3858 = vmatpush1.msra.mxu0 0.0
        %3859 = vmatprep.subr.mxu0 0.0
        %3860 = vmatpush1.msra.mxu0 0.0
        %3861 = vmatprep.subr.mxu0 0.0
        %3862 = vmatpush1.msra.mxu0 0.0
        %3863 = vmatprep.subr.mxu0 0.0
        %3864 = vmatpush1.msra.mxu0 0.0
        %3865 = vmatprep.subr.mxu0 0.0
        %3866 = vmatpush1.msra.mxu0 0.0
        %3867 = vmatprep.subr.mxu0 0.0
        %3868 = vmatpush1.msra.mxu0 0.0
        %3869 = vmatprep.subr.mxu0 0.0
        %3870 = vmatpush1.msra.mxu0 0.0
        %3871 = vmatprep.subr.mxu0 0.0
        %3872 = vmatpush1.msra.mxu0 0.0
        %3873 = vmatprep.subr.mxu0 0.0
        %3874 = vmatpush1.msra.mxu0 0.0
        %3875 = vmatprep.subr.mxu0 0.0
        %3876 = vmatpush1.msra.mxu0 %v3839
        %3877 = vmatprep.subr.mxu0 0.0
        %3878 = vmatpush1.msra.mxu0 %v3838
        %3879 = vmatprep.subr.mxu0 0.0
        %3880 = vmatpush1.msra.mxu0 %v3837
        %3881 = vmatprep.subr.mxu0 0.0
        %3882 = vmatpush1.msra.mxu0 %v3836
        %3883 = vmatprep.subr.mxu0 0.0
        %3884 = vmatpush2.msra.mxu0 0.0
        %3885 = vmatprep.subr.mxu0 0.0
        %3886 = vmatpush2.msra.mxu0 0.0
        %3887 = vmatprep.subr.mxu0 0.0
        %3888 = vmatpush2.msra.mxu0 0.0
        %3889 = vmatprep.subr.mxu0 0.0
        %3890 = vmatpush2.msra.mxu0 0.0
        %3891 = vmatprep.subr.mxu0 0.0
        %3892 = vmatpush2.msra.mxu0 0.0
        %3893 = vmatprep.subr.mxu0 0.0
        %3894 = vmatpush2.msra.mxu0 0.0
        %3895 = vmatprep.subr.mxu0 0.0
        %3896 = vmatpush2.msra.mxu0 0.0
        %3897 = vmatprep.subr.mxu0 0.0
        %3898 = vmatpush2.msra.mxu0 0.0
        %3899 = vmatprep.subr.mxu0 0.0
        %3900 = vmatpush2.msra.mxu0 0.0
        %3901 = vmatprep.subr.mxu0 0.0
        %3902 = vmatpush2.msra.mxu0 0.0
        %3903 = vmatprep.subr.mxu0 0.0
        %3904 = vmatpush2.msra.mxu0 0.0
        %3905 = vmatprep.subr.mxu0 0.0
        %3906 = vmatpush2.msra.mxu0 0.0
        %3907 = vmatprep.subr.mxu0 0.0
        %3908 = vmatpush2.msra.mxu0 0.0
        %3909 = vmatprep.subr.mxu0 0.0
        %3910 = vmatpush2.msra.mxu0 0.0
        %3911 = vmatprep.subr.mxu0 0.0
        %3912 = vmatpush2.msra.mxu0 0.0
        %3913 = vmatprep.subr.mxu0 0.0
        %3914 = vmatpush2.msra.mxu0 0.0
        %3915 = vmatprep.mubr.f32.mxu0 0.0
        %3916 = vmatmul.mubr.f32.gmra.mxu0 %v3849
        %v3917 = vpop.f32.mrf.mxu0
        %v3918 = vadd.f32 %v3846, %v3917
        %v3919 = vpop.f32.mrf.mxu0
        %3920 = vdwg.mxu0
        %v3921 = vmul.f32 %v3918, 0.5
        %v3922 = vmul.f32 %v3918, 0.70710677
        %v3923 = vand.u32 2147483647, %v3922
        %v3924 = vmul.f32 %v3923, 0.3275911
        %v3925 = vadd.f32 %v3924, 1.0
        %v3926 = vrcp.pop %v3925
        %v3927 = vmul.f32 1.0, %v3926
        %v3928 = vmul.f32 %v3927, 1.0614054
        %v3929 = vadd.f32 %v3928, -1.4531521
        %v3930 = vmul.f32 %v3929, %v3927
        %v3931 = vadd.f32 %v3930, 1.4214138
        %v3932 = vmul.f32 %v3931, %v3927
        %v3933 = vadd.f32 %v3932, -0.28449672
        %v3934 = vmul.f32 %v3933, %v3927
        %v3935 = vadd.f32 %v3934, 0.2548296
        %v3936 = vmul.f32 %v3935, %v3927
        %v3937 = vsub.f32 0.0, %v3923
        %v3938 = vmul.f32 %v3937, %v3923
        %v3939 = vmul.f32 %v3938, 1.442695
        %v3940 = vpow.pop %v3939
        %v3941 = vmul.f32 %v3936, %v3940
        %v3942 = vsub.f32 1.0, %v3941
        %vm3943 = vcmp.ge.f32.partialorder %v3922, 0.0
        %v3944 = vsub.f32 0.0, %v3942
        %v3945 = vsel %vm3943, %v3942, %v3944
        %v3946 = vadd.f32 %v3945, 1.0
        %v3947 = vmul.f32 %v3921, %v3946
        %s3948 = scalar_lea.vmem %s14, 64
        %v3949 = vld [vmem:[%s3948] sm:$0xff]
        %v3950 = vld [vmem:[%s3948 + $0x8] sm:$0xff]
        %v3951 = vld [vmem:[%s3948 + $0x10] sm:$0xff]
        %v3952 = vld [vmem:[%s3948 + $0x18] sm:$0xff]
        %v3953 = vld [vmem:[%s3948 + $0x20] sm:$0xff]
        %v3954 = vld [vmem:[%s3948 + $0x28] sm:$0xff]
        %v3955 = vld [vmem:[%s3948 + $0x30] sm:$0xff]
        %v3956 = vld [vmem:[%s3948 + $0x38] sm:$0xff]
        %v3958 = vsel %vm2627, %v3947, 0
        %3960 = vmatprep.subr.mxu0 0.0
        %3961 = vmatpush1.msra.mxu0 0.0
        %3962 = vmatprep.subr.mxu0 0.0
        %3963 = vmatpush1.msra.mxu0 0.0
        %3964 = vmatprep.subr.mxu0 0.0
        %3965 = vmatpush1.msra.mxu0 0.0
        %3966 = vmatprep.subr.mxu0 0.0
        %3967 = vmatpush1.msra.mxu0 0.0
        %3968 = vmatprep.subr.mxu0 0.0
        %3969 = vmatpush1.msra.mxu0 0.0
        %3970 = vmatprep.subr.mxu0 0.0
        %3971 = vmatpush1.msra.mxu0 0.0
        %3972 = vmatprep.subr.mxu0 0.0
        %3973 = vmatpush1.msra.mxu0 0.0
        %3974 = vmatprep.subr.mxu0 0.0
        %3975 = vmatpush1.msra.mxu0 0.0
        %3976 = vmatprep.subr.mxu0 0.0
        %3977 = vmatpush1.msra.mxu0 %v3956
        %3978 = vmatprep.subr.mxu0 0.0
        %3979 = vmatpush1.msra.mxu0 %v3955
        %3980 = vmatprep.subr.mxu0 0.0
        %3981 = vmatpush1.msra.mxu0 %v3954
        %3982 = vmatprep.subr.mxu0 0.0
        %3983 = vmatpush1.msra.mxu0 %v3953
        %3984 = vmatprep.subr.mxu0 0.0
        %3985 = vmatpush1.msra.mxu0 %v3952
        %3986 = vmatprep.subr.mxu0 0.0
        %3987 = vmatpush1.msra.mxu0 %v3951
        %3988 = vmatprep.subr.mxu0 0.0
        %3989 = vmatpush1.msra.mxu0 %v3950
        %3990 = vmatprep.subr.mxu0 0.0
        %3991 = vmatpush1.msra.mxu0 %v3949
        %3992 = vmatprep.subr.mxu0 0.0
        %3993 = vmatpush2.msra.mxu0 0.0
        %3994 = vmatprep.subr.mxu0 0.0
        %3995 = vmatpush2.msra.mxu0 0.0
        %3996 = vmatprep.subr.mxu0 0.0
        %3997 = vmatpush2.msra.mxu0 0.0
        %3998 = vmatprep.subr.mxu0 0.0
        %3999 = vmatpush2.msra.mxu0 0.0
        %4000 = vmatprep.subr.mxu0 0.0
        %4001 = vmatpush2.msra.mxu0 0.0
        %4002 = vmatprep.subr.mxu0 0.0
        %4003 = vmatpush2.msra.mxu0 0.0
        %4004 = vmatprep.subr.mxu0 0.0
        %4005 = vmatpush2.msra.mxu0 0.0
        %4006 = vmatprep.subr.mxu0 0.0
        %4007 = vmatpush2.msra.mxu0 0.0
        %4008 = vmatprep.subr.mxu0 0.0
        %4009 = vmatpush2.msra.mxu0 0.0
        %4010 = vmatprep.subr.mxu0 0.0
        %4011 = vmatpush2.msra.mxu0 0.0
        %4012 = vmatprep.subr.mxu0 0.0
        %4013 = vmatpush2.msra.mxu0 0.0
        %4014 = vmatprep.subr.mxu0 0.0
        %4015 = vmatpush2.msra.mxu0 0.0
        %4016 = vmatprep.subr.mxu0 0.0
        %4017 = vmatpush2.msra.mxu0 0.0
        %4018 = vmatprep.subr.mxu0 0.0
        %4019 = vmatpush2.msra.mxu0 0.0
        %4020 = vmatprep.subr.mxu0 0.0
        %4021 = vmatpush2.msra.mxu0 0.0
        %4022 = vmatprep.subr.mxu0 0.0
        %4023 = vmatpush2.msra.mxu0 0.0
        %4024 = vmatprep.mubr.f32.mxu0 0.0
        %4025 = vmatmul.mubr.f32.gmra.mxu0 %v3958
        %v4026 = vpop.f32.mrf.mxu0
        %v4027 = vadd.f32 0.0, %v4026
        %v4028 = vpop.f32.mrf.mxu0
        %4029 = vdwg.mxu0
        %v4030 = vadd.f32 %v3803, %v4027
        %s4031 = scalar_lea.vmem %s15, 1
        %v4032 = vld [vmem:[%s4031] sm:$0x1]
        %v4034 = vlaneseq
        %v4035 = vshrl.u32 %v4034, 7
        %v4036 = vsub.s32 0, %v4035
        %v4037 = vrot.slane %v4032, %v4036
        %v4039 = vadd.f32 %v4030, %v4037
        %v4040 = vld [vmem:[%s16] sm:$0x1]
        %v4041 = vld [vmem:[%s17] sm:$0x1]
        %vm4042 = vcmask 253952
        %v4043 = vsel %vm4042, %v4039, 0.0
        %4044 = vadd.xlane.f32.xlu0 %v4043
        %v4045 = vpop.xlane.xlu0 %4044
        %v4046 = vmul.f32 %v4045, %v1390
        %v4047 = vsub.f32 %v4039, %v4046
        %v4048 = vmul.f32 %v4047, %v4047
        %v4049 = vsel %vm4042, %v4048, 0.0
        %4050 = vadd.xlane.f32.xlu0 %v4049
        %v4051 = vpop.xlane.xlu0 %4050
        %v4052 = vmul.f32 %v4051, %v1390
        %v4053 = vadd.f32 %v4052, 1e-06
        %v4054 = vrsqrt.pop %v4053
        %v4055 = vmul.f32 %v4047, %v4054
        %v4056 = vmul.f32 %v4055, %v4040
        %v4057 = vadd.f32 %v4056, %v4041
        %v4058 = vld [vmem:[%s758] sm:$0x1]
        %v4059 = vld [vmem:[%s20] sm:$0xff]
        %v4060 = vld [vmem:[%s20 + $0x8] sm:$0xff]
        %v4061 = vld [vmem:[%s20 + $0x10] sm:$0xff]
        %v4062 = vld [vmem:[%s20 + $0x18] sm:$0xff]
        %v4063 = vld [vmem:[%s21] sm:$0xff]
        %v4064 = vld [vmem:[%s21 + $0x8] sm:$0xf]
        %vm4065 = vcmask 97280
        %v4067 = vsel %vm4065, %v4058, 0
        %vm4069 = vcmask 1043456
        %v4071 = vsel %vm4069, %v4064, 0
        %4073 = vmatprep.subr.mxu0 0.0
        %4074 = vmatpush1.msra.mxu0 0.0
        %4075 = vmatprep.subr.mxu0 0.0
        %4076 = vmatpush1.msra.mxu0 0.0
        %4077 = vmatprep.subr.mxu0 0.0
        %4078 = vmatpush1.msra.mxu0 0.0
        %4079 = vmatprep.subr.mxu0 0.0
        %4080 = vmatpush1.msra.mxu0 0.0
        %4081 = vmatprep.subr.mxu0 0.0
        %4082 = vmatpush1.msra.mxu0 0.0
        %4083 = vmatprep.subr.mxu0 0.0
        %4084 = vmatpush1.msra.mxu0 0.0
        %4085 = vmatprep.subr.mxu0 0.0
        %4086 = vmatpush1.msra.mxu0 0.0
        %4087 = vmatprep.subr.mxu0 0.0
        %4088 = vmatpush1.msra.mxu0 0.0
        %4089 = vmatprep.subr.mxu0 0.0
        %4090 = vmatpush1.msra.mxu0 0.0
        %4091 = vmatprep.subr.mxu0 0.0
        %4092 = vmatpush1.msra.mxu0 0.0
        %4093 = vmatprep.subr.mxu0 0.0
        %4094 = vmatpush1.msra.mxu0 0.0
        %4095 = vmatprep.subr.mxu0 0.0
        %4096 = vmatpush1.msra.mxu0 0.0
        %4097 = vmatprep.subr.mxu0 0.0
        %4098 = vmatpush1.msra.mxu0 0.0
        %4099 = vmatprep.subr.mxu0 0.0
        %4100 = vmatpush1.msra.mxu0 0.0
        %4101 = vmatprep.subr.mxu0 0.0
        %4102 = vmatpush1.msra.mxu0 %v4071
        %4103 = vmatprep.subr.mxu0 0.0
        %4104 = vmatpush1.msra.mxu0 %v4063
        %4105 = vmatprep.subr.mxu0 0.0
        %4106 = vmatpush2.msra.mxu0 0.0
        %4107 = vmatprep.subr.mxu0 0.0
        %4108 = vmatpush2.msra.mxu0 0.0
        %4109 = vmatprep.subr.mxu0 0.0
        %4110 = vmatpush2.msra.mxu0 0.0
        %4111 = vmatprep.subr.mxu0 0.0
        %4112 = vmatpush2.msra.mxu0 0.0
        %4113 = vmatprep.subr.mxu0 0.0
        %4114 = vmatpush2.msra.mxu0 0.0
        %4115 = vmatprep.subr.mxu0 0.0
        %4116 = vmatpush2.msra.mxu0 0.0
        %4117 = vmatprep.subr.mxu0 0.0
        %4118 = vmatpush2.msra.mxu0 0.0
        %4119 = vmatprep.subr.mxu0 0.0
        %4120 = vmatpush2.msra.mxu0 0.0
        %4121 = vmatprep.subr.mxu0 0.0
        %4122 = vmatpush2.msra.mxu0 0.0
        %4123 = vmatprep.subr.mxu0 0.0
        %4124 = vmatpush2.msra.mxu0 0.0
        %4125 = vmatprep.subr.mxu0 0.0
        %4126 = vmatpush2.msra.mxu0 0.0
        %4127 = vmatprep.subr.mxu0 0.0
        %4128 = vmatpush2.msra.mxu0 0.0
        %4129 = vmatprep.subr.mxu0 0.0
        %4130 = vmatpush2.msra.mxu0 0.0
        %4131 = vmatprep.subr.mxu0 0.0
        %4132 = vmatpush2.msra.mxu0 0.0
        %4133 = vmatprep.subr.mxu0 0.0
        %4134 = vmatpush2.msra.mxu0 0.0
        %4135 = vmatprep.subr.mxu0 0.0
        %4136 = vmatpush2.msra.mxu0 0.0
        %4137 = vmatprep.mubr.f32.mxu0 0.0
        %4138 = vmatmul.mubr.f32.gmra.mxu0 %v4067
        %v4139 = vpop.f32.mrf.mxu0
        %v4140 = vadd.f32 0.0, %v4139
        %v4141 = vpop.f32.mrf.mxu0
        %4142 = vdwg.mxu0
        %v4144 = vsel %vm1426, %v4057, 0
        %4146 = vmatprep.subr.mxu0 0.0
        %4147 = vmatpush1.msra.mxu0 0.0
        %4148 = vmatprep.subr.mxu0 0.0
        %4149 = vmatpush1.msra.mxu0 0.0
        %4150 = vmatprep.subr.mxu0 0.0
        %4151 = vmatpush1.msra.mxu0 0.0
        %4152 = vmatprep.subr.mxu0 0.0
        %4153 = vmatpush1.msra.mxu0 0.0
        %4154 = vmatprep.subr.mxu0 0.0
        %4155 = vmatpush1.msra.mxu0 0.0
        %4156 = vmatprep.subr.mxu0 0.0
        %4157 = vmatpush1.msra.mxu0 0.0
        %4158 = vmatprep.subr.mxu0 0.0
        %4159 = vmatpush1.msra.mxu0 0.0
        %4160 = vmatprep.subr.mxu0 0.0
        %4161 = vmatpush1.msra.mxu0 0.0
        %4162 = vmatprep.subr.mxu0 0.0
        %4163 = vmatpush1.msra.mxu0 0.0
        %4164 = vmatprep.subr.mxu0 0.0
        %4165 = vmatpush1.msra.mxu0 0.0
        %4166 = vmatprep.subr.mxu0 0.0
        %4167 = vmatpush1.msra.mxu0 0.0
        %4168 = vmatprep.subr.mxu0 0.0
        %4169 = vmatpush1.msra.mxu0 0.0
        %4170 = vmatprep.subr.mxu0 0.0
        %4171 = vmatpush1.msra.mxu0 %v4062
        %4172 = vmatprep.subr.mxu0 0.0
        %4173 = vmatpush1.msra.mxu0 %v4061
        %4174 = vmatprep.subr.mxu0 0.0
        %4175 = vmatpush1.msra.mxu0 %v4060
        %4176 = vmatprep.subr.mxu0 0.0
        %4177 = vmatpush1.msra.mxu0 %v4059
        %4178 = vmatprep.subr.mxu0 0.0
        %4179 = vmatpush2.msra.mxu0 0.0
        %4180 = vmatprep.subr.mxu0 0.0
        %4181 = vmatpush2.msra.mxu0 0.0
        %4182 = vmatprep.subr.mxu0 0.0
        %4183 = vmatpush2.msra.mxu0 0.0
        %4184 = vmatprep.subr.mxu0 0.0
        %4185 = vmatpush2.msra.mxu0 0.0
        %4186 = vmatprep.subr.mxu0 0.0
        %4187 = vmatpush2.msra.mxu0 0.0
        %4188 = vmatprep.subr.mxu0 0.0
        %4189 = vmatpush2.msra.mxu0 0.0
        %4190 = vmatprep.subr.mxu0 0.0
        %4191 = vmatpush2.msra.mxu0 0.0
        %4192 = vmatprep.subr.mxu0 0.0
        %4193 = vmatpush2.msra.mxu0 0.0
        %4194 = vmatprep.subr.mxu0 0.0
        %4195 = vmatpush2.msra.mxu0 0.0
        %4196 = vmatprep.subr.mxu0 0.0
        %4197 = vmatpush2.msra.mxu0 0.0
        %4198 = vmatprep.subr.mxu0 0.0
        %4199 = vmatpush2.msra.mxu0 0.0
        %4200 = vmatprep.subr.mxu0 0.0
        %4201 = vmatpush2.msra.mxu0 0.0
        %4202 = vmatprep.subr.mxu0 0.0
        %4203 = vmatpush2.msra.mxu0 0.0
        %4204 = vmatprep.subr.mxu0 0.0
        %4205 = vmatpush2.msra.mxu0 0.0
        %4206 = vmatprep.subr.mxu0 0.0
        %4207 = vmatpush2.msra.mxu0 0.0
        %4208 = vmatprep.subr.mxu0 0.0
        %4209 = vmatpush2.msra.mxu0 0.0
        %4210 = vmatprep.mubr.f32.mxu0 0.0
        %4211 = vmatmul.mubr.f32.gmra.mxu0 %v4144
        %v4212 = vpop.f32.mrf.mxu0
        %v4213 = vadd.f32 %v4140, %v4212
        %v4214 = vpop.f32.mrf.mxu0
        %4215 = vdwg.mxu0
        %v4216 = vld [vmem:[%s22] sm:$0x1]
        %v4217 = vadd.f32 %v4213, %v4216
        %vm4218 = vcmask 114688
        %4219 = vst.msk [vmem:[%s750] sm:$0x1] %vm4218, %v4217
        %v4220 = vld [vmem:[%s18] sm:$0xff]
        %v4221 = vld [vmem:[%s18 + $0x8] sm:$0xff]
        %v4222 = vld [vmem:[%s18 + $0x10] sm:$0xff]
        %v4223 = vld [vmem:[%s18 + $0x18] sm:$0xff]
        %v4224 = vld [vmem:[%s19] sm:$0xff]
        %v4225 = vld [vmem:[%s19 + $0x8] sm:$0xf]
        %v4227 = vsel %vm4069, %v4225, 0
        %4229 = vmatprep.subr.mxu0 0.0
        %4230 = vmatpush1.msra.mxu0 0.0
        %4231 = vmatprep.subr.mxu0 0.0
        %4232 = vmatpush1.msra.mxu0 0.0
        %4233 = vmatprep.subr.mxu0 0.0
        %4234 = vmatpush1.msra.mxu0 0.0
        %4235 = vmatprep.subr.mxu0 0.0
        %4236 = vmatpush1.msra.mxu0 0.0
        %4237 = vmatprep.subr.mxu0 0.0
        %4238 = vmatpush1.msra.mxu0 0.0
        %4239 = vmatprep.subr.mxu0 0.0
        %4240 = vmatpush1.msra.mxu0 0.0
        %4241 = vmatprep.subr.mxu0 0.0
        %4242 = vmatpush1.msra.mxu0 0.0
        %4243 = vmatprep.subr.mxu0 0.0
        %4244 = vmatpush1.msra.mxu0 0.0
        %4245 = vmatprep.subr.mxu0 0.0
        %4246 = vmatpush1.msra.mxu0 0.0
        %4247 = vmatprep.subr.mxu0 0.0
        %4248 = vmatpush1.msra.mxu0 0.0
        %4249 = vmatprep.subr.mxu0 0.0
        %4250 = vmatpush1.msra.mxu0 0.0
        %4251 = vmatprep.subr.mxu0 0.0
        %4252 = vmatpush1.msra.mxu0 0.0
        %4253 = vmatprep.subr.mxu0 0.0
        %4254 = vmatpush1.msra.mxu0 0.0
        %4255 = vmatprep.subr.mxu0 0.0
        %4256 = vmatpush1.msra.mxu0 0.0
        %4257 = vmatprep.subr.mxu0 0.0
        %4258 = vmatpush1.msra.mxu0 %v4227
        %4259 = vmatprep.subr.mxu0 0.0
        %4260 = vmatpush1.msra.mxu0 %v4224
        %4261 = vmatprep.subr.mxu0 0.0
        %4262 = vmatpush2.msra.mxu0 0.0
        %4263 = vmatprep.subr.mxu0 0.0
        %4264 = vmatpush2.msra.mxu0 0.0
        %4265 = vmatprep.subr.mxu0 0.0
        %4266 = vmatpush2.msra.mxu0 0.0
        %4267 = vmatprep.subr.mxu0 0.0
        %4268 = vmatpush2.msra.mxu0 0.0
        %4269 = vmatprep.subr.mxu0 0.0
        %4270 = vmatpush2.msra.mxu0 0.0
        %4271 = vmatprep.subr.mxu0 0.0
        %4272 = vmatpush2.msra.mxu0 0.0
        %4273 = vmatprep.subr.mxu0 0.0
        %4274 = vmatpush2.msra.mxu0 0.0
        %4275 = vmatprep.subr.mxu0 0.0
        %4276 = vmatpush2.msra.mxu0 0.0
        %4277 = vmatprep.subr.mxu0 0.0
        %4278 = vmatpush2.msra.mxu0 0.0
        %4279 = vmatprep.subr.mxu0 0.0
        %4280 = vmatpush2.msra.mxu0 0.0
        %4281 = vmatprep.subr.mxu0 0.0
        %4282 = vmatpush2.msra.mxu0 0.0
        %4283 = vmatprep.subr.mxu0 0.0
        %4284 = vmatpush2.msra.mxu0 0.0
        %4285 = vmatprep.subr.mxu0 0.0
        %4286 = vmatpush2.msra.mxu0 0.0
        %4287 = vmatprep.subr.mxu0 0.0
        %4288 = vmatpush2.msra.mxu0 0.0
        %4289 = vmatprep.subr.mxu0 0.0
        %4290 = vmatpush2.msra.mxu0 0.0
        %4291 = vmatprep.subr.mxu0 0.0
        %4292 = vmatpush2.msra.mxu0 0.0
        %4293 = vmatprep.mubr.f32.mxu0 0.0
        %4294 = vmatmul.mubr.f32.gmra.mxu0 %v4067
        %v4295 = vpop.f32.mrf.mxu0
        %v4296 = vadd.f32 0.0, %v4295
        %v4297 = vpop.f32.mrf.mxu0
        %4298 = vdwg.mxu0
        %4299 = vmatprep.subr.mxu0 0.0
        %4300 = vmatpush1.msra.mxu0 0.0
        %4301 = vmatprep.subr.mxu0 0.0
        %4302 = vmatpush1.msra.mxu0 0.0
        %4303 = vmatprep.subr.mxu0 0.0
        %4304 = vmatpush1.msra.mxu0 0.0
        %4305 = vmatprep.subr.mxu0 0.0
        %4306 = vmatpush1.msra.mxu0 0.0
        %4307 = vmatprep.subr.mxu0 0.0
        %4308 = vmatpush1.msra.mxu0 0.0
        %4309 = vmatprep.subr.mxu0 0.0
        %4310 = vmatpush1.msra.mxu0 0.0
        %4311 = vmatprep.subr.mxu0 0.0
        %4312 = vmatpush1.msra.mxu0 0.0
        %4313 = vmatprep.subr.mxu0 0.0
        %4314 = vmatpush1.msra.mxu0 0.0
        %4315 = vmatprep.subr.mxu0 0.0
        %4316 = vmatpush1.msra.mxu0 0.0
        %4317 = vmatprep.subr.mxu0 0.0
        %4318 = vmatpush1.msra.mxu0 0.0
        %4319 = vmatprep.subr.mxu0 0.0
        %4320 = vmatpush1.msra.mxu0 0.0
        %4321 = vmatprep.subr.mxu0 0.0
        %4322 = vmatpush1.msra.mxu0 0.0
        %4323 = vmatprep.subr.mxu0 0.0
        %4324 = vmatpush1.msra.mxu0 %v4223
        %4325 = vmatprep.subr.mxu0 0.0
        %4326 = vmatpush1.msra.mxu0 %v4222
        %4327 = vmatprep.subr.mxu0 0.0
        %4328 = vmatpush1.msra.mxu0 %v4221
        %4329 = vmatprep.subr.mxu0 0.0
        %4330 = vmatpush1.msra.mxu0 %v4220
        %4331 = vmatprep.subr.mxu0 0.0
        %4332 = vmatpush2.msra.mxu0 0.0
        %4333 = vmatprep.subr.mxu0 0.0
        %4334 = vmatpush2.msra.mxu0 0.0
        %4335 = vmatprep.subr.mxu0 0.0
        %4336 = vmatpush2.msra.mxu0 0.0
        %4337 = vmatprep.subr.mxu0 0.0
        %4338 = vmatpush2.msra.mxu0 0.0
        %4339 = vmatprep.subr.mxu0 0.0
        %4340 = vmatpush2.msra.mxu0 0.0
        %4341 = vmatprep.subr.mxu0 0.0
        %4342 = vmatpush2.msra.mxu0 0.0
        %4343 = vmatprep.subr.mxu0 0.0
        %4344 = vmatpush2.msra.mxu0 0.0
        %4345 = vmatprep.subr.mxu0 0.0
        %4346 = vmatpush2.msra.mxu0 0.0
        %4347 = vmatprep.subr.mxu0 0.0
        %4348 = vmatpush2.msra.mxu0 0.0
        %4349 = vmatprep.subr.mxu0 0.0
        %4350 = vmatpush2.msra.mxu0 0.0
        %4351 = vmatprep.subr.mxu0 0.0
        %4352 = vmatpush2.msra.mxu0 0.0
        %4353 = vmatprep.subr.mxu0 0.0
        %4354 = vmatpush2.msra.mxu0 0.0
        %4355 = vmatprep.subr.mxu0 0.0
        %4356 = vmatpush2.msra.mxu0 0.0
        %4357 = vmatprep.subr.mxu0 0.0
        %4358 = vmatpush2.msra.mxu0 0.0
        %4359 = vmatprep.subr.mxu0 0.0
        %4360 = vmatpush2.msra.mxu0 0.0
        %4361 = vmatprep.subr.mxu0 0.0
        %4362 = vmatpush2.msra.mxu0 0.0
        %4363 = vmatprep.mubr.f32.mxu0 0.0
        %4364 = vmatmul.mubr.f32.gmra.mxu0 %v4144
        %v4365 = vpop.f32.mrf.mxu0
        %v4366 = vadd.f32 %v4296, %v4365
        %v4367 = vpop.f32.mrf.mxu0
        %4368 = vdwg.mxu0
        %v4369 = vmul.f32 %v4220, %v4220
        %v4370 = vmul.f32 %v4221, %v4221
        %v4371 = vmul.f32 %v4222, %v4222
        %v4372 = vmul.f32 %v4223, %v4223
        %vm4373 = vcmask 121856
        %v4374 = vsel %vm4373, %v4369, 0.0
        %v4375 = vsel %vm4373, %v4370, 0.0
        %v4376 = vadd.f32 %v4374, %v4375
        %v4377 = vsel %vm4373, %v4371, 0.0
        %v4378 = vadd.f32 %v4376, %v4377
        %v4379 = vsel %vm4373, %v4372, 0.0
        %v4380 = vadd.f32 %v4378, %v4379
        %v4381 = vrot.slane %v4380, 4
        %v4382 = vadd.f32 %v4380, %v4381
        %v4383 = vrot.slane %v4382, 2
        %v4384 = vadd.f32 %v4382, %v4383
        %v4385 = vrot.slane %v4384, 1
        %v4386 = vadd.f32 %v4384, %v4385
        %v4387 = vmul.f32 %v4224, %v4224
        %v4388 = vmul.f32 %v4225, %v4225
        %v4389 = vsel %vm4373, %v4387, 0.0
        %vm4390 = vcmask 117760
        %v4391 = vsel %vm4390, %v4388, 0.0
        %v4392 = vadd.f32 %v4389, %v4391
        %v4393 = vrot.slane %v4392, 4
        %v4394 = vadd.f32 %v4392, %v4393
        %v4395 = vrot.slane %v4394, 2
        %v4396 = vadd.f32 %v4394, %v4395
        %v4397 = vrot.slane %v4396, 1
        %v4398 = vadd.f32 %v4396, %v4397
        %v4399 = vadd.f32 %v4386, %v4398
        %v4400 = vmul.f32 %v4057, %v4057
        %v4401 = vsel %vm4042, %v4400, 0.0
        %4402 = vadd.xlane.f32.xlu0 %v4401
        %v4403 = vpop.xlane.xlu0 %4402
        %v4404 = vmul.f32 %v4058, %v4058
        %vm4405 = vcmask 90112
        %v4406 = vsel %vm4405, %v4404, 0.0
        %4407 = vadd.xlane.f32.xlu0 %v4406
        %v4408 = vpop.xlane.xlu0 %4407
        %v4409 = vadd.f32 %v4403, %v4408
        %v4410 = vrsqrt.pop %v4399
        %v4411 = vmul.f32 %v4399, %v4410
        %vm4412 = vcmp.eq.f32.partialorder %v4399, inf
        %v4413 = vsel %vm4412, %v4399, %v4411
        %vm4414 = vcmp.eq.f32.partialorder %v4399, 0.0
        %v4415 = vand.u32 %v4399, 2147483648
        %v4416 = vsel %vm4414, %v4415, %v4413
        %v4417 = vmax.f32 %v4416, 1e-12
        %v4418 = vrcp.pop %v4417
        %v4419 = vmul.f32 1.0, %v4418
        %v4420 = vrsqrt.pop %v4409
        %v4421 = vmul.f32 %v4409, %v4420
        %vm4422 = vcmp.eq.f32.partialorder %v4409, inf
        %v4423 = vsel %vm4422, %v4409, %v4421
        %vm4424 = vcmp.eq.f32.partialorder %v4409, 0.0
        %v4425 = vand.u32 %v4409, 2147483648
        %v4426 = vsel %vm4424, %v4425, %v4423
        %v4427 = vmax.f32 %v4426, 1e-12
        %v4428 = vrcp.pop %v4427
        %v4429 = vmul.f32 1.0, %v4428
        %v4430 = vmul.f32 %v4366, %v4419
        %v4431 = vmul.f32 %v4430, %v4429
        %4432 = vst.msk [vmem:[%s744] sm:$0x1] %vm4218, %v4431
        %s4433 = sand.u32 %s543, 1
        %s4434 = scalar_lea.sflag [#allocation3], %s4433
        %s4435 = sand.u32 %s543, 1
        %s4436 = scalar_lea.vmem [#allocation2], %s4435
        %s4437 = sand.u32 %s569, 1
        %s4438 = scalar_lea.sflag [#allocation5], %s4437
        %s4439 = sand.u32 %s569, 1
        %s4440 = scalar_lea.vmem [#allocation4], %s4439
        // Predicated region
        $region113: #{custom_vit_forward.1} parent=111 // pred_check
          %p4441 = pneg %p553
        $region114: #{custom_vit_forward.1} parent=111 // pred_check_branch
          %4443 = sbr.rel (%p4441) target = $region116
        $region115: #{custom_vit_forward.1} parent=111 // pred_region
          %s4445 = ssub.s32 16, 16
          %4446 = vsyncadd %s4434, %s4445
          %s4447 = smul.addr %s42, 16
          %s4448 = scalar_lea.hbm %s23, %s4447
          %s4450 = sshll.u32 %s4436, 4
          %s4451 = int_to_ptr.vmem [resolvable:$true] %s4450
          %4453 = dma.vmem_to_hbm [thread:$0]  %s4451, 16, %s4448, %s4434
        $region116: #{custom_vit_forward.1} parent=111 // pred_fallthru
          _
        // Predicated region
        $region117: #{custom_vit_forward.1} parent=111 // pred_check
          %p4454 = pneg %p579
        $region118: #{custom_vit_forward.1} parent=111 // pred_check_branch
          %4456 = sbr.rel (%p4454) target = $region120
        $region119: #{custom_vit_forward.1} parent=111 // pred_region
          %s4458 = ssub.s32 16, 16
          %4459 = vsyncadd %s4438, %s4458
          %s4460 = smul.addr %s42, 16
          %s4461 = scalar_lea.hbm %s24, %s4460
          %s4463 = sshll.u32 %s4440, 4
          %s4464 = int_to_ptr.vmem [resolvable:$true] %s4463
          %4466 = dma.vmem_to_hbm [thread:$0]  %s4464, 16, %s4461, %s4438
        $region120: #{custom_vit_forward.1} parent=111 // pred_fallthru
          _
      $region112: #{custom_vit_forward.1} parent=5 // pred_fallthru
        _
      %p4467 = scmp.le.s32.totalorder 2, %s37
      // Predicated region
      $region121: #{custom_vit_forward.1} parent=5 // pred_check
        %p4468 = pneg %p4467
      $region122: #{custom_vit_forward.1} parent=5 // pred_check_branch
        %4470 = sbr.rel (%p4468) target = $region124
      $region123: #{custom_vit_forward.1} parent=5 // pred_region
        %s4471 = ssub.s32 %s37, 2
        // Predicated region
        $region125: #{custom_vit_forward.1} parent=123 // pred_check
          %p4472 = pneg %p559
        $region126: #{custom_vit_forward.1} parent=123 // pred_check_branch
          %4474 = sbr.rel (%p4472) target = $region128
        $region127: #{custom_vit_forward.1} parent=123 // pred_region
          %s4475 = sand.u32 %s544, 1
          %s4476 = scalar_lea.sflag [#allocation3], %s4475
          %s4477 = sand.u32 %s544, 1
          %s4478 = scalar_lea.vmem [#allocation2], %s4477
          %4479 = dma.done %s4476, 16
        $region128: #{custom_vit_forward.1} parent=123 // pred_fallthru
          _
        // Predicated region
        $region129: #{custom_vit_forward.1} parent=123 // pred_check
          %p4480 = pneg %p585
        $region130: #{custom_vit_forward.1} parent=123 // pred_check_branch
          %4482 = sbr.rel (%p4480) target = $region132
        $region131: #{custom_vit_forward.1} parent=123 // pred_region
          %s4483 = sand.u32 %s570, 1
          %s4484 = scalar_lea.sflag [#allocation5], %s4483
          %s4485 = sand.u32 %s570, 1
          %s4486 = scalar_lea.vmem [#allocation4], %s4485
          %4487 = dma.done %s4484, 16
        $region132: #{custom_vit_forward.1} parent=123 // pred_fallthru
          _
      $region124: #{custom_vit_forward.1} parent=5 // pred_fallthru
        _
    $region6: #{custom_vit_forward.1} parent=1 // loop_footer
      %s41 = sadd.s32 1, %s37
    $region7: #{custom_vit_forward.1} parent=1 // loop_footer_branch
      %36 = sbr.rel target = $region3
    $region8: #{custom_vit_forward.1} parent=1 // loop_exit
      _
    %4488 = vsyncpa [#allocation3], 1
    %s4489 = scalar_lea.sflag [#allocation3], 1
    %4490 = vsyncpa %s4489, 1
    %4491 = vsyncpa [#allocation5], 1
    %s4492 = scalar_lea.sflag [#allocation5], 1
    %4493 = vsyncpa %s4492, 1

</llo_original>
